<compile_context>
chip_gen: v7x
topology: tpu7x:2x2x1
jax: 0.10.0
libtpu: 0.0.40
codegen_flags: <defaults>
</compile_context>

<pallas_src>
import math
import functools

import jax
import jax.numpy as jnp
from jax.experimental import pallas as pl
from jax.experimental.pallas import tpu as pltpu

_SQRT2 = math.sqrt(2.0)
_INV_SQRT2 = 1.0 / math.sqrt(2.0)
_LRELU = 0.2
_T4 = (0.125, 0.375, 0.375, 0.125)        # [1,3,3,1]/8 ; make_kernel = outer(t,t)
# 1-D blur taps regrouped per (parity, output offset -1/0/+1) for the fused
# stride-2 subsample (polyphase decomposition of the [1,3,3,1]/8 FIR).
_TP = ((0.0, 0.375, 0.125),               # parity 0 plane: offsets -1, 0, +1
       (0.125, 0.375, 0.0))               # parity 1 plane


def _vmem_limit_bytes():
    """~3/4 of physical VMEM (96 MiB on 128 MiB parts, 48 MiB on v7x 64 MiB)."""
    try:
        cap = int(pltpu.get_tpu_info().vmem_capacity_bytes)
    except Exception:
        cap = 64 * 1024 * 1024
    return min(int(cap * 3 // 4), 96 * 1024 * 1024)


def _cparams():
    return pltpu.CompilerParams(
        dimension_semantics=("parallel", "parallel"),
        vmem_limit_bytes=_vmem_limit_bytes())


def _co_tile(co, batch, cap=256):
    """Largest divisor of co <= cap, keeping >= 2 parallel grid steps (v7x 2-TC)."""
    t = min(co, cap)
    while t > 8 and co % t:
        t -= 8
    if t <= 0 or co % t:
        t = co
    while batch * (co // t) < 2 and t % 2 == 0 and t > 8:
        t //= 2
    return t


# ---------------------------------------------------------------------------
# Pallas kernels
# ---------------------------------------------------------------------------

def _conv1_kernel(x_ref, w_ref, b_ref, o_ref, slab_ref, *, W):
    """3x3 'same' EqualConv2d + FusedLeakyReLU as an implicit, K-packed GEMM.

    x_ref    : (1, Ci, P + 2*(W+1)) bf16  flattened image, (W+1) zeros each end
    w_ref    : (3, Co_t, 3*Ci)      bf16  per-row-offset weights, K packed (dj, ci)
    b_ref    : (Co_t, 1)            f32   bias (sqrt(2) folded in)
    o_ref    : (1, Co_t, P)         bf16  lane-dense flattened output
    slab_ref : (3*Ci, P + 2*W)      bf16  scratch: column-shifted, edge-masked slabs
    """
    Ci = x_ref.shape[1]
    P = o_ref.shape[2]
    Pe = P + 2 * W
    x = x_ref[0]                                          # (Ci, Pp) bf16
    col = jax.lax.broadcasted_iota(jnp.int32, (1, Pe), 1) % W
    zero = jnp.zeros((), x.dtype)
    # dj = 0 (w-1), 1 (w), 2 (w+1): built once, reused by all three row offsets.
    slab_ref[0 * Ci:1 * Ci, :] = jnp.where(col > 0, x[:, 0:Pe], zero)
    slab_ref[1 * Ci:2 * Ci, :] = x[:, 1:1 + Pe]
    slab_ref[2 * Ci:3 * Ci, :] = jnp.where(col < W - 1, x[:, 2:2 + Pe], zero)

    acc = jnp.zeros((o_ref.shape[1], P), jnp.float32)
    for di in range(3):                                   # 3 MXU dots, K = 3*Ci
        acc += jnp.dot(w_ref[di], slab_ref[:, di * W:di * W + P],
                       preferred_element_type=jnp.float32)
    out = acc + b_ref[...]
    o_ref[0] = jnp.where(out >= 0.0, out, _LRELU * out).astype(o_ref.dtype)


def _down_fused_kernel(xp_ref, op_ref, w2_ref, ws_ref, b2_ref, o_ref, slab_ref, *, Wo):
    """Fused downsample half of the ResBlock (per batch element / Co tile):

        out2 = LeakyReLU( Conv3x3_s2( Blur_pad2(out1) ) + b2 )   (*sqrt2 folded)
        skip = Conv1x1_s2( Blur_pad1(x) )                        (/sqrt2 folded)
        o    = out2 + skip

    Blur + stride-2 conv is collapsed into one 6x6 stride-2 conv (W6 = w2 full-
    convolved with the blur kernel, done host-side on the tiny weights); the
    stride-2 access pattern is removed by the wrapper's polyphase split, so all
    taps are dense lane shifts of the 4 parity planes.

    xp_ref   : (1, 4, Ci, Po + 2*(Wo+1)) bf16  x    polyphase planes, flat-padded
    op_ref   : (1, 4, Ci, Po + 2*(Wo+1)) bf16  out1 polyphase planes, flat-padded
    w2_ref   : (3, Co_t, 12*Ci)          bf16  composite weights, K packed (plane, dj, ci)
    ws_ref   : (Co_t, Ci)                bf16  skip 1x1 weights (scale & /sqrt2 folded)
    b2_ref   : (Co_t, 1)                 f32
    o_ref    : (1, Co_t, Po)             f32   final ResBlock output (flattened)
    slab_ref : (12*Ci, Po + 2*Wo)        bf16  scratch for the packed conv2 slab
    """
    Ci = xp_ref.shape[2]
    Po = o_ref.shape[2]
    Pe = Po + 2 * Wo
    base = Wo + 1
    colE = jax.lax.broadcasted_iota(jnp.int32, (1, Pe), 1) % Wo
    colO = jax.lax.broadcasted_iota(jnp.int32, (1, Po), 1) % Wo
    mLo, mRo = colO > 0, colO < Wo - 1

    # ---- conv2 path: pack 4 planes x 3 column shifts along K ----
    for r in range(4):
        z = op_ref[0, r]                                  # (Ci, Pp) bf16
        zero = jnp.zeros((), z.dtype)
        slab_ref[(3 * r + 0) * Ci:(3 * r + 1) * Ci, :] = jnp.where(colE > 0, z[:, 0:Pe], zero)
        slab_ref[(3 * r + 1) * Ci:(3 * r + 2) * Ci, :] = z[:, 1:1 + Pe]
        slab_ref[(3 * r + 2) * Ci:(3 * r + 3) * Ci, :] = jnp.where(colE < Wo - 1, z[:, 2:2 + Pe], zero)
    acc2 = jnp.zeros((o_ref.shape[1], Po), jnp.float32)
    for di in range(3):                                   # 3 MXU dots, K = 12*Ci
        acc2 += jnp.dot(w2_ref[di], slab_ref[:, di * Wo:di * Wo + Po],
                        preferred_element_type=jnp.float32)

    # ---- skip path: depthwise blur+subsample (16 shifted FMAs), then 1x1 GEMM ----
    blurred = jnp.zeros((Ci, Po), jnp.float32)
    for r in range(4):
        ra, rb = r // 2, r % 2
        xplane = xp_ref[0, r]                             # (Ci, Pp) bf16
        for di in range(3):
            cy = _TP[ra][di]
            if cy == 0.0:
                continue
            for dj in range(3):
                cx = _TP[rb][dj]
                if cx == 0.0:
                    continue
                off = base + (di - 1) * Wo + (dj - 1)
                s = xplane[:, off:off + Po].astype(jnp.float32)
                if dj == 0:
                    s = jnp.where(mLo, s, 0.0)
                elif dj == 2:
                    s = jnp.where(mRo, s, 0.0)
                blurred += (cy * cx) * s
    skip = jnp.dot(ws_ref[...], blurred.astype(jnp.bfloat16),
                   preferred_element_type=jnp.float32)

    out = acc2 + b2_ref[...]
    out = jnp.where(out >= 0.0, out, _LRELU * out)
    o_ref[0] = out + skip


# ---------------------------------------------------------------------------
# Wrappers (layout plumbing: flatten, pad, polyphase split, weight folding)
# ---------------------------------------------------------------------------

def conv1_lrelu(x, w1, b1):
    """conv1 = EqualConv2d(Ci,Ci,3,pad=1,no bias) + FusedLeakyReLU(bias). bf16 out."""
    B, Ci, H, W = x.shape
    Co = w1.shape[0]
    P = H * W
    pad = W + 1
    xf = jnp.pad(x.reshape(B, Ci, P), ((0, 0), (0, 0), (pad, pad))).astype(jnp.bfloat16)
    # equalized-LR scale and the post-LeakyReLU *sqrt(2) folded into weights/bias
    scale = _SQRT2 / math.sqrt(Ci * 9)
    wpk = jnp.transpose(w1 * scale, (2, 0, 3, 1)).reshape(3, Co, 3 * Ci).astype(jnp.bfloat16)
    b2d = (b1 * _SQRT2).reshape(Co, 1).astype(jnp.float32)
    tco = _co_tile(Co, B)
    kern = functools.partial(_conv1_kernel, W=W)
    return pl.pallas_call(
        kern,
        out_shape=jax.ShapeDtypeStruct((B, Co, P), jnp.bfloat16),
        grid=(B, Co // tco),
        in_specs=[pl.BlockSpec((1, Ci, P + 2 * pad), lambda b, j: (b, 0, 0)),
                  pl.BlockSpec((3, tco, 3 * Ci), lambda b, j: (0, j, 0)),
                  pl.BlockSpec((tco, 1), lambda b, j: (j, 0))],
        out_specs=pl.BlockSpec((1, tco, P), lambda b, j: (b, j, 0)),
        scratch_shapes=[pltpu.VMEM((3 * Ci, P + 2 * W), jnp.bfloat16)],
        compiler_params=_cparams(),
    )(xf, wpk, b2d)                                       # (B, Ci, H*W) bf16


def _poly_flat_pad(t, H, W):
    """(B, C, H, W) -> (B, 4, C, Ho*Wo + 2*(Wo+1)) bf16 polyphase planes.

    plane r = 2*row_parity + col_parity; each plane is flattened lane-dense and
    zero-padded by (Wo+1) on both ends so 3x3 neighbourhood taps at the output
    resolution are plain lane shifts (row overflow lands in the pad, column
    wrap is masked in-kernel)."""
    B, C = t.shape[0], t.shape[1]
    Ho, Wo = H // 2, W // 2
    p = t.reshape(B, C, Ho, 2, Wo, 2).transpose(0, 3, 5, 1, 2, 4).reshape(B, 4, C, Ho * Wo)
    return jnp.pad(p, ((0, 0), (0, 0), (0, 0), (Wo + 1, Wo + 1))).astype(jnp.bfloat16)


def _composite_conv2_weights(w2, Ci):
    """Collapse Blur([1,3,3,1], pad=2) + 3x3 stride-2 EqualConv2d into one 6x6
    stride-2 kernel: W6[a,b] = sum_{u,v} (w2*scale)[u,v] * k4[a-u, b-v]."""
    t = jnp.asarray(_T4, jnp.float32)
    k4 = jnp.outer(t, t)
    w2e = w2.astype(jnp.float32) * (1.0 / math.sqrt(Ci * 9))
    Co = w2.shape[0]
    W6 = jnp.zeros((Co, Ci, 6, 6), jnp.float32)
    for u in range(3):
        for v in range(3):
            W6 = W6.at[:, :, u:u + 4, v:v + 4].add(w2e[:, :, u, v][:, :, None, None] * k4)
    return W6


def down_fused(x, out1_flat, w2, b2, ws):
    """Everything after conv1: blur+conv2+bias+LeakyReLU, blur+skip, and the add."""
    B, Ci, H, W = x.shape
    Co = w2.shape[0]
    Ho, Wo = H // 2, W // 2
    Po = Ho * Wo
    Pp = Po + 2 * (Wo + 1)

    xpp = _poly_flat_pad(x, H, W)
    opp = _poly_flat_pad(out1_flat.reshape(B, Ci, H, W), H, W)

    # conv2 composite 6x6 weights regrouped per row offset di x (plane, dj, ci)
    W6 = _composite_conv2_weights(w2, Ci)
    w2pk = jnp.stack(
        [jnp.concatenate([W6[:, :, 2 * di + r // 2, 2 * dj + r % 2]
                          for r in range(4) for dj in range(3)], axis=1)
         for di in range(3)], axis=0).astype(jnp.bfloat16)           # (3, Co, 12*Ci)
    # skip 1x1: equalized scale and the final /sqrt(2) folded in
    wse = (ws.reshape(Co, Ci) * (_INV_SQRT2 / math.sqrt(Ci))).astype(jnp.bfloat16)
    b2d = b2.reshape(Co, 1).astype(jnp.float32)

    tco = _co_tile(Co, B)
    kern = functools.partial(_down_fused_kernel, Wo=Wo)
    out = pl.pallas_call(
        kern,
        out_shape=jax.ShapeDtypeStruct((B, Co, Po), jnp.float32),
        grid=(B, Co // tco),
        in_specs=[pl.BlockSpec((1, 4, Ci, Pp), lambda b, j: (b, 0, 0, 0)),
                  pl.BlockSpec((1, 4, Ci, Pp), lambda b, j: (b, 0, 0, 0)),
                  pl.BlockSpec((3, tco, 12 * Ci), lambda b, j: (0, j, 0)),
                  pl.BlockSpec((tco, Ci), lambda b, j: (j, 0)),
                  pl.BlockSpec((tco, 1), lambda b, j: (j, 0))],
        out_specs=pl.BlockSpec((1, tco, Po), lambda b, j: (b, j, 0)),
        scratch_shapes=[pltpu.VMEM((12 * Ci, Po + 2 * Wo), jnp.bfloat16)],
        compiler_params=_cparams(),
    )(xpp, opp, w2pk, wse, b2d)
    return out.reshape(B, Co, Ho, Wo)


def resblock_forward(x, p):
    """ResBlock.forward: conv1 -> conv2(down), skip(down), (out+skip)/sqrt(2)."""
    B, Ci, H, W = x.shape
    assert H % 2 == 0 and W % 2 == 0
    out1 = conv1_lrelu(x, p['w1'], p['b1'])                # (B, Ci, H*W) bf16
    return down_fused(x, out1, p['w2'], p['b2'], p['ws'])


# ---------------------------------------------------------------------------
# Pure-JAX reference (f32, HIGHEST precision) matching the PyTorch module
# ---------------------------------------------------------------------------

def resblock_reference(x, p):
    k1 = jnp.array([1., 3., 3., 1.], jnp.float32)
    k2 = jnp.outer(k1, k1)
    k2 = k2 / jnp.sum(k2)

    def econv(inp, w, stride, padding):
        scale = 1.0 / math.sqrt(w.shape[1] * w.shape[2] * w.shape[3])
        return jax.lax.conv_general_dilated(
            inp, w * scale, (stride, stride), [(padding, padding)] * 2,
            dimension_numbers=('NCHW', 'OIHW', 'NCHW'),
            precision=jax.lax.Precision.HIGHEST)

    def flrelu(inp, bias):
        y = inp + bias.reshape(1, -1, 1, 1)
        return jnp.where(y >= 0, y, 0.2 * y) * math.sqrt(2.0)

    def blur(inp, pad):
        C = inp.shape[1]
        xp = jnp.pad(inp, ((0, 0), (0, 0), (pad, pad), (pad, pad)))
        wk = jnp.broadcast_to(k2[None, None], (C, 1, 4, 4))
        return jax.lax.conv_general_dilated(
            xp, wk, (1, 1), [(0, 0), (0, 0)],
            dimension_numbers=('NCHW', 'OIHW', 'NCHW'),
            feature_group_count=C, precision=jax.lax.Precision.HIGHEST)

    out = flrelu(econv(x, p['w1'], 1, 1), p['b1'])
    out = flrelu(econv(blur(out, 2), p['w2'], 2, 0), p['b2'])
    skip = econv(blur(x, 1), p['ws'], 2, 0)
    return (out + skip) / math.sqrt(2.0)


# ---------------------------------------------------------------------------
# Main
# ---------------------------------------------------------------------------

if __name__ == "__main__":
    B, Ci, Co, H, W = 2, 64, 128, 16, 16

    key = jax.random.PRNGKey(0)
    ks = jax.random.split(key, 6)
    x = jax.random.normal(ks[0], (B, Ci, H, W), jnp.float32)
    params = {
        'w1': jax.random.normal(ks[1], (Ci, Ci, 3, 3), jnp.float32),
        'b1': 0.1 * jax.random.normal(ks[2], (Ci,), jnp.float32),
        'w2': jax.random.normal(ks[3], (Co, Ci, 3, 3), jnp.float32),
        'b2': 0.1 * jax.random.normal(ks[4], (Co,), jnp.float32),
        'ws': jax.random.normal(ks[5], (Co, Ci, 1, 1), jnp.float32),
    }

    out = jax.jit(resblock_forward)(x, params)
    out = jax.block_until_ready(out)

    assert out.shape == (B, Co, H // 2, W // 2), out.shape
    assert bool(jnp.all(jnp.isfinite(out)))

    ref = resblock_reference(x, params)
    max_err = float(jnp.max(jnp.abs(out - ref)))
    assert max_err < 0.08, f"max abs err {max_err}"

    print("KERNEL_OK")
</pallas_src>

<mosaic_0001>
module attributes {stable_mosaic.version = 11 : i64} {
  func.func @_conv1_kernel(%arg0: i32, %arg1: i32, %arg2: memref<1x64x290xbf16, #tpu.memory_space<vmem>>, %arg3: memref<3x64x192xbf16, #tpu.memory_space<vmem>>, %arg4: memref<64x1xf32, #tpu.memory_space<vmem>>, %arg5: memref<1x64x256xbf16, #tpu.memory_space<vmem>>, %arg6: memref<192x288xbf16, #tpu.memory_space<vmem>>) attributes {dimension_semantics = [#tpu.dimension_semantics<parallel>, #tpu.dimension_semantics<parallel>], iteration_bounds = array<i64: 2, 1>, scalar_prefetch = 0 : i64, scratch_operands = 1 : i64, tpu.core_type = #tpu.core_type<tc>, window_params = [{transform_indices = @transform_0, window_bounds = array<i64: 1, 64, 290>}, {transform_indices = @transform_1, window_bounds = array<i64: 3, 64, 192>}, {transform_indices = @transform_2, window_bounds = array<i64: 64, 1>}, {transform_indices = @transform_3, window_bounds = array<i64: 1, 64, 256>}]} {
    %c0 = arith.constant 0 : index
    %c0_0 = arith.constant 0 : index
    %c0_1 = arith.constant 0 : index
    %0 = vector.load %arg2[%c0, %c0_0, %c0_1] : memref<1x64x290xbf16, #tpu.memory_space<vmem>>, vector<1x64x290xbf16>
    %1 = vector.shape_cast %0 : vector<1x64x290xbf16> to vector<64x290xbf16>
    %2 = tpu.iota {dimensions = array<i32: 1>} : vector<1x288xi32>
    %c16_i32 = arith.constant 16 : i32
    %c0_i32 = arith.constant 0 : i32
    %3 = arith.cmpi eq, %c16_i32, %c0_i32 : i32
    %c1_i32 = arith.constant 1 : i32
    %4 = arith.select %3, %c1_i32, %c16_i32 : i32
    %5 = vector.broadcast %4 : i32 to vector<1x288xi32>
    %6 = arith.remsi %2, %5 : vector<1x288xi32>
    %c0_i32_2 = arith.constant 0 : i32
    %7 = vector.broadcast %c0_i32_2 : i32 to vector<1x288xi32>
    %8 = arith.cmpi ne, %6, %7 : vector<1x288xi32>
    %c0_i32_3 = arith.constant 0 : i32
    %9 = vector.broadcast %c0_i32_3 : i32 to vector<1x288xi32>
    %10 = arith.cmpi slt, %6, %9 : vector<1x288xi32>
    %c0_i32_4 = arith.constant 0 : i32
    %11 = arith.cmpi slt, %4, %c0_i32_4 : i32
    %12 = vector.broadcast %11 : i1 to vector<1x288xi1>
    %13 = vector.broadcast %12 : vector<1x288xi1> to vector<1x288xi1>
    %14 = arith.xori %10, %13 : vector<1x288xi1>
    %15 = arith.andi %14, %8 : vector<1x288xi1>
    %16 = vector.broadcast %4 : i32 to vector<1x288xi32>
    %17 = arith.addi %6, %16 : vector<1x288xi32>
    %18 = arith.select %15, %17, %6 : vector<1x288xi1>, vector<1x288xi32>
    %c0_i32_5 = arith.constant 0 : i32
    %19 = vector.broadcast %c0_i32_5 : i32 to vector<1x288xi32>
    %20 = arith.cmpi sgt, %18, %19 : vector<1x288xi32>
    %21 = vector.extract_strided_slice %1 {offsets = [0, 0], sizes = [64, 288], strides = [1, 1]} : vector<64x290xbf16> to vector<64x288xbf16>
    %cst = arith.constant 0.000000e+00 : bf16
    %22 = vector.shape_cast %20 : vector<1x288xi1> to vector<1x288xi1>
    %23 = vector.broadcast %22 : vector<1x288xi1> to vector<64x288xi1>
    %24 = vector.broadcast %cst : bf16 to vector<64x288xbf16>
    %25 = arith.select %23, %21, %24 : vector<64x288xi1>, vector<64x288xbf16>
    %c0_6 = arith.constant 0 : index
    %c0_7 = arith.constant 0 : index
    %26 = vector.load %arg6[%c0_6, %c0_7] : memref<192x288xbf16, #tpu.memory_space<vmem>>, vector<64x288xbf16>
    tpu.vector_store %arg6[%c0_6, %c0_7], %25 {strides = array<i32>} : memref<192x288xbf16, #tpu.memory_space<vmem>>, vector<64x288xbf16>,
    %27 = vector.extract_strided_slice %1 {offsets = [0, 1], sizes = [64, 288], strides = [1, 1]} : vector<64x290xbf16> to vector<64x288xbf16>
    %c64 = arith.constant 64 : index
    %c0_8 = arith.constant 0 : index
    %28 = vector.load %arg6[%c64, %c0_8] : memref<192x288xbf16, #tpu.memory_space<vmem>>, vector<64x288xbf16>
    tpu.vector_store %arg6[%c64, %c0_8], %27 {strides = array<i32>} : memref<192x288xbf16, #tpu.memory_space<vmem>>, vector<64x288xbf16>,
    %c15_i32 = arith.constant 15 : i32
    %29 = vector.broadcast %c15_i32 : i32 to vector<1x288xi32>
    %30 = arith.cmpi slt, %18, %29 : vector<1x288xi32>
    %31 = vector.extract_strided_slice %1 {offsets = [0, 2], sizes = [64, 288], strides = [1, 1]} : vector<64x290xbf16> to vector<64x288xbf16>
    %cst_9 = arith.constant 0.000000e+00 : bf16
    %32 = vector.shape_cast %30 : vector<1x288xi1> to vector<1x288xi1>
    %33 = vector.broadcast %32 : vector<1x288xi1> to vector<64x288xi1>
    %34 = vector.broadcast %cst_9 : bf16 to vector<64x288xbf16>
    %35 = arith.select %33, %31, %34 : vector<64x288xi1>, vector<64x288xbf16>
    %c128 = arith.constant 128 : index
    %c0_10 = arith.constant 0 : index
    %36 = vector.load %arg6[%c128, %c0_10] : memref<192x288xbf16, #tpu.memory_space<vmem>>, vector<64x288xbf16>
    tpu.vector_store %arg6[%c128, %c0_10], %35 {strides = array<i32>} : memref<192x288xbf16, #tpu.memory_space<vmem>>, vector<64x288xbf16>,
    %cst_11 = arith.constant 0.000000e+00 : f32
    %37 = vector.broadcast %cst_11 : f32 to vector<64x256xf32>
    %c0_12 = arith.constant 0 : index
    %c0_13 = arith.constant 0 : index
    %c0_14 = arith.constant 0 : index
    %38 = vector.load %arg3[%c0_12, %c0_13, %c0_14] : memref<3x64x192xbf16, #tpu.memory_space<vmem>>, vector<1x64x192xbf16>
    %39 = vector.shape_cast %38 : vector<1x64x192xbf16> to vector<64x192xbf16>
    %c0_15 = arith.constant 0 : index
    %c0_16 = arith.constant 0 : index
    %40 = vector.load %arg6[%c0_15, %c0_16] : memref<192x288xbf16, #tpu.memory_space<vmem>>, vector<192x256xbf16>
    %cst_17 = arith.constant dense<0.000000e+00> : vector<64x256xf32>
    %41 = tpu.matmul %39, %40, %cst_17 {dimension_numbers = #tpu.dot_dimension_numbers<[1], [0], [0], [1], [0, 0, 1, 1], [], []>} : vector<64x192xbf16>, vector<192x256xbf16>, vector<64x256xf32> -> vector<64x256xf32>
    %42 = arith.addf %37, %41 : vector<64x256xf32>
    %c1 = arith.constant 1 : index
    %c0_18 = arith.constant 0 : index
    %c0_19 = arith.constant 0 : index
    %43 = vector.load %arg3[%c1, %c0_18, %c0_19] : memref<3x64x192xbf16, #tpu.memory_space<vmem>>, vector<1x64x192xbf16>
    %44 = vector.shape_cast %43 : vector<1x64x192xbf16> to vector<64x192xbf16>
    %c0_20 = arith.constant 0 : index
    %c16 = arith.constant 16 : index
    %45 = vector.load %arg6[%c0_20, %c16] : memref<192x288xbf16, #tpu.memory_space<vmem>>, vector<192x256xbf16>
    %cst_21 = arith.constant dense<0.000000e+00> : vector<64x256xf32>
    %46 = tpu.matmul %44, %45, %cst_21 {dimension_numbers = #tpu.dot_dimension_numbers<[1], [0], [0], [1], [0, 0, 1, 1], [], []>} : vector<64x192xbf16>, vector<192x256xbf16>, vector<64x256xf32> -> vector<64x256xf32>
    %47 = arith.addf %42, %46 : vector<64x256xf32>
    %c2 = arith.constant 2 : index
    %c0_22 = arith.constant 0 : index
    %c0_23 = arith.constant 0 : index
    %48 = vector.load %arg3[%c2, %c0_22, %c0_23] : memref<3x64x192xbf16, #tpu.memory_space<vmem>>, vector<1x64x192xbf16>
    %49 = vector.shape_cast %48 : vector<1x64x192xbf16> to vector<64x192xbf16>
    %c0_24 = arith.constant 0 : index
    %c32 = arith.constant 32 : index
    %50 = vector.load %arg6[%c0_24, %c32] : memref<192x288xbf16, #tpu.memory_space<vmem>>, vector<192x256xbf16>
    %cst_25 = arith.constant dense<0.000000e+00> : vector<64x256xf32>
    %51 = tpu.matmul %49, %50, %cst_25 {dimension_numbers = #tpu.dot_dimension_numbers<[1], [0], [0], [1], [0, 0, 1, 1], [], []>} : vector<64x192xbf16>, vector<192x256xbf16>, vector<64x256xf32> -> vector<64x256xf32>
    %52 = arith.addf %47, %51 : vector<64x256xf32>
    %c0_26 = arith.constant 0 : index
    %c0_27 = arith.constant 0 : index
    %53 = vector.load %arg4[%c0_26, %c0_27] : memref<64x1xf32, #tpu.memory_space<vmem>>, vector<64x1xf32>
    %54 = vector.broadcast %53 : vector<64x1xf32> to vector<64x256xf32>
    %55 = arith.addf %52, %54 : vector<64x256xf32>
    %cst_28 = arith.constant 0.000000e+00 : f32
    %56 = vector.broadcast %cst_28 : f32 to vector<64x256xf32>
    %57 = arith.cmpf oge, %55, %56 : vector<64x256xf32>
    %cst_29 = arith.constant 2.000000e-01 : f32
    %58 = vector.broadcast %cst_29 : f32 to vector<64x256xf32>
    %59 = arith.mulf %58, %55 : vector<64x256xf32>
    %60 = arith.select %57, %55, %59 : vector<64x256xi1>, vector<64x256xf32>
    %61 = arith.truncf %60 : vector<64x256xf32> to vector<64x256xbf16>
    %c0_30 = arith.constant 0 : index
    %c0_31 = arith.constant 0 : index
    %c0_32 = arith.constant 0 : index
    %62 = vector.load %arg5[%c0_30, %c0_31, %c0_32] : memref<1x64x256xbf16, #tpu.memory_space<vmem>>, vector<1x64x256xbf16>
    %63 = vector.shape_cast %62 : vector<1x64x256xbf16> to vector<64x256xbf16>
    %64 = vector.shape_cast %61 : vector<64x256xbf16> to vector<1x64x256xbf16>
    tpu.vector_store %arg5[%c0_30, %c0_31, %c0_32], %64 {strides = array<i32>} : memref<1x64x256xbf16, #tpu.memory_space<vmem>>, vector<1x64x256xbf16>,
    return
  }
  func.func @transform_0(%arg0: i32, %arg1: i32) -> (i32, i32, i32) {
    %c0_i32 = arith.constant 0 : i32
    %c0_i32_0 = arith.constant 0 : i32
    %c0_i32_1 = arith.constant 0 : i32
    return %arg0, %c0_i32, %c0_i32_0 : i32, i32, i32
  }
  func.func @transform_1(%arg0: i32, %arg1: i32) -> (i32, i32, i32) {
    %c0_i32 = arith.constant 0 : i32
    %c0_i32_0 = arith.constant 0 : i32
    %c0_i32_1 = arith.constant 0 : i32
    return %c0_i32, %arg1, %c0_i32_0 : i32, i32, i32
  }
  func.func @transform_2(%arg0: i32, %arg1: i32) -> (i32, i32) {
    %c0_i32 = arith.constant 0 : i32
    %c0_i32_0 = arith.constant 0 : i32
    return %arg1, %c0_i32 : i32, i32
  }
  func.func @transform_3(%arg0: i32, %arg1: i32) -> (i32, i32, i32) {
    %c0_i32 = arith.constant 0 : i32
    %c0_i32_0 = arith.constant 0 : i32
    return %arg0, %arg1, %c0_i32 : i32, i32, i32
  }
}

module attributes {stable_mosaic.version = 11 : i64} {
  func.func @_down_fused_kernel(%arg0: i32, %arg1: i32, %arg2: memref<1x4x64x82xbf16, #tpu.memory_space<vmem>>, %arg3: memref<1x4x64x82xbf16, #tpu.memory_space<vmem>>, %arg4: memref<3x128x768xbf16, #tpu.memory_space<vmem>>, %arg5: memref<128x64xbf16, #tpu.memory_space<vmem>>, %arg6: memref<128x1xf32, #tpu.memory_space<vmem>>, %arg7: memref<1x128x64xf32, #tpu.memory_space<vmem>>, %arg8: memref<768x80xbf16, #tpu.memory_space<vmem>>) attributes {dimension_semantics = [#tpu.dimension_semantics<parallel>, #tpu.dimension_semantics<parallel>], iteration_bounds = array<i64: 2, 1>, scalar_prefetch = 0 : i64, scratch_operands = 1 : i64, tpu.core_type = #tpu.core_type<tc>, window_params = [{transform_indices = @transform_0, window_bounds = array<i64: 1, 4, 64, 82>}, {transform_indices = @transform_1, window_bounds = array<i64: 1, 4, 64, 82>}, {transform_indices = @transform_2, window_bounds = array<i64: 3, 128, 768>}, {transform_indices = @transform_3, window_bounds = array<i64: 128, 64>}, {transform_indices = @transform_4, window_bounds = array<i64: 128, 1>}, {transform_indices = @transform_5, window_bounds = array<i64: 1, 128, 64>}]} {
    %0 = tpu.iota {dimensions = array<i32: 1>} : vector<1x80xi32>
    %c8_i32 = arith.constant 8 : i32
    %c0_i32 = arith.constant 0 : i32
    %1 = arith.cmpi eq, %c8_i32, %c0_i32 : i32
    %c1_i32 = arith.constant 1 : i32
    %2 = arith.select %1, %c1_i32, %c8_i32 : i32
    %3 = vector.broadcast %2 : i32 to vector<1x80xi32>
    %4 = arith.remsi %0, %3 : vector<1x80xi32>
    %c0_i32_0 = arith.constant 0 : i32
    %5 = vector.broadcast %c0_i32_0 : i32 to vector<1x80xi32>
    %6 = arith.cmpi ne, %4, %5 : vector<1x80xi32>
    %c0_i32_1 = arith.constant 0 : i32
    %7 = vector.broadcast %c0_i32_1 : i32 to vector<1x80xi32>
    %8 = arith.cmpi slt, %4, %7 : vector<1x80xi32>
    %c0_i32_2 = arith.constant 0 : i32
    %9 = arith.cmpi slt, %2, %c0_i32_2 : i32
    %10 = vector.broadcast %9 : i1 to vector<1x80xi1>
    %11 = vector.broadcast %10 : vector<1x80xi1> to vector<1x80xi1>
    %12 = arith.xori %8, %11 : vector<1x80xi1>
    %13 = arith.andi %12, %6 : vector<1x80xi1>
    %14 = vector.broadcast %2 : i32 to vector<1x80xi32>
    %15 = arith.addi %4, %14 : vector<1x80xi32>
    %16 = arith.select %13, %15, %4 : vector<1x80xi1>, vector<1x80xi32>
    %17 = tpu.iota {dimensions = array<i32: 1>} : vector<1x64xi32>
    %c8_i32_3 = arith.constant 8 : i32
    %c0_i32_4 = arith.constant 0 : i32
    %18 = arith.cmpi eq, %c8_i32_3, %c0_i32_4 : i32
    %c1_i32_5 = arith.constant 1 : i32
    %19 = arith.select %18, %c1_i32_5, %c8_i32_3 : i32
    %20 = vector.broadcast %19 : i32 to vector<1x64xi32>
    %21 = arith.remsi %17, %20 : vector<1x64xi32>
    %c0_i32_6 = arith.constant 0 : i32
    %22 = vector.broadcast %c0_i32_6 : i32 to vector<1x64xi32>
    %23 = arith.cmpi ne, %21, %22 : vector<1x64xi32>
    %c0_i32_7 = arith.constant 0 : i32
    %24 = vector.broadcast %c0_i32_7 : i32 to vector<1x64xi32>
    %25 = arith.cmpi slt, %21, %24 : vector<1x64xi32>
    %c0_i32_8 = arith.constant 0 : i32
    %26 = arith.cmpi slt, %19, %c0_i32_8 : i32
    %27 = vector.broadcast %26 : i1 to vector<1x64xi1>
    %28 = vector.broadcast %27 : vector<1x64xi1> to vector<1x64xi1>
    %29 = arith.xori %25, %28 : vector<1x64xi1>
    %30 = arith.andi %29, %23 : vector<1x64xi1>
    %31 = vector.broadcast %19 : i32 to vector<1x64xi32>
    %32 = arith.addi %21, %31 : vector<1x64xi32>
    %33 = arith.select %30, %32, %21 : vector<1x64xi1>, vector<1x64xi32>
    %c0_i32_9 = arith.constant 0 : i32
    %34 = vector.broadcast %c0_i32_9 : i32 to vector<1x64xi32>
    %35 = arith.cmpi sgt, %33, %34 : vector<1x64xi32>
    %c7_i32 = arith.constant 7 : i32
    %36 = vector.broadcast %c7_i32 : i32 to vector<1x64xi32>
    %37 = arith.cmpi slt, %33, %36 : vector<1x64xi32>
    %c0 = arith.constant 0 : index
    %c0_10 = arith.constant 0 : index
    %c0_11 = arith.constant 0 : index
    %c0_12 = arith.constant 0 : index
    %38 = vector.load %arg3[%c0, %c0_10, %c0_11, %c0_12] : memref<1x4x64x82xbf16, #tpu.memory_space<vmem>>, vector<1x1x64x82xbf16>
    %39 = vector.shape_cast %38 : vector<1x1x64x82xbf16> to vector<64x82xbf16>
    %c0_i32_13 = arith.constant 0 : i32
    %40 = vector.broadcast %c0_i32_13 : i32 to vector<1x80xi32>
    %41 = arith.cmpi sgt, %16, %40 : vector<1x80xi32>
    %42 = vector.extract_strided_slice %39 {offsets = [0, 0], sizes = [64, 80], strides = [1, 1]} : vector<64x82xbf16> to vector<64x80xbf16>
    %cst = arith.constant 0.000000e+00 : bf16
    %43 = vector.shape_cast %41 : vector<1x80xi1> to vector<1x80xi1>
    %44 = vector.broadcast %43 : vector<1x80xi1> to vector<64x80xi1>
    %45 = vector.broadcast %cst : bf16 to vector<64x80xbf16>
    %46 = arith.select %44, %42, %45 : vector<64x80xi1>, vector<64x80xbf16>
    %c0_14 = arith.constant 0 : index
    %c0_15 = arith.constant 0 : index
    %47 = vector.load %arg8[%c0_14, %c0_15] : memref<768x80xbf16, #tpu.memory_space<vmem>>, vector<64x80xbf16>
    tpu.vector_store %arg8[%c0_14, %c0_15], %46 {strides = array<i32>} : memref<768x80xbf16, #tpu.memory_space<vmem>>, vector<64x80xbf16>,
    %48 = vector.extract_strided_slice %39 {offsets = [0, 1], sizes = [64, 80], strides = [1, 1]} : vector<64x82xbf16> to vector<64x80xbf16>
    %c64 = arith.constant 64 : index
    %c0_16 = arith.constant 0 : index
    %49 = vector.load %arg8[%c64, %c0_16] : memref<768x80xbf16, #tpu.memory_space<vmem>>, vector<64x80xbf16>
    tpu.vector_store %arg8[%c64, %c0_16], %48 {strides = array<i32>} : memref<768x80xbf16, #tpu.memory_space<vmem>>, vector<64x80xbf16>,
    %c7_i32_17 = arith.constant 7 : i32
    %50 = vector.broadcast %c7_i32_17 : i32 to vector<1x80xi32>
    %51 = arith.cmpi slt, %16, %50 : vector<1x80xi32>
    %52 = vector.extract_strided_slice %39 {offsets = [0, 2], sizes = [64, 80], strides = [1, 1]} : vector<64x82xbf16> to vector<64x80xbf16>
    %cst_18 = arith.constant 0.000000e+00 : bf16
    %53 = vector.shape_cast %51 : vector<1x80xi1> to vector<1x80xi1>
    %54 = vector.broadcast %53 : vector<1x80xi1> to vector<64x80xi1>
    %55 = vector.broadcast %cst_18 : bf16 to vector<64x80xbf16>
    %56 = arith.select %54, %52, %55 : vector<64x80xi1>, vector<64x80xbf16>
    %c128 = arith.constant 128 : index
    %c0_19 = arith.constant 0 : index
    %57 = vector.load %arg8[%c128, %c0_19] : memref<768x80xbf16, #tpu.memory_space<vmem>>, vector<64x80xbf16>
    tpu.vector_store %arg8[%c128, %c0_19], %56 {strides = array<i32>} : memref<768x80xbf16, #tpu.memory_space<vmem>>, vector<64x80xbf16>,
    %c0_20 = arith.constant 0 : index
    %c1 = arith.constant 1 : index
    %c0_21 = arith.constant 0 : index
    %c0_22 = arith.constant 0 : index
    %58 = vector.load %arg3[%c0_20, %c1, %c0_21, %c0_22] : memref<1x4x64x82xbf16, #tpu.memory_space<vmem>>, vector<1x1x64x82xbf16>
    %59 = vector.shape_cast %58 : vector<1x1x64x82xbf16> to vector<64x82xbf16>
    %c0_i32_23 = arith.constant 0 : i32
    %60 = vector.broadcast %c0_i32_23 : i32 to vector<1x80xi32>
    %61 = arith.cmpi sgt, %16, %60 : vector<1x80xi32>
    %62 = vector.extract_strided_slice %59 {offsets = [0, 0], sizes = [64, 80], strides = [1, 1]} : vector<64x82xbf16> to vector<64x80xbf16>
    %cst_24 = arith.constant 0.000000e+00 : bf16
    %63 = vector.shape_cast %61 : vector<1x80xi1> to vector<1x80xi1>
    %64 = vector.broadcast %63 : vector<1x80xi1> to vector<64x80xi1>
    %65 = vector.broadcast %cst_24 : bf16 to vector<64x80xbf16>
    %66 = arith.select %64, %62, %65 : vector<64x80xi1>, vector<64x80xbf16>
    %c192 = arith.constant 192 : index
    %c0_25 = arith.constant 0 : index
    %67 = vector.load %arg8[%c192, %c0_25] : memref<768x80xbf16, #tpu.memory_space<vmem>>, vector<64x80xbf16>
    tpu.vector_store %arg8[%c192, %c0_25], %66 {strides = array<i32>} : memref<768x80xbf16, #tpu.memory_space<vmem>>, vector<64x80xbf16>,
    %68 = vector.extract_strided_slice %59 {offsets = [0, 1], sizes = [64, 80], strides = [1, 1]} : vector<64x82xbf16> to vector<64x80xbf16>
    %c256 = arith.constant 256 : index
    %c0_26 = arith.constant 0 : index
    %69 = vector.load %arg8[%c256, %c0_26] : memref<768x80xbf16, #tpu.memory_space<vmem>>, vector<64x80xbf16>
    tpu.vector_store %arg8[%c256, %c0_26], %68 {strides = array<i32>} : memref<768x80xbf16, #tpu.memory_space<vmem>>, vector<64x80xbf16>,
    %c7_i32_27 = arith.constant 7 : i32
    %70 = vector.broadcast %c7_i32_27 : i32 to vector<1x80xi32>
    %71 = arith.cmpi slt, %16, %70 : vector<1x80xi32>
    %72 = vector.extract_strided_slice %59 {offsets = [0, 2], sizes = [64, 80], strides = [1, 1]} : vector<64x82xbf16> to vector<64x80xbf16>
    %cst_28 = arith.constant 0.000000e+00 : bf16
    %73 = vector.shape_cast %71 : vector<1x80xi1> to vector<1x80xi1>
    %74 = vector.broadcast %73 : vector<1x80xi1> to vector<64x80xi1>
    %75 = vector.broadcast %cst_28 : bf16 to vector<64x80xbf16>
    %76 = arith.select %74, %72, %75 : vector<64x80xi1>, vector<64x80xbf16>
    %c320 = arith.constant 320 : index
    %c0_29 = arith.constant 0 : index
    %77 = vector.load %arg8[%c320, %c0_29] : memref<768x80xbf16, #tpu.memory_space<vmem>>, vector<64x80xbf16>
    tpu.vector_store %arg8[%c320, %c0_29], %76 {strides = array<i32>} : memref<768x80xbf16, #tpu.memory_space<vmem>>, vector<64x80xbf16>,
    %c0_30 = arith.constant 0 : index
    %c2 = arith.constant 2 : index
    %c0_31 = arith.constant 0 : index
    %c0_32 = arith.constant 0 : index
    %78 = vector.load %arg3[%c0_30, %c2, %c0_31, %c0_32] : memref<1x4x64x82xbf16, #tpu.memory_space<vmem>>, vector<1x1x64x82xbf16>
    %79 = vector.shape_cast %78 : vector<1x1x64x82xbf16> to vector<64x82xbf16>
    %c0_i32_33 = arith.constant 0 : i32
    %80 = vector.broadcast %c0_i32_33 : i32 to vector<1x80xi32>
    %81 = arith.cmpi sgt, %16, %80 : vector<1x80xi32>
    %82 = vector.extract_strided_slice %79 {offsets = [0, 0], sizes = [64, 80], strides = [1, 1]} : vector<64x82xbf16> to vector<64x80xbf16>
    %cst_34 = arith.constant 0.000000e+00 : bf16
    %83 = vector.shape_cast %81 : vector<1x80xi1> to vector<1x80xi1>
    %84 = vector.broadcast %83 : vector<1x80xi1> to vector<64x80xi1>
    %85 = vector.broadcast %cst_34 : bf16 to vector<64x80xbf16>
    %86 = arith.select %84, %82, %85 : vector<64x80xi1>, vector<64x80xbf16>
    %c384 = arith.constant 384 : index
    %c0_35 = arith.constant 0 : index
    %87 = vector.load %arg8[%c384, %c0_35] : memref<768x80xbf16, #tpu.memory_space<vmem>>, vector<64x80xbf16>
    tpu.vector_store %arg8[%c384, %c0_35], %86 {strides = array<i32>} : memref<768x80xbf16, #tpu.memory_space<vmem>>, vector<64x80xbf16>,
    %88 = vector.extract_strided_slice %79 {offsets = [0, 1], sizes = [64, 80], strides = [1, 1]} : vector<64x82xbf16> to vector<64x80xbf16>
    %c448 = arith.constant 448 : index
    %c0_36 = arith.constant 0 : index
    %89 = vector.load %arg8[%c448, %c0_36] : memref<768x80xbf16, #tpu.memory_space<vmem>>, vector<64x80xbf16>
    tpu.vector_store %arg8[%c448, %c0_36], %88 {strides = array<i32>} : memref<768x80xbf16, #tpu.memory_space<vmem>>, vector<64x80xbf16>,
    %c7_i32_37 = arith.constant 7 : i32
    %90 = vector.broadcast %c7_i32_37 : i32 to vector<1x80xi32>
    %91 = arith.cmpi slt, %16, %90 : vector<1x80xi32>
    %92 = vector.extract_strided_slice %79 {offsets = [0, 2], sizes = [64, 80], strides = [1, 1]} : vector<64x82xbf16> to vector<64x80xbf16>
    %cst_38 = arith.constant 0.000000e+00 : bf16
    %93 = vector.shape_cast %91 : vector<1x80xi1> to vector<1x80xi1>
    %94 = vector.broadcast %93 : vector<1x80xi1> to vector<64x80xi1>
    %95 = vector.broadcast %cst_38 : bf16 to vector<64x80xbf16>
    %96 = arith.select %94, %92, %95 : vector<64x80xi1>, vector<64x80xbf16>
    %c512 = arith.constant 512 : index
    %c0_39 = arith.constant 0 : index
    %97 = vector.load %arg8[%c512, %c0_39] : memref<768x80xbf16, #tpu.memory_space<vmem>>, vector<64x80xbf16>
    tpu.vector_store %arg8[%c512, %c0_39], %96 {strides = array<i32>} : memref<768x80xbf16, #tpu.memory_space<vmem>>, vector<64x80xbf16>,
    %c0_40 = arith.constant 0 : index
    %c3 = arith.constant 3 : index
    %c0_41 = arith.constant 0 : index
    %c0_42 = arith.constant 0 : index
    %98 = vector.load %arg3[%c0_40, %c3, %c0_41, %c0_42] : memref<1x4x64x82xbf16, #tpu.memory_space<vmem>>, vector<1x1x64x82xbf16>
    %99 = vector.shape_cast %98 : vector<1x1x64x82xbf16> to vector<64x82xbf16>
    %c0_i32_43 = arith.constant 0 : i32
    %100 = vector.broadcast %c0_i32_43 : i32 to vector<1x80xi32>
    %101 = arith.cmpi sgt, %16, %100 : vector<1x80xi32>
    %102 = vector.extract_strided_slice %99 {offsets = [0, 0], sizes = [64, 80], strides = [1, 1]} : vector<64x82xbf16> to vector<64x80xbf16>
    %cst_44 = arith.constant 0.000000e+00 : bf16
    %103 = vector.shape_cast %101 : vector<1x80xi1> to vector<1x80xi1>
    %104 = vector.broadcast %103 : vector<1x80xi1> to vector<64x80xi1>
    %105 = vector.broadcast %cst_44 : bf16 to vector<64x80xbf16>
    %106 = arith.select %104, %102, %105 : vector<64x80xi1>, vector<64x80xbf16>
    %c576 = arith.constant 576 : index
    %c0_45 = arith.constant 0 : index
    %107 = vector.load %arg8[%c576, %c0_45] : memref<768x80xbf16, #tpu.memory_space<vmem>>, vector<64x80xbf16>
    tpu.vector_store %arg8[%c576, %c0_45], %106 {strides = array<i32>} : memref<768x80xbf16, #tpu.memory_space<vmem>>, vector<64x80xbf16>,
    %108 = vector.extract_strided_slice %99 {offsets = [0, 1], sizes = [64, 80], strides = [1, 1]} : vector<64x82xbf16> to vector<64x80xbf16>
    %c640 = arith.constant 640 : index
    %c0_46 = arith.constant 0 : index
    %109 = vector.load %arg8[%c640, %c0_46] : memref<768x80xbf16, #tpu.memory_space<vmem>>, vector<64x80xbf16>
    tpu.vector_store %arg8[%c640, %c0_46], %108 {strides = array<i32>} : memref<768x80xbf16, #tpu.memory_space<vmem>>, vector<64x80xbf16>,
    %c7_i32_47 = arith.constant 7 : i32
    %110 = vector.broadcast %c7_i32_47 : i32 to vector<1x80xi32>
    %111 = arith.cmpi slt, %16, %110 : vector<1x80xi32>
    %112 = vector.extract_strided_slice %99 {offsets = [0, 2], sizes = [64, 80], strides = [1, 1]} : vector<64x82xbf16> to vector<64x80xbf16>
    %cst_48 = arith.constant 0.000000e+00 : bf16
    %113 = vector.shape_cast %111 : vector<1x80xi1> to vector<1x80xi1>
    %114 = vector.broadcast %113 : vector<1x80xi1> to vector<64x80xi1>
    %115 = vector.broadcast %cst_48 : bf16 to vector<64x80xbf16>
    %116 = arith.select %114, %112, %115 : vector<64x80xi1>, vector<64x80xbf16>
    %c704 = arith.constant 704 : index
    %c0_49 = arith.constant 0 : index
    %117 = vector.load %arg8[%c704, %c0_49] : memref<768x80xbf16, #tpu.memory_space<vmem>>, vector<64x80xbf16>
    tpu.vector_store %arg8[%c704, %c0_49], %116 {strides = array<i32>} : memref<768x80xbf16, #tpu.memory_space<vmem>>, vector<64x80xbf16>,
    %cst_50 = arith.constant 0.000000e+00 : f32
    %118 = vector.broadcast %cst_50 : f32 to vector<128x64xf32>
    %c0_51 = arith.constant 0 : index
    %c0_52 = arith.constant 0 : index
    %c0_53 = arith.constant 0 : index
    %119 = vector.load %arg4[%c0_51, %c0_52, %c0_53] : memref<3x128x768xbf16, #tpu.memory_space<vmem>>, vector<1x128x768xbf16>
    %120 = vector.shape_cast %119 : vector<1x128x768xbf16> to vector<128x768xbf16>
    %c0_54 = arith.constant 0 : index
    %c0_55 = arith.constant 0 : index
    %121 = vector.load %arg8[%c0_54, %c0_55] : memref<768x80xbf16, #tpu.memory_space<vmem>>, vector<768x64xbf16>
    %cst_56 = arith.constant dense<0.000000e+00> : vector<128x64xf32>
    %122 = tpu.matmul %120, %121, %cst_56 {dimension_numbers = #tpu.dot_dimension_numbers<[1], [0], [0], [1], [0, 0, 1, 1], [], []>} : vector<128x768xbf16>, vector<768x64xbf16>, vector<128x64xf32> -> vector<128x64xf32>
    %123 = arith.addf %118, %122 : vector<128x64xf32>
    %c1_57 = arith.constant 1 : index
    %c0_58 = arith.constant 0 : index
    %c0_59 = arith.constant 0 : index
    %124 = vector.load %arg4[%c1_57, %c0_58, %c0_59] : memref<3x128x768xbf16, #tpu.memory_space<vmem>>, vector<1x128x768xbf16>
    %125 = vector.shape_cast %124 : vector<1x128x768xbf16> to vector<128x768xbf16>
    %c0_60 = arith.constant 0 : index
    %c8 = arith.constant 8 : index
    %126 = vector.load %arg8[%c0_60, %c8] : memref<768x80xbf16, #tpu.memory_space<vmem>>, vector<768x64xbf16>
    %cst_61 = arith.constant dense<0.000000e+00> : vector<128x64xf32>
    %127 = tpu.matmul %125, %126, %cst_61 {dimension_numbers = #tpu.dot_dimension_numbers<[1], [0], [0], [1], [0, 0, 1, 1], [], []>} : vector<128x768xbf16>, vector<768x64xbf16>, vector<128x64xf32> -> vector<128x64xf32>
    %128 = arith.addf %123, %127 : vector<128x64xf32>
    %c2_62 = arith.constant 2 : index
    %c0_63 = arith.constant 0 : index
    %c0_64 = arith.constant 0 : index
    %129 = vector.load %arg4[%c2_62, %c0_63, %c0_64] : memref<3x128x768xbf16, #tpu.memory_space<vmem>>, vector<1x128x768xbf16>
    %130 = vector.shape_cast %129 : vector<1x128x768xbf16> to vector<128x768xbf16>
    %c0_65 = arith.constant 0 : index
    %c16 = arith.constant 16 : index
    %131 = vector.load %arg8[%c0_65, %c16] : memref<768x80xbf16, #tpu.memory_space<vmem>>, vector<768x64xbf16>
    %cst_66 = arith.constant dense<0.000000e+00> : vector<128x64xf32>
    %132 = tpu.matmul %130, %131, %cst_66 {dimension_numbers = #tpu.dot_dimension_numbers<[1], [0], [0], [1], [0, 0, 1, 1], [], []>} : vector<128x768xbf16>, vector<768x64xbf16>, vector<128x64xf32> -> vector<128x64xf32>
    %133 = arith.addf %128, %132 : vector<128x64xf32>
    %cst_67 = arith.constant 0.000000e+00 : f32
    %134 = vector.broadcast %cst_67 : f32 to vector<64x64xf32>
    %c0_68 = arith.constant 0 : index
    %c0_69 = arith.constant 0 : index
    %c0_70 = arith.constant 0 : index
    %c0_71 = arith.constant 0 : index
    %135 = vector.load %arg2[%c0_68, %c0_69, %c0_70, %c0_71] : memref<1x4x64x82xbf16, #tpu.memory_space<vmem>>, vector<1x1x64x82xbf16>
    %136 = vector.shape_cast %135 : vector<1x1x64x82xbf16> to vector<64x82xbf16>
    %137 = vector.extract_strided_slice %136 {offsets = [0, 9], sizes = [64, 64], strides = [1, 1]} : vector<64x82xbf16> to vector<64x64xbf16>
    %138 = arith.extf %137 : vector<64x64xbf16> to vector<64x64xf32>
    %cst_72 = arith.constant 1.406250e-01 : f32
    %139 = vector.broadcast %cst_72 : f32 to vector<64x64xf32>
    %140 = arith.mulf %139, %138 : vector<64x64xf32>
    %141 = arith.addf %134, %140 : vector<64x64xf32>
    %142 = vector.extract_strided_slice %136 {offsets = [0, 10], sizes = [64, 64], strides = [1, 1]} : vector<64x82xbf16> to vector<64x64xbf16>
    %143 = arith.extf %142 : vector<64x64xbf16> to vector<64x64xf32>
    %cst_73 = arith.constant 0.000000e+00 : f32
    %144 = vector.shape_cast %37 : vector<1x64xi1> to vector<1x64xi1>
    %145 = vector.broadcast %144 : vector<1x64xi1> to vector<64x64xi1>
    %146 = vector.broadcast %cst_73 : f32 to vector<64x64xf32>
    %147 = arith.select %145, %143, %146 : vector<64x64xi1>, vector<64x64xf32>
    %cst_74 = arith.constant 4.687500e-02 : f32
    %148 = vector.broadcast %cst_74 : f32 to vector<64x64xf32>
    %149 = arith.mulf %148, %147 : vector<64x64xf32>
    %150 = arith.addf %141, %149 : vector<64x64xf32>
    %151 = vector.extract_strided_slice %136 {offsets = [0, 17], sizes = [64, 64], strides = [1, 1]} : vector<64x82xbf16> to vector<64x64xbf16>
    %152 = arith.extf %151 : vector<64x64xbf16> to vector<64x64xf32>
    %cst_75 = arith.constant 4.687500e-02 : f32
    %153 = vector.broadcast %cst_75 : f32 to vector<64x64xf32>
    %154 = arith.mulf %153, %152 : vector<64x64xf32>
    %155 = arith.addf %150, %154 : vector<64x64xf32>
    %156 = vector.extract_strided_slice %136 {offsets = [0, 18], sizes = [64, 64], strides = [1, 1]} : vector<64x82xbf16> to vector<64x64xbf16>
    %157 = arith.extf %156 : vector<64x64xbf16> to vector<64x64xf32>
    %cst_76 = arith.constant 0.000000e+00 : f32
    %158 = vector.shape_cast %37 : vector<1x64xi1> to vector<1x64xi1>
    %159 = vector.broadcast %158 : vector<1x64xi1> to vector<64x64xi1>
    %160 = vector.broadcast %cst_76 : f32 to vector<64x64xf32>
    %161 = arith.select %159, %157, %160 : vector<64x64xi1>, vector<64x64xf32>
    %cst_77 = arith.constant 1.562500e-02 : f32
    %162 = vector.broadcast %cst_77 : f32 to vector<64x64xf32>
    %163 = arith.mulf %162, %161 : vector<64x64xf32>
    %164 = arith.addf %155, %163 : vector<64x64xf32>
    %c0_78 = arith.constant 0 : index
    %c1_79 = arith.constant 1 : index
    %c0_80 = arith.constant 0 : index
    %c0_81 = arith.constant 0 : index
    %165 = vector.load %arg2[%c0_78, %c1_79, %c0_80, %c0_81] : memref<1x4x64x82xbf16, #tpu.memory_space<vmem>>, vector<1x1x64x82xbf16>
    %166 = vector.shape_cast %165 : vector<1x1x64x82xbf16> to vector<64x82xbf16>
    %167 = vector.extract_strided_slice %166 {offsets = [0, 8], sizes = [64, 64], strides = [1, 1]} : vector<64x82xbf16> to vector<64x64xbf16>
    %168 = arith.extf %167 : vector<64x64xbf16> to vector<64x64xf32>
    %cst_82 = arith.constant 0.000000e+00 : f32
    %169 = vector.shape_cast %35 : vector<1x64xi1> to vector<1x64xi1>
    %170 = vector.broadcast %169 : vector<1x64xi1> to vector<64x64xi1>
    %171 = vector.broadcast %cst_82 : f32 to vector<64x64xf32>
    %172 = arith.select %170, %168, %171 : vector<64x64xi1>, vector<64x64xf32>
    %cst_83 = arith.constant 4.687500e-02 : f32
    %173 = vector.broadcast %cst_83 : f32 to vector<64x64xf32>
    %174 = arith.mulf %173, %172 : vector<64x64xf32>
    %175 = arith.addf %164, %174 : vector<64x64xf32>
    %176 = vector.extract_strided_slice %166 {offsets = [0, 9], sizes = [64, 64], strides = [1, 1]} : vector<64x82xbf16> to vector<64x64xbf16>
    %177 = arith.extf %176 : vector<64x64xbf16> to vector<64x64xf32>
    %cst_84 = arith.constant 1.406250e-01 : f32
    %178 = vector.broadcast %cst_84 : f32 to vector<64x64xf32>
    %179 = arith.mulf %178, %177 : vector<64x64xf32>
    %180 = arith.addf %175, %179 : vector<64x64xf32>
    %181 = vector.extract_strided_slice %166 {offsets = [0, 16], sizes = [64, 64], strides = [1, 1]} : vector<64x82xbf16> to vector<64x64xbf16>
    %182 = arith.extf %181 : vector<64x64xbf16> to vector<64x64xf32>
    %cst_85 = arith.constant 0.000000e+00 : f32
    %183 = vector.shape_cast %35 : vector<1x64xi1> to vector<1x64xi1>
    %184 = vector.broadcast %183 : vector<1x64xi1> to vector<64x64xi1>
    %185 = vector.broadcast %cst_85 : f32 to vector<64x64xf32>
    %186 = arith.select %184, %182, %185 : vector<64x64xi1>, vector<64x64xf32>
    %cst_86 = arith.constant 1.562500e-02 : f32
    %187 = vector.broadcast %cst_86 : f32 to vector<64x64xf32>
    %188 = arith.mulf %187, %186 : vector<64x64xf32>
    %189 = arith.addf %180, %188 : vector<64x64xf32>
    %190 = vector.extract_strided_slice %166 {offsets = [0, 17], sizes = [64, 64], strides = [1, 1]} : vector<64x82xbf16> to vector<64x64xbf16>
    %191 = arith.extf %190 : vector<64x64xbf16> to vector<64x64xf32>
    %cst_87 = arith.constant 4.687500e-02 : f32
    %192 = vector.broadcast %cst_87 : f32 to vector<64x64xf32>
    %193 = arith.mulf %192, %191 : vector<64x64xf32>
    %194 = arith.addf %189, %193 : vector<64x64xf32>
    %c0_88 = arith.constant 0 : index
    %c2_89 = arith.constant 2 : index
    %c0_90 = arith.constant 0 : index
    %c0_91 = arith.constant 0 : index
    %195 = vector.load %arg2[%c0_88, %c2_89, %c0_90, %c0_91] : memref<1x4x64x82xbf16, #tpu.memory_space<vmem>>, vector<1x1x64x82xbf16>
    %196 = vector.shape_cast %195 : vector<1x1x64x82xbf16> to vector<64x82xbf16>
    %197 = vector.extract_strided_slice %196 {offsets = [0, 1], sizes = [64, 64], strides = [1, 1]} : vector<64x82xbf16> to vector<64x64xbf16>
    %198 = arith.extf %197 : vector<64x64xbf16> to vector<64x64xf32>
    %cst_92 = arith.constant 4.687500e-02 : f32
    %199 = vector.broadcast %cst_92 : f32 to vector<64x64xf32>
    %200 = arith.mulf %199, %198 : vector<64x64xf32>
    %201 = arith.addf %194, %200 : vector<64x64xf32>
    %202 = vector.extract_strided_slice %196 {offsets = [0, 2], sizes = [64, 64], strides = [1, 1]} : vector<64x82xbf16> to vector<64x64xbf16>
    %203 = arith.extf %202 : vector<64x64xbf16> to vector<64x64xf32>
    %cst_93 = arith.constant 0.000000e+00 : f32
    %204 = vector.shape_cast %37 : vector<1x64xi1> to vector<1x64xi1>
    %205 = vector.broadcast %204 : vector<1x64xi1> to vector<64x64xi1>
    %206 = vector.broadcast %cst_93 : f32 to vector<64x64xf32>
    %207 = arith.select %205, %203, %206 : vector<64x64xi1>, vector<64x64xf32>
    %cst_94 = arith.constant 1.562500e-02 : f32
    %208 = vector.broadcast %cst_94 : f32 to vector<64x64xf32>
    %209 = arith.mulf %208, %207 : vector<64x64xf32>
    %210 = arith.addf %201, %209 : vector<64x64xf32>
    %211 = vector.extract_strided_slice %196 {offsets = [0, 9], sizes = [64, 64], strides = [1, 1]} : vector<64x82xbf16> to vector<64x64xbf16>
    %212 = arith.extf %211 : vector<64x64xbf16> to vector<64x64xf32>
    %cst_95 = arith.constant 1.406250e-01 : f32
    %213 = vector.broadcast %cst_95 : f32 to vector<64x64xf32>
    %214 = arith.mulf %213, %212 : vector<64x64xf32>
    %215 = arith.addf %210, %214 : vector<64x64xf32>
    %216 = vector.extract_strided_slice %196 {offsets = [0, 10], sizes = [64, 64], strides = [1, 1]} : vector<64x82xbf16> to vector<64x64xbf16>
    %217 = arith.extf %216 : vector<64x64xbf16> to vector<64x64xf32>
    %cst_96 = arith.constant 0.000000e+00 : f32
    %218 = vector.shape_cast %37 : vector<1x64xi1> to vector<1x64xi1>
    %219 = vector.broadcast %218 : vector<1x64xi1> to vector<64x64xi1>
    %220 = vector.broadcast %cst_96 : f32 to vector<64x64xf32>
    %221 = arith.select %219, %217, %220 : vector<64x64xi1>, vector<64x64xf32>
    %cst_97 = arith.constant 4.687500e-02 : f32
    %222 = vector.broadcast %cst_97 : f32 to vector<64x64xf32>
    %223 = arith.mulf %222, %221 : vector<64x64xf32>
    %224 = arith.addf %215, %223 : vector<64x64xf32>
    %c0_98 = arith.constant 0 : index
    %c3_99 = arith.constant 3 : index
    %c0_100 = arith.constant 0 : index
    %c0_101 = arith.constant 0 : index
    %225 = vector.load %arg2[%c0_98, %c3_99, %c0_100, %c0_101] : memref<1x4x64x82xbf16, #tpu.memory_space<vmem>>, vector<1x1x64x82xbf16>
    %226 = vector.shape_cast %225 : vector<1x1x64x82xbf16> to vector<64x82xbf16>
    %227 = vector.extract_strided_slice %226 {offsets = [0, 0], sizes = [64, 64], strides = [1, 1]} : vector<64x82xbf16> to vector<64x64xbf16>
    %228 = arith.extf %227 : vector<64x64xbf16> to vector<64x64xf32>
    %cst_102 = arith.constant 0.000000e+00 : f32
    %229 = vector.shape_cast %35 : vector<1x64xi1> to vector<1x64xi1>
    %230 = vector.broadcast %229 : vector<1x64xi1> to vector<64x64xi1>
    %231 = vector.broadcast %cst_102 : f32 to vector<64x64xf32>
    %232 = arith.select %230, %228, %231 : vector<64x64xi1>, vector<64x64xf32>
    %cst_103 = arith.constant 1.562500e-02 : f32
    %233 = vector.broadcast %cst_103 : f32 to vector<64x64xf32>
    %234 = arith.mulf %233, %232 : vector<64x64xf32>
    %235 = arith.addf %224, %234 : vector<64x64xf32>
    %236 = vector.extract_strided_slice %226 {offsets = [0, 1], sizes = [64, 64], strides = [1, 1]} : vector<64x82xbf16> to vector<64x64xbf16>
    %237 = arith.extf %236 : vector<64x64xbf16> to vector<64x64xf32>
    %cst_104 = arith.constant 4.687500e-02 : f32
    %238 = vector.broadcast %cst_104 : f32 to vector<64x64xf32>
    %239 = arith.mulf %238, %237 : vector<64x64xf32>
    %240 = arith.addf %235, %239 : vector<64x64xf32>
    %241 = vector.extract_strided_slice %226 {offsets = [0, 8], sizes = [64, 64], strides = [1, 1]} : vector<64x82xbf16> to vector<64x64xbf16>
    %242 = arith.extf %241 : vector<64x64xbf16> to vector<64x64xf32>
    %cst_105 = arith.constant 0.000000e+00 : f32
    %243 = vector.shape_cast %35 : vector<1x64xi1> to vector<1x64xi1>
    %244 = vector.broadcast %243 : vector<1x64xi1> to vector<64x64xi1>
    %245 = vector.broadcast %cst_105 : f32 to vector<64x64xf32>
    %246 = arith.select %244, %242, %245 : vector<64x64xi1>, vector<64x64xf32>
    %cst_106 = arith.constant 4.687500e-02 : f32
    %247 = vector.broadcast %cst_106 : f32 to vector<64x64xf32>
    %248 = arith.mulf %247, %246 : vector<64x64xf32>
    %249 = arith.addf %240, %248 : vector<64x64xf32>
    %250 = vector.extract_strided_slice %226 {offsets = [0, 9], sizes = [64, 64], strides = [1, 1]} : vector<64x82xbf16> to vector<64x64xbf16>
    %251 = arith.extf %250 : vector<64x64xbf16> to vector<64x64xf32>
    %cst_107 = arith.constant 1.406250e-01 : f32
    %252 = vector.broadcast %cst_107 : f32 to vector<64x64xf32>
    %253 = arith.mulf %252, %251 : vector<64x64xf32>
    %254 = arith.addf %249, %253 : vector<64x64xf32>
    %c0_108 = arith.constant 0 : index
    %c0_109 = arith.constant 0 : index
    %255 = vector.load %arg5[%c0_108, %c0_109] : memref<128x64xbf16, #tpu.memory_space<vmem>>, vector<128x64xbf16>
    %256 = arith.truncf %254 : vector<64x64xf32> to vector<64x64xbf16>
    %cst_110 = arith.constant dense<0.000000e+00> : vector<128x64xf32>
    %257 = tpu.matmul %255, %256, %cst_110 {dimension_numbers = #tpu.dot_dimension_numbers<[1], [0], [0], [1], [0, 0, 1, 1], [], []>} : vector<128x64xbf16>, vector<64x64xbf16>, vector<128x64xf32> -> vector<128x64xf32>
    %c0_111 = arith.constant 0 : index
    %c0_112 = arith.constant 0 : index
    %258 = vector.load %arg6[%c0_111, %c0_112] : memref<128x1xf32, #tpu.memory_space<vmem>>, vector<128x1xf32>
    %259 = vector.broadcast %258 : vector<128x1xf32> to vector<128x64xf32>
    %260 = arith.addf %133, %259 : vector<128x64xf32>
    %cst_113 = arith.constant 0.000000e+00 : f32
    %261 = vector.broadcast %cst_113 : f32 to vector<128x64xf32>
    %262 = arith.cmpf oge, %260, %261 : vector<128x64xf32>
    %cst_114 = arith.constant 2.000000e-01 : f32
    %263 = vector.broadcast %cst_114 : f32 to vector<128x64xf32>
    %264 = arith.mulf %263, %260 : vector<128x64xf32>
    %265 = arith.select %262, %260, %264 : vector<128x64xi1>, vector<128x64xf32>
    %266 = arith.addf %265, %257 : vector<128x64xf32>
    %c0_115 = arith.constant 0 : index
    %c0_116 = arith.constant 0 : index
    %c0_117 = arith.constant 0 : index
    %267 = vector.load %arg7[%c0_115, %c0_116, %c0_117] : memref<1x128x64xf32, #tpu.memory_space<vmem>>, vector<1x128x64xf32>
    %268 = vector.shape_cast %267 : vector<1x128x64xf32> to vector<128x64xf32>
    %269 = vector.shape_cast %266 : vector<128x64xf32> to vector<1x128x64xf32>
    tpu.vector_store %arg7[%c0_115, %c0_116, %c0_117], %269 {strides = array<i32>} : memref<1x128x64xf32, #tpu.memory_space<vmem>>, vector<1x128x64xf32>,
    return
  }
  func.func @transform_0(%arg0: i32, %arg1: i32) -> (i32, i32, i32, i32) {
    %c0_i32 = arith.constant 0 : i32
    %c0_i32_0 = arith.constant 0 : i32
    %c0_i32_1 = arith.constant 0 : i32
    %c0_i32_2 = arith.constant 0 : i32
    return %arg0, %c0_i32, %c0_i32_0, %c0_i32_1 : i32, i32, i32, i32
  }
  func.func @transform_1(%arg0: i32, %arg1: i32) -> (i32, i32, i32, i32) {
    %c0_i32 = arith.constant 0 : i32
    %c0_i32_0 = arith.constant 0 : i32
    %c0_i32_1 = arith.constant 0 : i32
    %c0_i32_2 = arith.constant 0 : i32
    return %arg0, %c0_i32, %c0_i32_0, %c0_i32_1 : i32, i32, i32, i32
  }
  func.func @transform_2(%arg0: i32, %arg1: i32) -> (i32, i32, i32) {
    %c0_i32 = arith.constant 0 : i32
    %c0_i32_0 = arith.constant 0 : i32
    %c0_i32_1 = arith.constant 0 : i32
    return %c0_i32, %arg1, %c0_i32_0 : i32, i32, i32
  }
  func.func @transform_3(%arg0: i32, %arg1: i32) -> (i32, i32) {
    %c0_i32 = arith.constant 0 : i32
    %c0_i32_0 = arith.constant 0 : i32
    return %arg1, %c0_i32 : i32, i32
  }
  func.func @transform_4(%arg0: i32, %arg1: i32) -> (i32, i32) {
    %c0_i32 = arith.constant 0 : i32
    %c0_i32_0 = arith.constant 0 : i32
    return %arg1, %c0_i32 : i32, i32
  }
  func.func @transform_5(%arg0: i32, %arg1: i32) -> (i32, i32, i32) {
    %c0_i32 = arith.constant 0 : i32
    %c0_i32_0 = arith.constant 0 : i32
    return %arg0, %arg1, %c0_i32 : i32, i32, i32
  }
}

</mosaic_0001>

<llo_original>
// kernel: resblock_forward.2
$region0: #{resblock_forward.2}
  #allocation0 [shape = 'u32[]', space=smem, size = 0x4, offset = 0x4, fixed_abs, tag = 'smem constant byte address 0x4 - core index']
  #allocation1 [shape = 'u32[144,128]{1,0:T(1,128)}', space=vmem, size = 0x12000, scoped, tag = 'internal scratch']
  #allocation2 [shape = 'bf16[192,288]{1,0:T(16,128)(2,1)}', space=vmem, size = 0x24000, scoped, tag = 'scratch operand']
  %s0 = inlined_call_operand.vmem [shape: bf16[2,64,290], index: 0, kind: input, shape index: {}]
  %s1 = inlined_call_operand.vmem [shape: bf16[3,64,192], index: 1, kind: input, shape index: {}]
  %s2 = inlined_call_operand.vmem [shape: f32[64,1], index: 2, kind: input, shape index: {}]
  %s3 = inlined_call_operand.vmem [shape: bf16[2,64,256], index: 3, kind: output, shape index: {}]
  %s4 = sld [smem:[#allocation0]]
  $region45: #{resblock_forward.2} parent=0
    _
  %s6 = ssub.s32 1, %s4
  %s7 = scalar_select 0, %s6, %s4
  loop: start=0, step=1, limit=4
  $region2: #{resblock_forward.2} parent=0 // loop_pre_header
    _
  $region3: #{resblock_forward.2} parent=0 // loop_header
    %s9 = sphi 0, %s13
    %p10 = scmp.ge.s32.totalorder %s9, 4
    %s16 = sphi 0, %s28
    %s17 = sphi 0, %s24
    %s18 = sphi 0, %s16
    %s19 = sphi 0, %s17
    %s20 = sphi 0, %s18
    %s21 = sphi 0, %s19
    %s31 = sphi 0, %s33
    %s34 = sphi 0, %s31
    %s35 = sphi 0, %s34
    %s51 = sphi 0, %s35
    %s57 = sphi 0, %s59
    %s60 = sphi 0, %s57
    %s61 = sphi 0, %s60
    %s77 = sphi 0, %s61
    %s83 = sphi 0, %s85
    %s86 = sphi 0, %s83
    %s87 = sphi 0, %s86
    %s103 = sphi 0, %s87
    %s111 = sphi 0, %s113
    %s114 = sphi 0, %s111
    %s115 = sphi 0, %s114
    %s131 = sphi 0, %s115
  $region4: #{resblock_forward.2} parent=0 // loop_header_branch
    %12 = sbr.rel (%p10) target = $region8
  $region5: #{resblock_forward.2} parent=0 // loop_body
    %s14 = ssub.s32 %s9, 1
    %s15 = ssub.s32 %s9, 2
    %s22 = sadd.s32 1, %s17
    %p23 = scmp.ge.s32.totalorder %s22, 1
    %s24 = scalar_select %p23, 0, %s22
    %s25 = sadd.s32 1, %s16
    %s26 = scalar_select %p23, %s25, %s16
    %p27 = scmp.ge.s32.totalorder %s26, 2
    %s28 = scalar_select %p27, 0, %s26
    %s29 = ssub.s32 %s16, %s28
    %p30 = scmp.eq.s32.totalorder %s29, 0
    %s32 = sadd.s32 %s31, 1
    %s33 = scalar_select %p30, %s31, %s32
    %p36 = pneg %p30
    %p37 = scmp.eq.s32.totalorder %s9, 1
    %p38 = por %p36, %p37
    %p39 = scmp.ne.s32.totalorder %s31, %s34
    %p40 = scmp.eq.s32.totalorder %s9, 0
    %p41 = por %p39, %p40
    %p42 = scmp.ne.s32.totalorder %s31, %s34
    %p43 = scmp.eq.s32.totalorder %s14, 1
    %p44 = por %p42, %p43
    %p45 = scmp.ne.s32.totalorder %s34, %s35
    %p46 = scmp.eq.s32.totalorder %s14, 0
    %p47 = por %p45, %p46
    %p48 = scmp.ne.s32.totalorder %s34, %s35
    %p49 = scmp.eq.s32.totalorder %s15, 1
    %p50 = por %p48, %p49
    %p52 = scmp.ne.s32.totalorder %s35, %s51
    %p53 = scmp.eq.s32.totalorder %s15, 0
    %p54 = por %p52, %p53
    %s55 = ssub.s32 %s17, %s24
    %p56 = scmp.eq.s32.totalorder %s55, 0
    %s58 = sadd.s32 %s57, 1
    %s59 = scalar_select %p56, %s57, %s58
    %p62 = pneg %p56
    %p63 = scmp.eq.s32.totalorder %s9, 1
    %p64 = por %p62, %p63
    %p65 = scmp.ne.s32.totalorder %s57, %s60
    %p66 = scmp.eq.s32.totalorder %s9, 0
    %p67 = por %p65, %p66
    %p68 = scmp.ne.s32.totalorder %s57, %s60
    %p69 = scmp.eq.s32.totalorder %s14, 1
    %p70 = por %p68, %p69
    %p71 = scmp.ne.s32.totalorder %s60, %s61
    %p72 = scmp.eq.s32.totalorder %s14, 0
    %p73 = por %p71, %p72
    %p74 = scmp.ne.s32.totalorder %s60, %s61
    %p75 = scmp.eq.s32.totalorder %s15, 1
    %p76 = por %p74, %p75
    %p78 = scmp.ne.s32.totalorder %s61, %s77
    %p79 = scmp.eq.s32.totalorder %s15, 0
    %p80 = por %p78, %p79
    %s81 = ssub.s32 %s17, %s24
    %p82 = scmp.eq.s32.totalorder %s81, 0
    %s84 = sadd.s32 %s83, 1
    %s85 = scalar_select %p82, %s83, %s84
    %p88 = pneg %p82
    %p89 = scmp.eq.s32.totalorder %s9, 1
    %p90 = por %p88, %p89
    %p91 = scmp.ne.s32.totalorder %s83, %s86
    %p92 = scmp.eq.s32.totalorder %s9, 0
    %p93 = por %p91, %p92
    %p94 = scmp.ne.s32.totalorder %s83, %s86
    %p95 = scmp.eq.s32.totalorder %s14, 1
    %p96 = por %p94, %p95
    %p97 = scmp.ne.s32.totalorder %s86, %s87
    %p98 = scmp.eq.s32.totalorder %s14, 0
    %p99 = por %p97, %p98
    %p100 = scmp.ne.s32.totalorder %s86, %s87
    %p101 = scmp.eq.s32.totalorder %s15, 1
    %p102 = por %p100, %p101
    %p104 = scmp.ne.s32.totalorder %s87, %s103
    %p105 = scmp.eq.s32.totalorder %s15, 0
    %p106 = por %p104, %p105
    %s107 = ssub.s32 %s16, %s28
    %s108 = ssub.s32 %s17, %s24
    %s109 = sor.u32 %s107, %s108
    %p110 = scmp.eq.s32.totalorder %s109, 0
    %s112 = sadd.s32 %s111, 1
    %s113 = scalar_select %p110, %s111, %s112
    %p116 = pneg %p110
    %p117 = scmp.eq.s32.totalorder %s9, 1
    %p118 = por %p116, %p117
    %p119 = scmp.ne.s32.totalorder %s111, %s114
    %p120 = scmp.eq.s32.totalorder %s9, 0
    %p121 = por %p119, %p120
    %p122 = scmp.ne.s32.totalorder %s111, %s114
    %p123 = scmp.eq.s32.totalorder %s14, 1
    %p124 = por %p122, %p123
    %p125 = scmp.ne.s32.totalorder %s114, %s115
    %p126 = scmp.eq.s32.totalorder %s14, 0
    %p127 = por %p125, %p126
    %p128 = scmp.ne.s32.totalorder %s114, %s115
    %p129 = scmp.eq.s32.totalorder %s15, 1
    %p130 = por %p128, %p129
    %p132 = scmp.ne.s32.totalorder %s115, %s131
    %p133 = scmp.eq.s32.totalorder %s15, 0
    %p134 = por %p132, %p133
    %p135 = scmp.le.s32.totalorder 1, %s9
    %p136 = scmp.lt.s32.totalorder %s9, 3
    %p137 = pnand %p135, %p136
    %p138 = pneg %p137
    // Predicated region
    $region9: #{resblock_forward.2} parent=5 // pred_check
      _
    $region10: #{resblock_forward.2} parent=5 // pred_check_branch
      %140 = sbr.rel (%p137) target = $region12
    $region11: #{resblock_forward.2} parent=5 // pred_region
      %s141 = ssub.s32 %s9, 1
      // Predicated region
      $region13: #{resblock_forward.2} parent=11 // pred_check
        %p142 = pneg %p73
      $region14: #{resblock_forward.2} parent=11 // pred_check_branch
        %144 = sbr.rel (%p142) target = $region16
      $region15: #{resblock_forward.2} parent=11 // pred_region
        %s145 = smul.u32 8, %s19
        %p146 = scmp.lt.s32.totalorder %s145, 7
        %s147 = scalar_select %p146, %s145, 7
        %s148 = smul.addr %s147, 2
        %s149 = smul.addr %s148, 4
        %s150 = scalar_lea.vmem %s1, %s149
        %s151 = smul.u32 8, %s19
      $region16: #{resblock_forward.2} parent=11 // pred_fallthru
        _
      // Predicated region
      $region17: #{resblock_forward.2} parent=11 // pred_check
        %p152 = pneg %p99
      $region18: #{resblock_forward.2} parent=11 // pred_check_branch
        %154 = sbr.rel (%p152) target = $region20
      $region19: #{resblock_forward.2} parent=11 // pred_region
        %s155 = smul.u32 8, %s19
        %p156 = scmp.lt.s32.totalorder %s155, 7
        %s157 = scalar_select %p156, %s155, 7
        %s158 = smul.addr %s157, 8
        %s159 = scalar_lea.vmem %s2, %s158
        %s160 = smul.u32 8, %s19
      $region20: #{resblock_forward.2} parent=11 // pred_fallthru
        _
    $region12: #{resblock_forward.2} parent=5 // pred_fallthru
      _
    %p161 = scmp.lt.s32.totalorder %s9, 2
    // Predicated region
    $region21: #{resblock_forward.2} parent=5 // pred_check
      %p162 = pneg %p161
    $region22: #{resblock_forward.2} parent=5 // pred_check_branch
      %164 = sbr.rel (%p162) target = $region24
    $region23: #{resblock_forward.2} parent=5 // pred_region
      // Predicated region
      $region25: #{resblock_forward.2} parent=23 // pred_check
        %p165 = pneg %p41
      $region26: #{resblock_forward.2} parent=23 // pred_check_branch
        %167 = sbr.rel (%p165) target = $region28
      $region27: #{resblock_forward.2} parent=23 // pred_region
        %p168 = scmp.lt.s32.totalorder %s16, 1
        %s169 = scalar_select %p168, %s16, 1
        %s170 = smul.addr %s169, 24
        %s171 = smul.addr %s170, 4
        %s172 = scalar_lea.vmem %s0, %s171
      $region28: #{resblock_forward.2} parent=23 // pred_fallthru
        _
    $region24: #{resblock_forward.2} parent=5 // pred_fallthru
      _
    %p173 = scmp.le.s32.totalorder 1, %s9
    %p174 = scmp.lt.s32.totalorder %s9, 3
    %p175 = pnand %p173, %p174
    %p176 = pneg %p175
    // Predicated region
    $region29: #{resblock_forward.2} parent=5 // pred_check
      _
    $region30: #{resblock_forward.2} parent=5 // pred_check_branch
      %178 = sbr.rel (%p175) target = $region32
    $region31: #{resblock_forward.2} parent=5 // pred_region
      %s179 = ssub.s32 %s9, 1
      %p180 = scmp.lt.s32.totalorder %s18, 1
      %s181 = scalar_select %p180, %s18, 1
      %s182 = smul.addr %s181, 24
      %s183 = smul.addr %s182, 4
      %s184 = scalar_lea.vmem %s0, %s183
      %p185 = pneg %p47
      %p186 = pneg %p44
      %s187 = smul.u32 8, %s19
      %p188 = scmp.lt.s32.totalorder %s187, 7
      %s189 = scalar_select %p188, %s187, 7
      %s190 = smul.addr %s189, 2
      %s191 = smul.addr %s190, 4
      %s192 = scalar_lea.vmem %s1, %s191
      %p193 = pneg %p73
      %p194 = pneg %p70
      %s195 = smul.u32 8, %s19
      %p196 = scmp.lt.s32.totalorder %s195, 7
      %s197 = scalar_select %p196, %s195, 7
      %s198 = smul.addr %s197, 8
      %s199 = scalar_lea.vmem %s2, %s198
      %p200 = pneg %p99
      %p201 = pneg %p96
      %p202 = pneg %p127
      %p203 = pneg %p124
      %s204 = smul.u32 8, %s19
      %p205 = scmp.lt.s32.totalorder %s18, 1
      %s206 = scalar_select %p205, %s18, 1
      %p207 = scmp.lt.s32.totalorder %s204, 7
      %s208 = scalar_select %p207, %s204, 7
      %s209 = smul.addr %s208, 2
      %s210 = smul.addr %s206, 16
      %s211 = sadd.s32 %s209, %s210
      %s212 = smul.addr %s211, 4
      %s213 = scalar_lea.vmem %s3, %s212
      %p214 = scmp.lt.s32.totalorder %s18, 1
      %s215 = scalar_select %p214, %s18, 1
      %s216 = smul.addr %s215, 24
      %s217 = smul.addr %s216, 4
      %s218 = scalar_lea.vmem %s0, %s217
      %s219 = smul.u32 8, %s19
      %p220 = scmp.lt.s32.totalorder %s219, 7
      %s221 = scalar_select %p220, %s219, 7
      %s222 = smul.addr %s221, 2
      %s223 = smul.addr %s222, 4
      %s224 = scalar_lea.vmem %s1, %s223
      %s225 = smul.u32 8, %s19
      %s226 = smul.u32 8, %s19
      %p227 = scmp.lt.s32.totalorder %s226, 7
      %s228 = scalar_select %p227, %s226, 7
      %s229 = smul.addr %s228, 8
      %s230 = scalar_lea.vmem %s2, %s229
      %s231 = smul.u32 8, %s19
      %s232 = smul.u32 8, %s19
      %p233 = scmp.lt.s32.totalorder %s18, 1
      %s234 = scalar_select %p233, %s18, 1
      %p235 = scmp.lt.s32.totalorder %s232, 7
      %s236 = scalar_select %p235, %s232, 7
      %s237 = smul.addr %s236, 2
      %s238 = smul.addr %s234, 16
      %s239 = sadd.s32 %s237, %s238
      %s240 = smul.addr %s239, 4
      %s241 = scalar_lea.vmem %s3, %s240
      %s242 = smul.u32 8, %s19
      %v246 = vld [vmem:[%s218] sm:$0xff]
      %v247 = vld [vmem:[%s218 + $0x8] sm:$0xf]
      %v248 = vld [vmem:[%s218 + $0xc] sm:$0xff]
      %v249 = vld [vmem:[%s218 + $0x14] sm:$0xf]
      %v250 = vld [vmem:[%s218 + $0x18] sm:$0xff]
      %v251 = vld [vmem:[%s218 + $0x20] sm:$0xf]
      %v252 = vld [vmem:[%s218 + $0x24] sm:$0xff]
      %v253 = vld [vmem:[%s218 + $0x2c] sm:$0xf]
      %v254 = vld [vmem:[%s218 + $0x30] sm:$0xff]
      %v255 = vld [vmem:[%s218 + $0x38] sm:$0xf]
      %v256 = vld [vmem:[%s218 + $0x3c] sm:$0xff]
      %v257 = vld [vmem:[%s218 + $0x44] sm:$0xf]
      %v258 = vld [vmem:[%s218 + $0x48] sm:$0xff]
      %v259 = vld [vmem:[%s218 + $0x50] sm:$0xf]
      %v260 = vld [vmem:[%s218 + $0x54] sm:$0xff]
      %v261 = vld [vmem:[%s218 + $0x5c] sm:$0xf]
      %v262 = vlaneseq
      %v263 = vand.u32 %v262, 127
      %v264 = vadd.s32 %v263, 128
      %v265 = vadd.s32 %v263, 256
      %vm266 = vcmp.lt.s32.totalorder %v263, 0
      %v267 = vsub.s32 0, %v263
      %v268 = vsel %vm266, %v267, %v263
      %v269 = vshrl.u32 %v268, 4
      %v270 = vand.u32 %v268, 15
      %v271 = vsub.s32 0, %v270
      %v272 = vsel %vm266, %v271, %v270
      %vm273 = vcmp.lt.s32.totalorder %v264, 0
      %v274 = vsub.s32 0, %v264
      %v275 = vsel %vm273, %v274, %v264
      %v276 = vshrl.u32 %v275, 4
      %v277 = vand.u32 %v275, 15
      %v278 = vsub.s32 0, %v277
      %v279 = vsel %vm273, %v278, %v277
      %vm280 = vcmp.lt.s32.totalorder %v265, 0
      %v281 = vsub.s32 0, %v265
      %v282 = vsel %vm280, %v281, %v265
      %v283 = vshrl.u32 %v282, 4
      %v284 = vand.u32 %v282, 15
      %v285 = vsub.s32 0, %v284
      %v286 = vsel %vm280, %v285, %v284
      %vm287 = vcmp.ne.s32.totalorder %v272, 0
      %vm288 = vcmp.ne.s32.totalorder %v279, 0
      %vm289 = vcmp.ne.s32.totalorder %v286, 0
      %vm290 = vcmp.lt.s32.totalorder %v272, 0
      %vm291 = vcmp.lt.s32.totalorder %v279, 0
      %vm292 = vcmp.lt.s32.totalorder %v286, 0
      %vm293 = vmand %vm290, %vm287
      %vm294 = vmand %vm291, %vm288
      %vm295 = vmand %vm292, %vm289
      %v296 = vadd.s32 %v272, 16
      %v297 = vadd.s32 %v279, 16
      %v298 = vadd.s32 %v286, 16
      %v299 = vsel %vm293, %v296, %v272
      %v300 = vsel %vm294, %v297, %v279
      %v301 = vsel %vm295, %v298, %v286
      %vm302 = vcmp.gt.s32.totalorder %v299, 0
      %vm303 = vcmp.gt.s32.totalorder %v300, 0
      %vm304 = vcmp.gt.s32.totalorder %v301, 0
      %v305 = vsel %vm302, 1, 0
      %v306 = vsel %vm303, 1, 0
      %v307 = vsel %vm304, 1, 0
      %vm308 = vcmp.eq.s32.totalorder %v305, 1
      %vm309 = vcmp.eq.s32.totalorder %v306, 1
      %vm310 = vcmp.eq.s32.totalorder %v307, 1
      %vm311 = vmpackc.low %vm309, %vm308
      %vm312 = vmpackc.low %vm310, %vm310
      %v313 = vsel %vm311, %v246, 0
      %v314 = vsel %vm312, %v247, 0
      %v315 = vsel %vm311, %v248, 0
      %v316 = vsel %vm312, %v249, 0
      %v317 = vsel %vm311, %v250, 0
      %v318 = vsel %vm312, %v251, 0
      %v319 = vsel %vm311, %v252, 0
      %v320 = vsel %vm312, %v253, 0
      %v321 = vsel %vm311, %v254, 0
      %v322 = vsel %vm312, %v255, 0
      %v323 = vsel %vm311, %v256, 0
      %v324 = vsel %vm312, %v257, 0
      %v325 = vsel %vm311, %v258, 0
      %v326 = vsel %vm312, %v259, 0
      %v327 = vsel %vm311, %v260, 0
      %v328 = vsel %vm312, %v261, 0
      %v345 = vunpack.c.l.b16 %v313
      %v346 = vunpack.c.h.b16 %v313
      %v347 = vunpack.c.l.b16 %v314
      %v348 = vunpack.c.l.b16 %v315
      %v349 = vunpack.c.h.b16 %v315
      %v350 = vunpack.c.l.b16 %v316
      %v351 = vunpack.c.l.b16 %v317
      %v352 = vunpack.c.h.b16 %v317
      %v353 = vunpack.c.l.b16 %v318
      %v354 = vunpack.c.l.b16 %v319
      %v355 = vunpack.c.h.b16 %v319
      %v356 = vunpack.c.l.b16 %v320
      %v357 = vunpack.c.l.b16 %v321
      %v358 = vunpack.c.h.b16 %v321
      %v359 = vunpack.c.l.b16 %v322
      %v360 = vunpack.c.l.b16 %v323
      %v361 = vunpack.c.h.b16 %v323
      %v362 = vunpack.c.l.b16 %v324
      %v363 = vunpack.c.l.b16 %v325
      %v364 = vunpack.c.h.b16 %v325
      %v365 = vunpack.c.l.b16 %v326
      %v366 = vunpack.c.l.b16 %v327
      %v367 = vunpack.c.h.b16 %v327
      %v368 = vunpack.c.l.b16 %v328
      %v369 = vpack.c.b16 %v348, %v345
      %v370 = vpack.c.b16 %v349, %v346
      %v371 = vpack.c.b16 %v350, %v347
      %v372 = vpack.c.b16 %v354, %v351
      %v373 = vpack.c.b16 %v355, %v352
      %v374 = vpack.c.b16 %v356, %v353
      %v375 = vpack.c.b16 %v360, %v357
      %v376 = vpack.c.b16 %v361, %v358
      %v377 = vpack.c.b16 %v362, %v359
      %v378 = vpack.c.b16 %v366, %v363
      %v379 = vpack.c.b16 %v367, %v364
      %v380 = vpack.c.b16 %v368, %v365
      %393 = vst [vmem:[#allocation2] sm:$0xff] %v369
      %394 = vst [vmem:[#allocation2 + $0x8] sm:$0xff] %v370
      %vm395 = vcmask 261120
      %396 = vst.msk [vmem:[#allocation2 + $0x10] sm:$0xff] %vm395, %v371
      %397 = vst [vmem:[#allocation2 + $0x18] sm:$0xff] %v372
      %398 = vst [vmem:[#allocation2 + $0x20] sm:$0xff] %v373
      %399 = vst.msk [vmem:[#allocation2 + $0x28] sm:$0xff] %vm395, %v374
      %400 = vst [vmem:[#allocation2 + $0x30] sm:$0xff] %v375
      %401 = vst [vmem:[#allocation2 + $0x38] sm:$0xff] %v376
      %402 = vst.msk [vmem:[#allocation2 + $0x40] sm:$0xff] %vm395, %v377
      %403 = vst [vmem:[#allocation2 + $0x48] sm:$0xff] %v378
      %404 = vst [vmem:[#allocation2 + $0x50] sm:$0xff] %v379
      %405 = vst.msk [vmem:[#allocation2 + $0x58] sm:$0xff] %vm395, %v380
      %v422 = vunpack.c.l.b16 %v246
      %v423 = vunpack.c.h.b16 %v246
      %v424 = vunpack.c.l.b16 %v247
      %v425 = vunpack.c.l.b16 %v248
      %v426 = vunpack.c.h.b16 %v248
      %v427 = vunpack.c.l.b16 %v249
      %v428 = vunpack.c.l.b16 %v250
      %v429 = vunpack.c.h.b16 %v250
      %v430 = vunpack.c.l.b16 %v251
      %v431 = vunpack.c.l.b16 %v252
      %v432 = vunpack.c.h.b16 %v252
      %v433 = vunpack.c.l.b16 %v253
      %v434 = vunpack.c.l.b16 %v254
      %v435 = vunpack.c.h.b16 %v254
      %v436 = vunpack.c.l.b16 %v255
      %v437 = vunpack.c.l.b16 %v256
      %v438 = vunpack.c.h.b16 %v256
      %v439 = vunpack.c.l.b16 %v257
      %v440 = vunpack.c.l.b16 %v258
      %v441 = vunpack.c.h.b16 %v258
      %v442 = vunpack.c.l.b16 %v259
      %v443 = vunpack.c.l.b16 %v260
      %v444 = vunpack.c.h.b16 %v260
      %v445 = vunpack.c.l.b16 %v261
      %v446 = vpack.c.b16 %v425, %v422
      %v447 = vpack.c.b16 %v426, %v423
      %v448 = vpack.c.b16 %v427, %v424
      %v449 = vpack.c.b16 %v431, %v428
      %v450 = vpack.c.b16 %v432, %v429
      %v451 = vpack.c.b16 %v433, %v430
      %v452 = vpack.c.b16 %v437, %v434
      %v453 = vpack.c.b16 %v438, %v435
      %v454 = vpack.c.b16 %v439, %v436
      %v455 = vpack.c.b16 %v443, %v440
      %v456 = vpack.c.b16 %v444, %v441
      %v457 = vpack.c.b16 %v445, %v442
      %458 = vrot.lane.b32.xlu0 %v446, 127
      %v459 = vpop.permute.xlu0 %458
      %460 = vrot.lane.b32.xlu0 %v447, 127
      %v461 = vpop.permute.xlu0 %460
      %462 = vrot.lane.b32.xlu0 %v448, 127
      %v463 = vpop.permute.xlu0 %462
      %464 = vrot.lane.b32.xlu0 %v449, 127
      %v465 = vpop.permute.xlu0 %464
      %466 = vrot.lane.b32.xlu0 %v450, 127
      %v467 = vpop.permute.xlu0 %466
      %468 = vrot.lane.b32.xlu0 %v451, 127
      %v469 = vpop.permute.xlu0 %468
      %470 = vrot.lane.b32.xlu0 %v452, 127
      %v471 = vpop.permute.xlu0 %470
      %472 = vrot.lane.b32.xlu0 %v453, 127
      %v473 = vpop.permute.xlu0 %472
      %474 = vrot.lane.b32.xlu0 %v454, 127
      %v475 = vpop.permute.xlu0 %474
      %476 = vrot.lane.b32.xlu0 %v455, 127
      %v477 = vpop.permute.xlu0 %476
      %478 = vrot.lane.b32.xlu0 %v456, 127
      %v479 = vpop.permute.xlu0 %478
      %480 = vrot.lane.b32.xlu0 %v457, 127
      %v481 = vpop.permute.xlu0 %480
      %vm482 = vcmask 1039360
      %v483 = vsel %vm482, %v459, %v461
      %v484 = vsel %vm482, %v461, %v463
      %v485 = vsel %vm482, %v465, %v467
      %v486 = vsel %vm482, %v467, %v469
      %v487 = vsel %vm482, %v471, %v473
      %v488 = vsel %vm482, %v473, %v475
      %v489 = vsel %vm482, %v477, %v479
      %v490 = vsel %vm482, %v479, %v481
      %503 = vst [vmem:[#allocation2 + $0x60] sm:$0xff] %v483
      %504 = vst [vmem:[#allocation2 + $0x68] sm:$0xff] %v484
      %505 = vst.msk [vmem:[#allocation2 + $0x70] sm:$0xff] %vm395, %v463
      %506 = vst [vmem:[#allocation2 + $0x78] sm:$0xff] %v485
      %507 = vst [vmem:[#allocation2 + $0x80] sm:$0xff] %v486
      %508 = vst.msk [vmem:[#allocation2 + $0x88] sm:$0xff] %vm395, %v469
      %509 = vst [vmem:[#allocation2 + $0x90] sm:$0xff] %v487
      %510 = vst [vmem:[#allocation2 + $0x98] sm:$0xff] %v488
      %511 = vst.msk [vmem:[#allocation2 + $0xa0] sm:$0xff] %vm395, %v475
      %512 = vst [vmem:[#allocation2 + $0xa8] sm:$0xff] %v489
      %513 = vst [vmem:[#allocation2 + $0xb0] sm:$0xff] %v490
      %514 = vst.msk [vmem:[#allocation2 + $0xb8] sm:$0xff] %vm395, %v481
      %vm515 = vcmp.lt.s32.totalorder %v299, 15
      %vm516 = vcmp.lt.s32.totalorder %v300, 15
      %vm517 = vcmp.lt.s32.totalorder %v301, 15
      %v518 = vsel %vm515, 1, 0
      %v519 = vsel %vm516, 1, 0
      %v520 = vsel %vm517, 1, 0
      %vm521 = vcmp.eq.s32.totalorder %v518, 1
      %vm522 = vcmp.eq.s32.totalorder %v519, 1
      %vm523 = vcmp.eq.s32.totalorder %v520, 1
      %vm524 = vmpackc.low %vm522, %vm521
      %vm525 = vmpackc.low %vm523, %vm523
      %v526 = vsel %vm524, 65537, 0
      %v527 = vsel %vm525, 65537, 0
      %528 = vrot.lane.b32.xlu0 %v526, 2
      %v529 = vpop.permute.xlu0 %528
      %530 = vrot.lane.b32.xlu0 %v527, 2
      %v531 = vpop.permute.xlu0 %530
      %v532 = vrot.slane %v529, 4
      %vm533 = vcmask 15360
      %v534 = vsel %vm533, %v532, %v529
      %v535 = vsel %vm533, %v532, %v531
      %vm536 = vcmp.ne.s16.totalorder %v534, 0
      %vm537 = vcmp.ne.s16.totalorder %v535, 0
      %v538 = vsel %vm536, %v246, 0
      %v539 = vsel %vm537, %v247, 0
      %v540 = vsel %vm536, %v248, 0
      %v541 = vsel %vm537, %v249, 0
      %v542 = vsel %vm536, %v250, 0
      %v543 = vsel %vm537, %v251, 0
      %v544 = vsel %vm536, %v252, 0
      %v545 = vsel %vm537, %v253, 0
      %v546 = vsel %vm536, %v254, 0
      %v547 = vsel %vm537, %v255, 0
      %v548 = vsel %vm536, %v256, 0
      %v549 = vsel %vm537, %v257, 0
      %v550 = vsel %vm536, %v258, 0
      %v551 = vsel %vm537, %v259, 0
      %v552 = vsel %vm536, %v260, 0
      %v553 = vsel %vm537, %v261, 0
      %v570 = vunpack.c.l.b16 %v538
      %v571 = vunpack.c.h.b16 %v538
      %v572 = vunpack.c.l.b16 %v539
      %v573 = vunpack.c.l.b16 %v540
      %v574 = vunpack.c.h.b16 %v540
      %v575 = vunpack.c.l.b16 %v541
      %v576 = vunpack.c.l.b16 %v542
      %v577 = vunpack.c.h.b16 %v542
      %v578 = vunpack.c.l.b16 %v543
      %v579 = vunpack.c.l.b16 %v544
      %v580 = vunpack.c.h.b16 %v544
      %v581 = vunpack.c.l.b16 %v545
      %v582 = vunpack.c.l.b16 %v546
      %v583 = vunpack.c.h.b16 %v546
      %v584 = vunpack.c.l.b16 %v547
      %v585 = vunpack.c.l.b16 %v548
      %v586 = vunpack.c.h.b16 %v548
      %v587 = vunpack.c.l.b16 %v549
      %v588 = vunpack.c.l.b16 %v550
      %v589 = vunpack.c.h.b16 %v550
      %v590 = vunpack.c.l.b16 %v551
      %v591 = vunpack.c.l.b16 %v552
      %v592 = vunpack.c.h.b16 %v552
      %v593 = vunpack.c.l.b16 %v553
      %v594 = vpack.c.b16 %v573, %v570
      %v595 = vpack.c.b16 %v574, %v571
      %v596 = vpack.c.b16 %v575, %v572
      %v597 = vpack.c.b16 %v579, %v576
      %v598 = vpack.c.b16 %v580, %v577
      %v599 = vpack.c.b16 %v581, %v578
      %v600 = vpack.c.b16 %v585, %v582
      %v601 = vpack.c.b16 %v586, %v583
      %v602 = vpack.c.b16 %v587, %v584
      %v603 = vpack.c.b16 %v591, %v588
      %v604 = vpack.c.b16 %v592, %v589
      %v605 = vpack.c.b16 %v593, %v590
      %606 = vrot.lane.b32.xlu0 %v594, 126
      %v607 = vpop.permute.xlu0 %606
      %608 = vrot.lane.b32.xlu0 %v595, 126
      %v609 = vpop.permute.xlu0 %608
      %610 = vrot.lane.b32.xlu0 %v596, 126
      %v611 = vpop.permute.xlu0 %610
      %612 = vrot.lane.b32.xlu0 %v597, 126
      %v613 = vpop.permute.xlu0 %612
      %614 = vrot.lane.b32.xlu0 %v598, 126
      %v615 = vpop.permute.xlu0 %614
      %616 = vrot.lane.b32.xlu0 %v599, 126
      %v617 = vpop.permute.xlu0 %616
      %618 = vrot.lane.b32.xlu0 %v600, 126
      %v619 = vpop.permute.xlu0 %618
      %620 = vrot.lane.b32.xlu0 %v601, 126
      %v621 = vpop.permute.xlu0 %620
      %622 = vrot.lane.b32.xlu0 %v602, 126
      %v623 = vpop.permute.xlu0 %622
      %624 = vrot.lane.b32.xlu0 %v603, 126
      %v625 = vpop.permute.xlu0 %624
      %626 = vrot.lane.b32.xlu0 %v604, 126
      %v627 = vpop.permute.xlu0 %626
      %628 = vrot.lane.b32.xlu0 %v605, 126
      %v629 = vpop.permute.xlu0 %628
      %vm630 = vcmask 1031168
      %v631 = vsel %vm630, %v607, %v609
      %v632 = vsel %vm630, %v609, %v611
      %v633 = vsel %vm630, %v613, %v615
      %v634 = vsel %vm630, %v615, %v617
      %v635 = vsel %vm630, %v619, %v621
      %v636 = vsel %vm630, %v621, %v623
      %v637 = vsel %vm630, %v625, %v627
      %v638 = vsel %vm630, %v627, %v629
      %651 = vst [vmem:[#allocation2 + $0xc0] sm:$0xff] %v631
      %652 = vst [vmem:[#allocation2 + $0xc8] sm:$0xff] %v632
      %653 = vst.msk [vmem:[#allocation2 + $0xd0] sm:$0xff] %vm395, %v611
      %654 = vst [vmem:[#allocation2 + $0xd8] sm:$0xff] %v633
      %655 = vst [vmem:[#allocation2 + $0xe0] sm:$0xff] %v634
      %656 = vst.msk [vmem:[#allocation2 + $0xe8] sm:$0xff] %vm395, %v617
      %657 = vst [vmem:[#allocation2 + $0xf0] sm:$0xff] %v635
      %658 = vst [vmem:[#allocation2 + $0xf8] sm:$0xff] %v636
      %659 = vst.msk [vmem:[#allocation2 + $0x100] sm:$0xff] %vm395, %v623
      %660 = vst [vmem:[#allocation2 + $0x108] sm:$0xff] %v637
      %661 = vst [vmem:[#allocation2 + $0x110] sm:$0xff] %v638
      %662 = vst.msk [vmem:[#allocation2 + $0x118] sm:$0xff] %vm395, %v629
      %v663 = vld [vmem:[%s224] sm:$0xff]
      %v664 = vld [vmem:[%s224 + $0x8] sm:$0xff]
      %v665 = vld [vmem:[%s224 + $0x10] sm:$0xff]
      %v666 = vld [vmem:[%s224 + $0x18] sm:$0xff]
      %v667 = vld [vmem:[%s224 + $0x20] sm:$0xff]
      %v668 = vld [vmem:[%s224 + $0x28] sm:$0xff]
      %v669 = vld [vmem:[%s224 + $0x30] sm:$0xff]
      %v670 = vld [vmem:[%s224 + $0x38] sm:$0xff]
      %v671 = vld [vmem:[#allocation2] sm:$0xff]
      %v672 = vld [vmem:[#allocation2 + $0x8] sm:$0xff]
      %v673 = vld [vmem:[#allocation2 + $0x18] sm:$0xff]
      %v674 = vld [vmem:[#allocation2 + $0x20] sm:$0xff]
      %v675 = vld [vmem:[#allocation2 + $0x30] sm:$0xff]
      %v676 = vld [vmem:[#allocation2 + $0x38] sm:$0xff]
      %v677 = vld [vmem:[#allocation2 + $0x48] sm:$0xff]
      %v678 = vld [vmem:[#allocation2 + $0x50] sm:$0xff]
      %v679 = vld [vmem:[#allocation2 + $0x60] sm:$0xff]
      %v680 = vld [vmem:[#allocation2 + $0x68] sm:$0xff]
      %v681 = vld [vmem:[#allocation2 + $0x78] sm:$0xff]
      %v682 = vld [vmem:[#allocation2 + $0x80] sm:$0xff]
      %v683 = vld [vmem:[#allocation2 + $0x90] sm:$0xff]
      %v684 = vld [vmem:[#allocation2 + $0x98] sm:$0xff]
      %v685 = vld [vmem:[#allocation2 + $0xa8] sm:$0xff]
      %v686 = vld [vmem:[#allocation2 + $0xb0] sm:$0xff]
      %v687 = vld [vmem:[#allocation2 + $0xc0] sm:$0xff]
      %v688 = vld [vmem:[#allocation2 + $0xc8] sm:$0xff]
      %v689 = vld [vmem:[#allocation2 + $0xd8] sm:$0xff]
      %v690 = vld [vmem:[#allocation2 + $0xe0] sm:$0xff]
      %v691 = vld [vmem:[#allocation2 + $0xf0] sm:$0xff]
      %v692 = vld [vmem:[#allocation2 + $0xf8] sm:$0xff]
      %v693 = vld [vmem:[#allocation2 + $0x108] sm:$0xff]
      %v694 = vld [vmem:[#allocation2 + $0x110] sm:$0xff]
      %s695 = scalar_lea.vmem %s224, 64
      %v696 = vld [vmem:[%s695] sm:$0xff]
      %v697 = vld [vmem:[%s695 + $0x8] sm:$0xff]
      %v698 = vld [vmem:[%s695 + $0x10] sm:$0xff]
      %v699 = vld [vmem:[%s695 + $0x18] sm:$0xff]
      %v700 = vld [vmem:[%s695 + $0x20] sm:$0xff]
      %v701 = vld [vmem:[%s695 + $0x28] sm:$0xff]
      %v702 = vld [vmem:[%s695 + $0x30] sm:$0xff]
      %v703 = vld [vmem:[%s695 + $0x38] sm:$0xff]
      %v704 = vld [vmem:[#allocation2 + $0x10] sm:$0xff]
      %v705 = vld [vmem:[#allocation2 + $0x28] sm:$0xff]
      %v706 = vld [vmem:[#allocation2 + $0x40] sm:$0xff]
      %v707 = vld [vmem:[#allocation2 + $0x58] sm:$0xff]
      %v708 = vld [vmem:[#allocation2 + $0x70] sm:$0xff]
      %v709 = vld [vmem:[#allocation2 + $0x88] sm:$0xff]
      %v710 = vld [vmem:[#allocation2 + $0xa0] sm:$0xff]
      %v711 = vld [vmem:[#allocation2 + $0xb8] sm:$0xff]
      %v712 = vld [vmem:[#allocation2 + $0xd0] sm:$0xff]
      %v713 = vld [vmem:[#allocation2 + $0xe8] sm:$0xff]
      %v714 = vld [vmem:[#allocation2 + $0x100] sm:$0xff]
      %v715 = vld [vmem:[#allocation2 + $0x118] sm:$0xff]
      %v724 = vunpack.c.l.b16 %v696
      %v725 = vunpack.c.h.b16 %v696
      %v726 = vunpack.c.l.b16 %v697
      %v727 = vunpack.c.h.b16 %v697
      %v728 = vunpack.c.l.b16 %v698
      %v729 = vunpack.c.h.b16 %v698
      %v730 = vunpack.c.l.b16 %v699
      %v731 = vunpack.c.h.b16 %v699
      %v732 = vunpack.c.l.b16 %v700
      %v733 = vunpack.c.h.b16 %v700
      %v734 = vunpack.c.l.b16 %v701
      %v735 = vunpack.c.h.b16 %v701
      %v736 = vunpack.c.l.b16 %v702
      %v737 = vunpack.c.h.b16 %v702
      %v738 = vunpack.c.l.b16 %v703
      %v739 = vunpack.c.h.b16 %v703
      %v740 = vpack.c.b16 %v726, %v724
      %v741 = vpack.c.b16 %v727, %v725
      %v742 = vpack.c.b16 %v730, %v728
      %v743 = vpack.c.b16 %v731, %v729
      %v744 = vpack.c.b16 %v734, %v732
      %v745 = vpack.c.b16 %v735, %v733
      %v746 = vpack.c.b16 %v738, %v736
      %v747 = vpack.c.b16 %v739, %v737
      %788 = vrot.lane.b32.xlu0 %v671, 112
      %v789 = vpop.permute.xlu0 %788
      %790 = vrot.lane.b32.xlu0 %v672, 112
      %v791 = vpop.permute.xlu0 %790
      %792 = vrot.lane.b32.xlu0 %v704, 112
      %v793 = vpop.permute.xlu0 %792
      %794 = vrot.lane.b32.xlu0 %v673, 112
      %v795 = vpop.permute.xlu0 %794
      %796 = vrot.lane.b32.xlu0 %v674, 112
      %v797 = vpop.permute.xlu0 %796
      %798 = vrot.lane.b32.xlu0 %v705, 112
      %v799 = vpop.permute.xlu0 %798
      %800 = vrot.lane.b32.xlu0 %v675, 112
      %v801 = vpop.permute.xlu0 %800
      %802 = vrot.lane.b32.xlu0 %v676, 112
      %v803 = vpop.permute.xlu0 %802
      %804 = vrot.lane.b32.xlu0 %v706, 112
      %v805 = vpop.permute.xlu0 %804
      %806 = vrot.lane.b32.xlu0 %v677, 112
      %v807 = vpop.permute.xlu0 %806
      %808 = vrot.lane.b32.xlu0 %v678, 112
      %v809 = vpop.permute.xlu0 %808
      %810 = vrot.lane.b32.xlu0 %v707, 112
      %v811 = vpop.permute.xlu0 %810
      %812 = vrot.lane.b32.xlu0 %v679, 112
      %v813 = vpop.permute.xlu0 %812
      %814 = vrot.lane.b32.xlu0 %v680, 112
      %v815 = vpop.permute.xlu0 %814
      %816 = vrot.lane.b32.xlu0 %v708, 112
      %v817 = vpop.permute.xlu0 %816
      %818 = vrot.lane.b32.xlu0 %v681, 112
      %v819 = vpop.permute.xlu0 %818
      %820 = vrot.lane.b32.xlu0 %v682, 112
      %v821 = vpop.permute.xlu0 %820
      %822 = vrot.lane.b32.xlu0 %v709, 112
      %v823 = vpop.permute.xlu0 %822
      %824 = vrot.lane.b32.xlu0 %v683, 112
      %v825 = vpop.permute.xlu0 %824
      %826 = vrot.lane.b32.xlu0 %v684, 112
      %v827 = vpop.permute.xlu0 %826
      %828 = vrot.lane.b32.xlu0 %v710, 112
      %v829 = vpop.permute.xlu0 %828
      %830 = vrot.lane.b32.xlu0 %v685, 112
      %v831 = vpop.permute.xlu0 %830
      %832 = vrot.lane.b32.xlu0 %v686, 112
      %v833 = vpop.permute.xlu0 %832
      %834 = vrot.lane.b32.xlu0 %v711, 112
      %v835 = vpop.permute.xlu0 %834
      %836 = vrot.lane.b32.xlu0 %v687, 112
      %v837 = vpop.permute.xlu0 %836
      %838 = vrot.lane.b32.xlu0 %v688, 112
      %v839 = vpop.permute.xlu0 %838
      %840 = vrot.lane.b32.xlu0 %v712, 112
      %v841 = vpop.permute.xlu0 %840
      %842 = vrot.lane.b32.xlu0 %v689, 112
      %v843 = vpop.permute.xlu0 %842
      %844 = vrot.lane.b32.xlu0 %v690, 112
      %v845 = vpop.permute.xlu0 %844
      %846 = vrot.lane.b32.xlu0 %v713, 112
      %v847 = vpop.permute.xlu0 %846
      %848 = vrot.lane.b32.xlu0 %v691, 112
      %v849 = vpop.permute.xlu0 %848
      %850 = vrot.lane.b32.xlu0 %v692, 112
      %v851 = vpop.permute.xlu0 %850
      %852 = vrot.lane.b32.xlu0 %v714, 112
      %v853 = vpop.permute.xlu0 %852
      %854 = vrot.lane.b32.xlu0 %v693, 112
      %v855 = vpop.permute.xlu0 %854
      %856 = vrot.lane.b32.xlu0 %v694, 112
      %v857 = vpop.permute.xlu0 %856
      %858 = vrot.lane.b32.xlu0 %v715, 112
      %v859 = vpop.permute.xlu0 %858
      %vm860 = vcmask 916480
      %v861 = vsel %vm860, %v789, %v791
      %v862 = vsel %vm860, %v791, %v793
      %v863 = vsel %vm860, %v795, %v797
      %v864 = vsel %vm860, %v797, %v799
      %v865 = vsel %vm860, %v801, %v803
      %v866 = vsel %vm860, %v803, %v805
      %v867 = vsel %vm860, %v807, %v809
      %v868 = vsel %vm860, %v809, %v811
      %v869 = vsel %vm860, %v813, %v815
      %v870 = vsel %vm860, %v815, %v817
      %v871 = vsel %vm860, %v819, %v821
      %v872 = vsel %vm860, %v821, %v823
      %v873 = vsel %vm860, %v825, %v827
      %v874 = vsel %vm860, %v827, %v829
      %v875 = vsel %vm860, %v831, %v833
      %v876 = vsel %vm860, %v833, %v835
      %v877 = vsel %vm860, %v837, %v839
      %v878 = vsel %vm860, %v839, %v841
      %v879 = vsel %vm860, %v843, %v845
      %v880 = vsel %vm860, %v845, %v847
      %v881 = vsel %vm860, %v849, %v851
      %v882 = vsel %vm860, %v851, %v853
      %v883 = vsel %vm860, %v855, %v857
      %v884 = vsel %vm860, %v857, %v859
      %vm909 = vcmask 523264
      %v911 = vsel %vm909, %v741, 0
      %v914 = vsel %vm909, %v743, 0
      %v917 = vsel %vm909, %v745, 0
      %v920 = vsel %vm909, %v747, 0
      %922 = vmatprep.subr.bf16.mxu0 %v862
      %923 = vmatpush1.bf16.msra.mxu0 %v861
      %924 = vmatprep.subr.bf16.mxu0 %v864
      %925 = vmatpush1.bf16.msra.mxu0 %v863
      %926 = vmatprep.subr.bf16.mxu0 %v866
      %927 = vmatpush1.bf16.msra.mxu0 %v865
      %928 = vmatprep.subr.bf16.mxu0 %v868
      %929 = vmatpush1.bf16.msra.mxu0 %v867
      %930 = vmatprep.subr.bf16.mxu0 %v870
      %931 = vmatpush1.bf16.msra.mxu0 %v869
      %932 = vmatprep.subr.bf16.mxu0 %v872
      %933 = vmatpush1.bf16.msra.mxu0 %v871
      %934 = vmatprep.subr.bf16.mxu0 %v874
      %935 = vmatpush1.bf16.msra.mxu0 %v873
      %936 = vmatprep.subr.bf16.mxu0 %v876
      %937 = vmatpush1.bf16.msra.mxu0 %v875
      %938 = vmatprep.subr.bf16.mxu0 %v878
      %939 = vmatpush1.bf16.msra.mxu0 %v877
      %940 = vmatprep.subr.bf16.mxu0 %v880
      %941 = vmatpush1.bf16.msra.mxu0 %v879
      %942 = vmatprep.subr.bf16.mxu0 %v882
      %943 = vmatpush1.bf16.msra.mxu0 %v881
      %944 = vmatprep.subr.bf16.mxu0 %v884
      %945 = vmatpush1.bf16.msra.mxu0 %v883
      %946 = vmatprep.subr.bf16.mxu0 0
      %947 = vmatpush1.bf16.msra.mxu0 0
      %948 = vmatprep.subr.bf16.mxu0 0
      %949 = vmatpush1.bf16.msra.mxu0 0
      %950 = vmatprep.subr.bf16.mxu0 0
      %951 = vmatpush1.bf16.msra.mxu0 0
      %952 = vmatprep.subr.bf16.mxu0 0
      %953 = vmatpush1.bf16.msra.mxu0 0
      %954 = vmatprep.mubr.bf16.mxu0 %v911
      %955 = vmatmul.mubr.bf16.gmra.mrb[0].mxu0 %v740
      %v956 = vpop.f32.mrb[0].mxu0
      %v957 = vadd.f32 0.0, %v956
      %v958 = vpop.f32.mrb[0].mxu0
      %v959 = vadd.f32 0.0, %v958
      %v960 = vpop.f32.mrb[0].mxu0
      %v961 = vadd.f32 0.0, %v960
      %v962 = vpop.f32.mrb[0].mxu0
      %v963 = vadd.f32 0.0, %v962
      %964 = vmatprep.mubr.bf16.mxu0 %v914
      %965 = vmatmul.mubr.bf16.gmra.mrb[0].mxu0 %v742
      %v966 = vpop.f32.mrb[0].mxu0
      %v967 = vadd.f32 0.0, %v966
      %v968 = vpop.f32.mrb[0].mxu0
      %v969 = vadd.f32 0.0, %v968
      %v970 = vpop.f32.mrb[0].mxu0
      %v971 = vadd.f32 0.0, %v970
      %v972 = vpop.f32.mrb[0].mxu0
      %v973 = vadd.f32 0.0, %v972
      %974 = vmatprep.mubr.bf16.mxu0 %v917
      %975 = vmatmul.mubr.bf16.gmra.mrb[0].mxu0 %v744
      %v976 = vpop.f32.mrb[0].mxu0
      %v977 = vadd.f32 0.0, %v976
      %v978 = vpop.f32.mrb[0].mxu0
      %v979 = vadd.f32 0.0, %v978
      %v980 = vpop.f32.mrb[0].mxu0
      %v981 = vadd.f32 0.0, %v980
      %v982 = vpop.f32.mrb[0].mxu0
      %v983 = vadd.f32 0.0, %v982
      %984 = vmatprep.mubr.bf16.mxu0 %v920
      %985 = vmatmul.mubr.bf16.gmra.mrb[0].mxu0 %v746
      %v986 = vpop.f32.mrb[0].mxu0
      %v987 = vadd.f32 0.0, %v986
      %v988 = vpop.f32.mrb[0].mxu0
      %v989 = vadd.f32 0.0, %v988
      %v990 = vpop.f32.mrb[0].mxu0
      %v991 = vadd.f32 0.0, %v990
      %v992 = vpop.f32.mrb[0].mxu0
      %v993 = vadd.f32 0.0, %v992
      %994 = vdwg.mxu0
      %v1003 = vunpack.c.l.b16 %v663
      %v1004 = vunpack.c.h.b16 %v663
      %v1005 = vunpack.c.l.b16 %v664
      %v1006 = vunpack.c.h.b16 %v664
      %v1007 = vunpack.c.l.b16 %v665
      %v1008 = vunpack.c.h.b16 %v665
      %v1009 = vunpack.c.l.b16 %v666
      %v1010 = vunpack.c.h.b16 %v666
      %v1011 = vunpack.c.l.b16 %v667
      %v1012 = vunpack.c.h.b16 %v667
      %v1013 = vunpack.c.l.b16 %v668
      %v1014 = vunpack.c.h.b16 %v668
      %v1015 = vunpack.c.l.b16 %v669
      %v1016 = vunpack.c.h.b16 %v669
      %v1017 = vunpack.c.l.b16 %v670
      %v1018 = vunpack.c.h.b16 %v670
      %v1019 = vpack.c.b16 %v1005, %v1003
      %v1020 = vpack.c.b16 %v1006, %v1004
      %v1021 = vpack.c.b16 %v1009, %v1007
      %v1022 = vpack.c.b16 %v1010, %v1008
      %v1023 = vpack.c.b16 %v1013, %v1011
      %v1024 = vpack.c.b16 %v1014, %v1012
      %v1025 = vpack.c.b16 %v1017, %v1015
      %v1026 = vpack.c.b16 %v1018, %v1016
      %v1032 = vsel %vm909, %v1020, 0
      %v1035 = vsel %vm909, %v1022, 0
      %v1038 = vsel %vm909, %v1024, 0
      %v1041 = vsel %vm909, %v1026, 0
      %1043 = vmatprep.subr.bf16.mxu0 %v672
      %1044 = vmatpush1.bf16.msra.mxu0 %v671
      %1045 = vmatprep.subr.bf16.mxu0 %v674
      %1046 = vmatpush1.bf16.msra.mxu0 %v673
      %1047 = vmatprep.subr.bf16.mxu0 %v676
      %1048 = vmatpush1.bf16.msra.mxu0 %v675
      %1049 = vmatprep.subr.bf16.mxu0 %v678
      %1050 = vmatpush1.bf16.msra.mxu0 %v677
      %1051 = vmatprep.subr.bf16.mxu0 %v680
      %1052 = vmatpush1.bf16.msra.mxu0 %v679
      %1053 = vmatprep.subr.bf16.mxu0 %v682
      %1054 = vmatpush1.bf16.msra.mxu0 %v681
      %1055 = vmatprep.subr.bf16.mxu0 %v684
      %1056 = vmatpush1.bf16.msra.mxu0 %v683
      %1057 = vmatprep.subr.bf16.mxu0 %v686
      %1058 = vmatpush1.bf16.msra.mxu0 %v685
      %1059 = vmatprep.subr.bf16.mxu0 %v688
      %1060 = vmatpush1.bf16.msra.mxu0 %v687
      %1061 = vmatprep.subr.bf16.mxu0 %v690
      %1062 = vmatpush1.bf16.msra.mxu0 %v689
      %1063 = vmatprep.subr.bf16.mxu0 %v692
      %1064 = vmatpush1.bf16.msra.mxu0 %v691
      %1065 = vmatprep.subr.bf16.mxu0 %v694
      %1066 = vmatpush1.bf16.msra.mxu0 %v693
      %1067 = vmatprep.subr.bf16.mxu0 0
      %1068 = vmatpush1.bf16.msra.mxu0 0
      %1069 = vmatprep.subr.bf16.mxu0 0
      %1070 = vmatpush1.bf16.msra.mxu0 0
      %1071 = vmatprep.subr.bf16.mxu0 0
      %1072 = vmatpush1.bf16.msra.mxu0 0
      %1073 = vmatprep.subr.bf16.mxu0 0
      %1074 = vmatpush1.bf16.msra.mxu0 0
      %1075 = vmatprep.mubr.bf16.mxu0 %v1032
      %1076 = vmatmul.mubr.bf16.gmra.mrb[0].mxu0 %v1019
      %v1077 = vpop.f32.mrb[0].mxu0
      %v1078 = vadd.f32 %v957, %v1077
      %v1079 = vpop.f32.mrb[0].mxu0
      %v1080 = vadd.f32 %v959, %v1079
      %v1081 = vpop.f32.mrb[0].mxu0
      %v1082 = vadd.f32 %v961, %v1081
      %v1083 = vpop.f32.mrb[0].mxu0
      %v1084 = vadd.f32 %v963, %v1083
      %1085 = vmatprep.mubr.bf16.mxu0 %v1035
      %1086 = vmatmul.mubr.bf16.gmra.mrb[0].mxu0 %v1021
      %v1087 = vpop.f32.mrb[0].mxu0
      %v1088 = vadd.f32 %v967, %v1087
      %v1089 = vpop.f32.mrb[0].mxu0
      %v1090 = vadd.f32 %v969, %v1089
      %v1091 = vpop.f32.mrb[0].mxu0
      %v1092 = vadd.f32 %v971, %v1091
      %v1093 = vpop.f32.mrb[0].mxu0
      %v1094 = vadd.f32 %v973, %v1093
      %1095 = vmatprep.mubr.bf16.mxu0 %v1038
      %1096 = vmatmul.mubr.bf16.gmra.mrb[0].mxu0 %v1023
      %v1097 = vpop.f32.mrb[0].mxu0
      %v1098 = vadd.f32 %v977, %v1097
      %v1099 = vpop.f32.mrb[0].mxu0
      %v1100 = vadd.f32 %v979, %v1099
      %v1101 = vpop.f32.mrb[0].mxu0
      %v1102 = vadd.f32 %v981, %v1101
      %v1103 = vpop.f32.mrb[0].mxu0
      %v1104 = vadd.f32 %v983, %v1103
      %1105 = vmatprep.mubr.bf16.mxu0 %v1041
      %1106 = vmatmul.mubr.bf16.gmra.mrb[0].mxu0 %v1025
      %v1107 = vpop.f32.mrb[0].mxu0
      %v1108 = vadd.f32 %v987, %v1107
      %v1109 = vpop.f32.mrb[0].mxu0
      %v1110 = vadd.f32 %v989, %v1109
      %v1111 = vpop.f32.mrb[0].mxu0
      %v1112 = vadd.f32 %v991, %v1111
      %v1113 = vpop.f32.mrb[0].mxu0
      %v1114 = vadd.f32 %v993, %v1113
      %1115 = vdwg.mxu0
      %s1116 = scalar_lea.vmem %s224, 128
      %v1117 = vld [vmem:[%s1116] sm:$0xff]
      %v1118 = vld [vmem:[%s1116 + $0x8] sm:$0xff]
      %v1119 = vld [vmem:[%s1116 + $0x10] sm:$0xff]
      %v1120 = vld [vmem:[%s1116 + $0x18] sm:$0xff]
      %v1121 = vld [vmem:[%s1116 + $0x20] sm:$0xff]
      %v1122 = vld [vmem:[%s1116 + $0x28] sm:$0xff]
      %v1123 = vld [vmem:[%s1116 + $0x30] sm:$0xff]
      %v1124 = vld [vmem:[%s1116 + $0x38] sm:$0xff]
      %v1133 = vunpack.c.l.b16 %v1117
      %v1134 = vunpack.c.h.b16 %v1117
      %v1135 = vunpack.c.l.b16 %v1118
      %v1136 = vunpack.c.h.b16 %v1118
      %v1137 = vunpack.c.l.b16 %v1119
      %v1138 = vunpack.c.h.b16 %v1119
      %v1139 = vunpack.c.l.b16 %v1120
      %v1140 = vunpack.c.h.b16 %v1120
      %v1141 = vunpack.c.l.b16 %v1121
      %v1142 = vunpack.c.h.b16 %v1121
      %v1143 = vunpack.c.l.b16 %v1122
      %v1144 = vunpack.c.h.b16 %v1122
      %v1145 = vunpack.c.l.b16 %v1123
      %v1146 = vunpack.c.h.b16 %v1123
      %v1147 = vunpack.c.l.b16 %v1124
      %v1148 = vunpack.c.h.b16 %v1124
      %v1149 = vpack.c.b16 %v1135, %v1133
      %v1150 = vpack.c.b16 %v1136, %v1134
      %v1151 = vpack.c.b16 %v1139, %v1137
      %v1152 = vpack.c.b16 %v1140, %v1138
      %v1153 = vpack.c.b16 %v1143, %v1141
      %v1154 = vpack.c.b16 %v1144, %v1142
      %v1155 = vpack.c.b16 %v1147, %v1145
      %v1156 = vpack.c.b16 %v1148, %v1146
      %1161 = vrot.lane.b32.xlu0 %v671, 96
      %v1162 = vpop.permute.xlu0 %1161
      %1163 = vrot.lane.b32.xlu0 %v672, 96
      %v1164 = vpop.permute.xlu0 %1163
      %1165 = vrot.lane.b32.xlu0 %v704, 96
      %v1166 = vpop.permute.xlu0 %1165
      %1167 = vrot.lane.b32.xlu0 %v673, 96
      %v1168 = vpop.permute.xlu0 %1167
      %1169 = vrot.lane.b32.xlu0 %v674, 96
      %v1170 = vpop.permute.xlu0 %1169
      %1171 = vrot.lane.b32.xlu0 %v705, 96
      %v1172 = vpop.permute.xlu0 %1171
      %1173 = vrot.lane.b32.xlu0 %v675, 96
      %v1174 = vpop.permute.xlu0 %1173
      %1175 = vrot.lane.b32.xlu0 %v676, 96
      %v1176 = vpop.permute.xlu0 %1175
      %1177 = vrot.lane.b32.xlu0 %v706, 96
      %v1178 = vpop.permute.xlu0 %1177
      %1179 = vrot.lane.b32.xlu0 %v677, 96
      %v1180 = vpop.permute.xlu0 %1179
      %1181 = vrot.lane.b32.xlu0 %v678, 96
      %v1182 = vpop.permute.xlu0 %1181
      %1183 = vrot.lane.b32.xlu0 %v707, 96
      %v1184 = vpop.permute.xlu0 %1183
      %1185 = vrot.lane.b32.xlu0 %v679, 96
      %v1186 = vpop.permute.xlu0 %1185
      %1187 = vrot.lane.b32.xlu0 %v680, 96
      %v1188 = vpop.permute.xlu0 %1187
      %1189 = vrot.lane.b32.xlu0 %v708, 96
      %v1190 = vpop.permute.xlu0 %1189
      %1191 = vrot.lane.b32.xlu0 %v681, 96
      %v1192 = vpop.permute.xlu0 %1191
      %1193 = vrot.lane.b32.xlu0 %v682, 96
      %v1194 = vpop.permute.xlu0 %1193
      %1195 = vrot.lane.b32.xlu0 %v709, 96
      %v1196 = vpop.permute.xlu0 %1195
      %1197 = vrot.lane.b32.xlu0 %v683, 96
      %v1198 = vpop.permute.xlu0 %1197
      %1199 = vrot.lane.b32.xlu0 %v684, 96
      %v1200 = vpop.permute.xlu0 %1199
      %1201 = vrot.lane.b32.xlu0 %v710, 96
      %v1202 = vpop.permute.xlu0 %1201
      %1203 = vrot.lane.b32.xlu0 %v685, 96
      %v1204 = vpop.permute.xlu0 %1203
      %1205 = vrot.lane.b32.xlu0 %v686, 96
      %v1206 = vpop.permute.xlu0 %1205
      %1207 = vrot.lane.b32.xlu0 %v711, 96
      %v1208 = vpop.permute.xlu0 %1207
      %1209 = vrot.lane.b32.xlu0 %v687, 96
      %v1210 = vpop.permute.xlu0 %1209
      %1211 = vrot.lane.b32.xlu0 %v688, 96
      %v1212 = vpop.permute.xlu0 %1211
      %1213 = vrot.lane.b32.xlu0 %v712, 96
      %v1214 = vpop.permute.xlu0 %1213
      %1215 = vrot.lane.b32.xlu0 %v689, 96
      %v1216 = vpop.permute.xlu0 %1215
      %1217 = vrot.lane.b32.xlu0 %v690, 96
      %v1218 = vpop.permute.xlu0 %1217
      %1219 = vrot.lane.b32.xlu0 %v713, 96
      %v1220 = vpop.permute.xlu0 %1219
      %1221 = vrot.lane.b32.xlu0 %v691, 96
      %v1222 = vpop.permute.xlu0 %1221
      %1223 = vrot.lane.b32.xlu0 %v692, 96
      %v1224 = vpop.permute.xlu0 %1223
      %1225 = vrot.lane.b32.xlu0 %v714, 96
      %v1226 = vpop.permute.xlu0 %1225
      %1227 = vrot.lane.b32.xlu0 %v693, 96
      %v1228 = vpop.permute.xlu0 %1227
      %1229 = vrot.lane.b32.xlu0 %v694, 96
      %v1230 = vpop.permute.xlu0 %1229
      %1231 = vrot.lane.b32.xlu0 %v715, 96
      %v1232 = vpop.permute.xlu0 %1231
      %vm1233 = vcmask 785408
      %v1234 = vsel %vm1233, %v1162, %v1164
      %v1235 = vsel %vm1233, %v1164, %v1166
      %v1236 = vsel %vm1233, %v1168, %v1170
      %v1237 = vsel %vm1233, %v1170, %v1172
      %v1238 = vsel %vm1233, %v1174, %v1176
      %v1239 = vsel %vm1233, %v1176, %v1178
      %v1240 = vsel %vm1233, %v1180, %v1182
      %v1241 = vsel %vm1233, %v1182, %v1184
      %v1242 = vsel %vm1233, %v1186, %v1188
      %v1243 = vsel %vm1233, %v1188, %v1190
      %v1244 = vsel %vm1233, %v1192, %v1194
      %v1245 = vsel %vm1233, %v1194, %v1196
      %v1246 = vsel %vm1233, %v1198, %v1200
      %v1247 = vsel %vm1233, %v1200, %v1202
      %v1248 = vsel %vm1233, %v1204, %v1206
      %v1249 = vsel %vm1233, %v1206, %v1208
      %v1250 = vsel %vm1233, %v1210, %v1212
      %v1251 = vsel %vm1233, %v1212, %v1214
      %v1252 = vsel %vm1233, %v1216, %v1218
      %v1253 = vsel %vm1233, %v1218, %v1220
      %v1254 = vsel %vm1233, %v1222, %v1224
      %v1255 = vsel %vm1233, %v1224, %v1226
      %v1256 = vsel %vm1233, %v1228, %v1230
      %v1257 = vsel %vm1233, %v1230, %v1232
      %v1283 = vsel %vm909, %v1150, 0
      %v1286 = vsel %vm909, %v1152, 0
      %v1289 = vsel %vm909, %v1154, 0
      %v1292 = vsel %vm909, %v1156, 0
      %1294 = vmatprep.subr.bf16.mxu0 %v1235
      %1295 = vmatpush1.bf16.msra.mxu0 %v1234
      %1296 = vmatprep.subr.bf16.mxu0 %v1237
      %1297 = vmatpush1.bf16.msra.mxu0 %v1236
      %1298 = vmatprep.subr.bf16.mxu0 %v1239
      %1299 = vmatpush1.bf16.msra.mxu0 %v1238
      %1300 = vmatprep.subr.bf16.mxu0 %v1241
      %1301 = vmatpush1.bf16.msra.mxu0 %v1240
      %1302 = vmatprep.subr.bf16.mxu0 %v1243
      %1303 = vmatpush1.bf16.msra.mxu0 %v1242
      %1304 = vmatprep.subr.bf16.mxu0 %v1245
      %1305 = vmatpush1.bf16.msra.mxu0 %v1244
      %1306 = vmatprep.subr.bf16.mxu0 %v1247
      %1307 = vmatpush1.bf16.msra.mxu0 %v1246
      %1308 = vmatprep.subr.bf16.mxu0 %v1249
      %1309 = vmatpush1.bf16.msra.mxu0 %v1248
      %1310 = vmatprep.subr.bf16.mxu0 %v1251
      %1311 = vmatpush1.bf16.msra.mxu0 %v1250
      %1312 = vmatprep.subr.bf16.mxu0 %v1253
      %1313 = vmatpush1.bf16.msra.mxu0 %v1252
      %1314 = vmatprep.subr.bf16.mxu0 %v1255
      %1315 = vmatpush1.bf16.msra.mxu0 %v1254
      %1316 = vmatprep.subr.bf16.mxu0 %v1257
      %1317 = vmatpush1.bf16.msra.mxu0 %v1256
      %1318 = vmatprep.subr.bf16.mxu0 0
      %1319 = vmatpush1.bf16.msra.mxu0 0
      %1320 = vmatprep.subr.bf16.mxu0 0
      %1321 = vmatpush1.bf16.msra.mxu0 0
      %1322 = vmatprep.subr.bf16.mxu0 0
      %1323 = vmatpush1.bf16.msra.mxu0 0
      %1324 = vmatprep.subr.bf16.mxu0 0
      %1325 = vmatpush1.bf16.msra.mxu0 0
      %1326 = vmatprep.mubr.bf16.mxu0 %v1283
      %1327 = vmatmul.mubr.bf16.gmra.mrb[0].mxu0 %v1149
      %v1328 = vpop.f32.mrb[0].mxu0
      %v1329 = vadd.f32 0.0, %v1328
      %v1330 = vpop.f32.mrb[0].mxu0
      %v1331 = vadd.f32 0.0, %v1330
      %v1332 = vpop.f32.mrb[0].mxu0
      %v1333 = vadd.f32 0.0, %v1332
      %v1334 = vpop.f32.mrb[0].mxu0
      %v1335 = vadd.f32 0.0, %v1334
      %1336 = vmatprep.mubr.bf16.mxu0 %v1286
      %1337 = vmatmul.mubr.bf16.gmra.mrb[0].mxu0 %v1151
      %v1338 = vpop.f32.mrb[0].mxu0
      %v1339 = vadd.f32 0.0, %v1338
      %v1340 = vpop.f32.mrb[0].mxu0
      %v1341 = vadd.f32 0.0, %v1340
      %v1342 = vpop.f32.mrb[0].mxu0
      %v1343 = vadd.f32 0.0, %v1342
      %v1344 = vpop.f32.mrb[0].mxu0
      %v1345 = vadd.f32 0.0, %v1344
      %1346 = vmatprep.mubr.bf16.mxu0 %v1289
      %1347 = vmatmul.mubr.bf16.gmra.mrb[0].mxu0 %v1153
      %v1348 = vpop.f32.mrb[0].mxu0
      %v1349 = vadd.f32 0.0, %v1348
      %v1350 = vpop.f32.mrb[0].mxu0
      %v1351 = vadd.f32 0.0, %v1350
      %v1352 = vpop.f32.mrb[0].mxu0
      %v1353 = vadd.f32 0.0, %v1352
      %v1354 = vpop.f32.mrb[0].mxu0
      %v1355 = vadd.f32 0.0, %v1354
      %1356 = vmatprep.mubr.bf16.mxu0 %v1292
      %1357 = vmatmul.mubr.bf16.gmra.mrb[0].mxu0 %v1155
      %v1358 = vpop.f32.mrb[0].mxu0
      %v1359 = vadd.f32 0.0, %v1358
      %v1360 = vpop.f32.mrb[0].mxu0
      %v1361 = vadd.f32 0.0, %v1360
      %v1362 = vpop.f32.mrb[0].mxu0
      %v1363 = vadd.f32 0.0, %v1362
      %v1364 = vpop.f32.mrb[0].mxu0
      %v1365 = vadd.f32 0.0, %v1364
      %1366 = vdwg.mxu0
      %v1367 = vadd.f32 %v1078, %v1329
      %v1368 = vadd.f32 %v1080, %v1331
      %v1369 = vadd.f32 %v1082, %v1333
      %v1370 = vadd.f32 %v1084, %v1335
      %v1371 = vadd.f32 %v1088, %v1339
      %v1372 = vadd.f32 %v1090, %v1341
      %v1373 = vadd.f32 %v1092, %v1343
      %v1374 = vadd.f32 %v1094, %v1345
      %v1375 = vadd.f32 %v1098, %v1349
      %v1376 = vadd.f32 %v1100, %v1351
      %v1377 = vadd.f32 %v1102, %v1353
      %v1378 = vadd.f32 %v1104, %v1355
      %v1379 = vadd.f32 %v1108, %v1359
      %v1380 = vadd.f32 %v1110, %v1361
      %v1381 = vadd.f32 %v1112, %v1363
      %v1382 = vadd.f32 %v1114, %v1365
      %v1383 = vld [vmem:[%s230] sm:$0xff]
      %v1384 = vld [vmem:[%s230 + $0x8] sm:$0xff]
      %v1385 = vld [vmem:[%s230 + $0x10] sm:$0xff]
      %v1386 = vld [vmem:[%s230 + $0x18] sm:$0xff]
      %v1387 = vld [vmem:[%s230 + $0x20] sm:$0xff]
      %v1388 = vld [vmem:[%s230 + $0x28] sm:$0xff]
      %v1389 = vld [vmem:[%s230 + $0x30] sm:$0xff]
      %v1390 = vld [vmem:[%s230 + $0x38] sm:$0xff]
      %1392 = vset.pattern.permute.xlu0 0
      %1393 = vperm.xlu0 %1392, %v1383
      %v1394 = vpop.permute.xlu0 %1393
      %1397 = vset.pattern.permute.xlu0 0
      %1398 = vperm.xlu0 %1397, %v1384
      %v1399 = vpop.permute.xlu0 %1398
      %1402 = vset.pattern.permute.xlu0 0
      %1403 = vperm.xlu0 %1402, %v1385
      %v1404 = vpop.permute.xlu0 %1403
      %1407 = vset.pattern.permute.xlu0 0
      %1408 = vperm.xlu0 %1407, %v1386
      %v1409 = vpop.permute.xlu0 %1408
      %1412 = vset.pattern.permute.xlu0 0
      %1413 = vperm.xlu0 %1412, %v1387
      %v1414 = vpop.permute.xlu0 %1413
      %1417 = vset.pattern.permute.xlu0 0
      %1418 = vperm.xlu0 %1417, %v1388
      %v1419 = vpop.permute.xlu0 %1418
      %1422 = vset.pattern.permute.xlu0 0
      %1423 = vperm.xlu0 %1422, %v1389
      %v1424 = vpop.permute.xlu0 %1423
      %1427 = vset.pattern.permute.xlu0 0
      %1428 = vperm.xlu0 %1427, %v1390
      %v1429 = vpop.permute.xlu0 %1428
      %v1431 = vadd.f32 %v1367, %v1394
      %v1432 = vadd.f32 %v1368, %v1394
      %v1433 = vadd.f32 %v1369, %v1399
      %v1434 = vadd.f32 %v1370, %v1399
      %v1435 = vadd.f32 %v1371, %v1404
      %v1436 = vadd.f32 %v1372, %v1404
      %v1437 = vadd.f32 %v1373, %v1409
      %v1438 = vadd.f32 %v1374, %v1409
      %v1439 = vadd.f32 %v1375, %v1414
      %v1440 = vadd.f32 %v1376, %v1414
      %v1441 = vadd.f32 %v1377, %v1419
      %v1442 = vadd.f32 %v1378, %v1419
      %v1443 = vadd.f32 %v1379, %v1424
      %v1444 = vadd.f32 %v1380, %v1424
      %v1445 = vadd.f32 %v1381, %v1429
      %v1446 = vadd.f32 %v1382, %v1429
      %vm1447 = vcmp.ge.f32.partialorder %v1431, 0.0
      %vm1448 = vcmp.ge.f32.partialorder %v1432, 0.0
      %vm1449 = vcmp.ge.f32.partialorder %v1433, 0.0
      %vm1450 = vcmp.ge.f32.partialorder %v1434, 0.0
      %vm1451 = vcmp.ge.f32.partialorder %v1435, 0.0
      %vm1452 = vcmp.ge.f32.partialorder %v1436, 0.0
      %vm1453 = vcmp.ge.f32.partialorder %v1437, 0.0
      %vm1454 = vcmp.ge.f32.partialorder %v1438, 0.0
      %vm1455 = vcmp.ge.f32.partialorder %v1439, 0.0
      %vm1456 = vcmp.ge.f32.partialorder %v1440, 0.0
      %vm1457 = vcmp.ge.f32.partialorder %v1441, 0.0
      %vm1458 = vcmp.ge.f32.partialorder %v1442, 0.0
      %vm1459 = vcmp.ge.f32.partialorder %v1443, 0.0
      %vm1460 = vcmp.ge.f32.partialorder %v1444, 0.0
      %vm1461 = vcmp.ge.f32.partialorder %v1445, 0.0
      %vm1462 = vcmp.ge.f32.partialorder %v1446, 0.0
      %v1463 = vmul.f32 %v1431, 0.2
      %v1464 = vmul.f32 %v1432, 0.2
      %v1465 = vmul.f32 %v1433, 0.2
      %v1466 = vmul.f32 %v1434, 0.2
      %v1467 = vmul.f32 %v1435, 0.2
      %v1468 = vmul.f32 %v1436, 0.2
      %v1469 = vmul.f32 %v1437, 0.2
      %v1470 = vmul.f32 %v1438, 0.2
      %v1471 = vmul.f32 %v1439, 0.2
      %v1472 = vmul.f32 %v1440, 0.2
      %v1473 = vmul.f32 %v1441, 0.2
      %v1474 = vmul.f32 %v1442, 0.2
      %v1475 = vmul.f32 %v1443, 0.2
      %v1476 = vmul.f32 %v1444, 0.2
      %v1477 = vmul.f32 %v1445, 0.2
      %v1478 = vmul.f32 %v1446, 0.2
      %v1479 = vsel %vm1447, %v1431, %v1463
      %v1480 = vsel %vm1448, %v1432, %v1464
      %v1481 = vsel %vm1449, %v1433, %v1465
      %v1482 = vsel %vm1450, %v1434, %v1466
      %v1483 = vsel %vm1451, %v1435, %v1467
      %v1484 = vsel %vm1452, %v1436, %v1468
      %v1485 = vsel %vm1453, %v1437, %v1469
      %v1486 = vsel %vm1454, %v1438, %v1470
      %v1487 = vsel %vm1455, %v1439, %v1471
      %v1488 = vsel %vm1456, %v1440, %v1472
      %v1489 = vsel %vm1457, %v1441, %v1473
      %v1490 = vsel %vm1458, %v1442, %v1474
      %v1491 = vsel %vm1459, %v1443, %v1475
      %v1492 = vsel %vm1460, %v1444, %v1476
      %v1493 = vsel %vm1461, %v1445, %v1477
      %v1494 = vsel %vm1462, %v1446, %v1478
      %v1495 = vpack.c.bf16 %v1481, %v1479
      %v1496 = vpack.c.bf16 %v1482, %v1480
      %v1497 = vpack.c.bf16 %v1485, %v1483
      %v1498 = vpack.c.bf16 %v1486, %v1484
      %v1499 = vpack.c.bf16 %v1489, %v1487
      %v1500 = vpack.c.bf16 %v1490, %v1488
      %v1501 = vpack.c.bf16 %v1493, %v1491
      %v1502 = vpack.c.bf16 %v1494, %v1492
      %v1511 = vunpack.c.l.b16 %v1495
      %v1512 = vunpack.c.l.b16 %v1496
      %v1513 = vunpack.c.h.b16 %v1495
      %v1514 = vunpack.c.h.b16 %v1496
      %v1515 = vunpack.c.l.b16 %v1497
      %v1516 = vunpack.c.l.b16 %v1498
      %v1517 = vunpack.c.h.b16 %v1497
      %v1518 = vunpack.c.h.b16 %v1498
      %v1519 = vunpack.c.l.b16 %v1499
      %v1520 = vunpack.c.l.b16 %v1500
      %v1521 = vunpack.c.h.b16 %v1499
      %v1522 = vunpack.c.h.b16 %v1500
      %v1523 = vunpack.c.l.b16 %v1501
      %v1524 = vunpack.c.l.b16 %v1502
      %v1525 = vunpack.c.h.b16 %v1501
      %v1526 = vunpack.c.h.b16 %v1502
      %v1527 = vpack.c.b16 %v1512, %v1511
      %v1528 = vpack.c.b16 %v1514, %v1513
      %v1529 = vpack.c.b16 %v1516, %v1515
      %v1530 = vpack.c.b16 %v1518, %v1517
      %v1531 = vpack.c.b16 %v1520, %v1519
      %v1532 = vpack.c.b16 %v1522, %v1521
      %v1533 = vpack.c.b16 %v1524, %v1523
      %v1534 = vpack.c.b16 %v1526, %v1525
      %1543 = vst [vmem:[%s241] sm:$0xff] %v1527
      %1544 = vst [vmem:[%s241 + $0x8] sm:$0xff] %v1528
      %1545 = vst [vmem:[%s241 + $0x10] sm:$0xff] %v1529
      %1546 = vst [vmem:[%s241 + $0x18] sm:$0xff] %v1530
      %1547 = vst [vmem:[%s241 + $0x20] sm:$0xff] %v1531
      %1548 = vst [vmem:[%s241 + $0x28] sm:$0xff] %v1532
      %1549 = vst [vmem:[%s241 + $0x30] sm:$0xff] %v1533
      %1550 = vst [vmem:[%s241 + $0x38] sm:$0xff] %v1534
      %s1551 = smul.u32 8, %s19
      %p1552 = scmp.lt.s32.totalorder %s18, 1
      %s1553 = scalar_select %p1552, %s18, 1
      %p1554 = scmp.lt.s32.totalorder %s1551, 7
      %s1555 = scalar_select %p1554, %s1551, 7
      %s1556 = smul.addr %s1555, 2
      %s1557 = smul.addr %s1553, 16
      %s1558 = sadd.s32 %s1556, %s1557
      %s1559 = smul.addr %s1558, 4
      %s1560 = scalar_lea.vmem %s3, %s1559
      // Predicated region
      $region33: #{resblock_forward.2} parent=31 // pred_check
        %p1561 = pneg %p124
      $region34: #{resblock_forward.2} parent=31 // pred_check_branch
        %1563 = sbr.rel (%p1561) target = $region36
      $region35: #{resblock_forward.2} parent=31 // pred_region
        %s1564 = smul.u32 8, %s19
      $region36: #{resblock_forward.2} parent=31 // pred_fallthru
        _
    $region32: #{resblock_forward.2} parent=5 // pred_fallthru
      _
    %p1565 = scmp.le.s32.totalorder 2, %s9
    // Predicated region
    $region37: #{resblock_forward.2} parent=5 // pred_check
      %p1566 = pneg %p1565
    $region38: #{resblock_forward.2} parent=5 // pred_check_branch
      %1568 = sbr.rel (%p1566) target = $region40
    $region39: #{resblock_forward.2} parent=5 // pred_region
      %s1569 = ssub.s32 %s9, 2
      // Predicated region
      $region41: #{resblock_forward.2} parent=39 // pred_check
        %p1570 = pneg %p130
      $region42: #{resblock_forward.2} parent=39 // pred_check_branch
        %1572 = sbr.rel (%p1570) target = $region44
      $region43: #{resblock_forward.2} parent=39 // pred_region
        %s1573 = smul.u32 8, %s21
        %p1574 = scmp.lt.s32.totalorder %s20, 1
        %s1575 = scalar_select %p1574, %s20, 1
        %p1576 = scmp.lt.s32.totalorder %s1573, 7
        %s1577 = scalar_select %p1576, %s1573, 7
        %s1578 = smul.addr %s1577, 2
        %s1579 = smul.addr %s1575, 16
        %s1580 = sadd.s32 %s1578, %s1579
        %s1581 = smul.addr %s1580, 4
        %s1582 = scalar_lea.vmem %s3, %s1581
      $region44: #{resblock_forward.2} parent=39 // pred_fallthru
        _
    $region40: #{resblock_forward.2} parent=5 // pred_fallthru
      _
  $region6: #{resblock_forward.2} parent=0 // loop_footer
    %s13 = sadd.s32 1, %s9
  $region7: #{resblock_forward.2} parent=0 // loop_footer_branch
    %8 = sbr.rel target = $region3
  $region8: #{resblock_forward.2} parent=0 // loop_exit
    _

// kernel: resblock_forward.3
$region0: #{resblock_forward.3}
  #allocation0 [shape = 'u32[]', space=smem, size = 0x4, offset = 0x4, fixed_abs, tag = 'smem constant byte address 0x4 - core index']
  #allocation1 [shape = 'u32[144,128]{1,0:T(1,128)}', space=vmem, size = 0x12000, scoped, tag = 'internal scratch']
  #allocation2 [shape = 'bf16[768,80]{1,0:T(16,128)(2,1)}', space=vmem, size = 0x30000, scoped, tag = 'scratch operand']
  %s0 = inlined_call_operand.vmem [shape: bf16[2,4,64,82], index: 0, kind: input, shape index: {}]
  %s1 = inlined_call_operand.vmem [shape: bf16[2,4,64,82], index: 1, kind: input, shape index: {}]
  %s2 = inlined_call_operand.vmem [shape: bf16[3,128,768], index: 2, kind: input, shape index: {}]
  %s3 = inlined_call_operand.vmem [shape: bf16[128,64], index: 3, kind: input, shape index: {}]
  %s4 = inlined_call_operand.vmem [shape: f32[128,1], index: 4, kind: input, shape index: {}]
  %s5 = inlined_call_operand.vmem [shape: f32[2,128,64], index: 5, kind: output, shape index: {}]
  %s6 = sld [smem:[#allocation0]]
  $region53: #{resblock_forward.3} parent=0
    _
  %s8 = ssub.s32 1, %s6
  %s9 = scalar_select 0, %s8, %s6
  loop: start=0, step=1, limit=4
  $region2: #{resblock_forward.3} parent=0 // loop_pre_header
    _
  $region3: #{resblock_forward.3} parent=0 // loop_header
    %s11 = sphi 0, %s15
    %p12 = scmp.ge.s32.totalorder %s11, 4
    %s18 = sphi 0, %s30
    %s19 = sphi 0, %s26
    %s20 = sphi 0, %s18
    %s21 = sphi 0, %s19
    %s22 = sphi 0, %s20
    %s23 = sphi 0, %s21
    %s33 = sphi 0, %s35
    %s36 = sphi 0, %s33
    %s37 = sphi 0, %s36
    %s53 = sphi 0, %s37
    %s59 = sphi 0, %s61
    %s62 = sphi 0, %s59
    %s63 = sphi 0, %s62
    %s79 = sphi 0, %s63
    %s85 = sphi 0, %s87
    %s88 = sphi 0, %s85
    %s89 = sphi 0, %s88
    %s105 = sphi 0, %s89
    %s111 = sphi 0, %s113
    %s114 = sphi 0, %s111
    %s115 = sphi 0, %s114
    %s131 = sphi 0, %s115
    %s137 = sphi 0, %s139
    %s140 = sphi 0, %s137
    %s141 = sphi 0, %s140
    %s157 = sphi 0, %s141
    %s165 = sphi 0, %s167
    %s168 = sphi 0, %s165
    %s169 = sphi 0, %s168
    %s185 = sphi 0, %s169
  $region4: #{resblock_forward.3} parent=0 // loop_header_branch
    %14 = sbr.rel (%p12) target = $region8
  $region5: #{resblock_forward.3} parent=0 // loop_body
    %s16 = ssub.s32 %s11, 1
    %s17 = ssub.s32 %s11, 2
    %s24 = sadd.s32 1, %s19
    %p25 = scmp.ge.s32.totalorder %s24, 1
    %s26 = scalar_select %p25, 0, %s24
    %s27 = sadd.s32 1, %s18
    %s28 = scalar_select %p25, %s27, %s18
    %p29 = scmp.ge.s32.totalorder %s28, 2
    %s30 = scalar_select %p29, 0, %s28
    %s31 = ssub.s32 %s18, %s30
    %p32 = scmp.eq.s32.totalorder %s31, 0
    %s34 = sadd.s32 %s33, 1
    %s35 = scalar_select %p32, %s33, %s34
    %p38 = pneg %p32
    %p39 = scmp.eq.s32.totalorder %s11, 1
    %p40 = por %p38, %p39
    %p41 = scmp.ne.s32.totalorder %s33, %s36
    %p42 = scmp.eq.s32.totalorder %s11, 0
    %p43 = por %p41, %p42
    %p44 = scmp.ne.s32.totalorder %s33, %s36
    %p45 = scmp.eq.s32.totalorder %s16, 1
    %p46 = por %p44, %p45
    %p47 = scmp.ne.s32.totalorder %s36, %s37
    %p48 = scmp.eq.s32.totalorder %s16, 0
    %p49 = por %p47, %p48
    %p50 = scmp.ne.s32.totalorder %s36, %s37
    %p51 = scmp.eq.s32.totalorder %s17, 1
    %p52 = por %p50, %p51
    %p54 = scmp.ne.s32.totalorder %s37, %s53
    %p55 = scmp.eq.s32.totalorder %s17, 0
    %p56 = por %p54, %p55
    %s57 = ssub.s32 %s18, %s30
    %p58 = scmp.eq.s32.totalorder %s57, 0
    %s60 = sadd.s32 %s59, 1
    %s61 = scalar_select %p58, %s59, %s60
    %p64 = pneg %p58
    %p65 = scmp.eq.s32.totalorder %s11, 1
    %p66 = por %p64, %p65
    %p67 = scmp.ne.s32.totalorder %s59, %s62
    %p68 = scmp.eq.s32.totalorder %s11, 0
    %p69 = por %p67, %p68
    %p70 = scmp.ne.s32.totalorder %s59, %s62
    %p71 = scmp.eq.s32.totalorder %s16, 1
    %p72 = por %p70, %p71
    %p73 = scmp.ne.s32.totalorder %s62, %s63
    %p74 = scmp.eq.s32.totalorder %s16, 0
    %p75 = por %p73, %p74
    %p76 = scmp.ne.s32.totalorder %s62, %s63
    %p77 = scmp.eq.s32.totalorder %s17, 1
    %p78 = por %p76, %p77
    %p80 = scmp.ne.s32.totalorder %s63, %s79
    %p81 = scmp.eq.s32.totalorder %s17, 0
    %p82 = por %p80, %p81
    %s83 = ssub.s32 %s19, %s26
    %p84 = scmp.eq.s32.totalorder %s83, 0
    %s86 = sadd.s32 %s85, 1
    %s87 = scalar_select %p84, %s85, %s86
    %p90 = pneg %p84
    %p91 = scmp.eq.s32.totalorder %s11, 1
    %p92 = por %p90, %p91
    %p93 = scmp.ne.s32.totalorder %s85, %s88
    %p94 = scmp.eq.s32.totalorder %s11, 0
    %p95 = por %p93, %p94
    %p96 = scmp.ne.s32.totalorder %s85, %s88
    %p97 = scmp.eq.s32.totalorder %s16, 1
    %p98 = por %p96, %p97
    %p99 = scmp.ne.s32.totalorder %s88, %s89
    %p100 = scmp.eq.s32.totalorder %s16, 0
    %p101 = por %p99, %p100
    %p102 = scmp.ne.s32.totalorder %s88, %s89
    %p103 = scmp.eq.s32.totalorder %s17, 1
    %p104 = por %p102, %p103
    %p106 = scmp.ne.s32.totalorder %s89, %s105
    %p107 = scmp.eq.s32.totalorder %s17, 0
    %p108 = por %p106, %p107
    %s109 = ssub.s32 %s19, %s26
    %p110 = scmp.eq.s32.totalorder %s109, 0
    %s112 = sadd.s32 %s111, 1
    %s113 = scalar_select %p110, %s111, %s112
    %p116 = pneg %p110
    %p117 = scmp.eq.s32.totalorder %s11, 1
    %p118 = por %p116, %p117
    %p119 = scmp.ne.s32.totalorder %s111, %s114
    %p120 = scmp.eq.s32.totalorder %s11, 0
    %p121 = por %p119, %p120
    %p122 = scmp.ne.s32.totalorder %s111, %s114
    %p123 = scmp.eq.s32.totalorder %s16, 1
    %p124 = por %p122, %p123
    %p125 = scmp.ne.s32.totalorder %s114, %s115
    %p126 = scmp.eq.s32.totalorder %s16, 0
    %p127 = por %p125, %p126
    %p128 = scmp.ne.s32.totalorder %s114, %s115
    %p129 = scmp.eq.s32.totalorder %s17, 1
    %p130 = por %p128, %p129
    %p132 = scmp.ne.s32.totalorder %s115, %s131
    %p133 = scmp.eq.s32.totalorder %s17, 0
    %p134 = por %p132, %p133
    %s135 = ssub.s32 %s19, %s26
    %p136 = scmp.eq.s32.totalorder %s135, 0
    %s138 = sadd.s32 %s137, 1
    %s139 = scalar_select %p136, %s137, %s138
    %p142 = pneg %p136
    %p143 = scmp.eq.s32.totalorder %s11, 1
    %p144 = por %p142, %p143
    %p145 = scmp.ne.s32.totalorder %s137, %s140
    %p146 = scmp.eq.s32.totalorder %s11, 0
    %p147 = por %p145, %p146
    %p148 = scmp.ne.s32.totalorder %s137, %s140
    %p149 = scmp.eq.s32.totalorder %s16, 1
    %p150 = por %p148, %p149
    %p151 = scmp.ne.s32.totalorder %s140, %s141
    %p152 = scmp.eq.s32.totalorder %s16, 0
    %p153 = por %p151, %p152
    %p154 = scmp.ne.s32.totalorder %s140, %s141
    %p155 = scmp.eq.s32.totalorder %s17, 1
    %p156 = por %p154, %p155
    %p158 = scmp.ne.s32.totalorder %s141, %s157
    %p159 = scmp.eq.s32.totalorder %s17, 0
    %p160 = por %p158, %p159
    %s161 = ssub.s32 %s18, %s30
    %s162 = ssub.s32 %s19, %s26
    %s163 = sor.u32 %s161, %s162
    %p164 = scmp.eq.s32.totalorder %s163, 0
    %s166 = sadd.s32 %s165, 1
    %s167 = scalar_select %p164, %s165, %s166
    %p170 = pneg %p164
    %p171 = scmp.eq.s32.totalorder %s11, 1
    %p172 = por %p170, %p171
    %p173 = scmp.ne.s32.totalorder %s165, %s168
    %p174 = scmp.eq.s32.totalorder %s11, 0
    %p175 = por %p173, %p174
    %p176 = scmp.ne.s32.totalorder %s165, %s168
    %p177 = scmp.eq.s32.totalorder %s16, 1
    %p178 = por %p176, %p177
    %p179 = scmp.ne.s32.totalorder %s168, %s169
    %p180 = scmp.eq.s32.totalorder %s16, 0
    %p181 = por %p179, %p180
    %p182 = scmp.ne.s32.totalorder %s168, %s169
    %p183 = scmp.eq.s32.totalorder %s17, 1
    %p184 = por %p182, %p183
    %p186 = scmp.ne.s32.totalorder %s169, %s185
    %p187 = scmp.eq.s32.totalorder %s17, 0
    %p188 = por %p186, %p187
    %p189 = scmp.le.s32.totalorder 1, %s11
    %p190 = scmp.lt.s32.totalorder %s11, 3
    %p191 = pnand %p189, %p190
    %p192 = pneg %p191
    // Predicated region
    $region9: #{resblock_forward.3} parent=5 // pred_check
      _
    $region10: #{resblock_forward.3} parent=5 // pred_check_branch
      %194 = sbr.rel (%p191) target = $region12
    $region11: #{resblock_forward.3} parent=5 // pred_region
      %s195 = ssub.s32 %s11, 1
      // Predicated region
      $region13: #{resblock_forward.3} parent=11 // pred_check
        %p196 = pneg %p101
      $region14: #{resblock_forward.3} parent=11 // pred_check_branch
        %198 = sbr.rel (%p196) target = $region16
      $region15: #{resblock_forward.3} parent=11 // pred_region
        %s199 = smul.u32 16, %s21
        %p200 = scmp.lt.s32.totalorder %s199, 15
        %s201 = scalar_select %p200, %s199, 15
        %s202 = smul.addr %s201, 6
        %s203 = smul.addr %s202, 4
        %s204 = scalar_lea.vmem %s2, %s203
        %s205 = smul.u32 16, %s21
      $region16: #{resblock_forward.3} parent=11 // pred_fallthru
        _
      // Predicated region
      $region17: #{resblock_forward.3} parent=11 // pred_check
        %p206 = pneg %p127
      $region18: #{resblock_forward.3} parent=11 // pred_check_branch
        %208 = sbr.rel (%p206) target = $region20
      $region19: #{resblock_forward.3} parent=11 // pred_region
        %s209 = smul.u32 16, %s21
        %p210 = scmp.lt.s32.totalorder %s209, 15
        %s211 = scalar_select %p210, %s209, 15
        %s212 = smul.addr %s211, 4
        %s213 = scalar_lea.vmem %s3, %s212
        %s214 = smul.u32 16, %s21
      $region20: #{resblock_forward.3} parent=11 // pred_fallthru
        _
      // Predicated region
      $region21: #{resblock_forward.3} parent=11 // pred_check
        %p215 = pneg %p153
      $region22: #{resblock_forward.3} parent=11 // pred_check_branch
        %217 = sbr.rel (%p215) target = $region24
      $region23: #{resblock_forward.3} parent=11 // pred_region
        %s218 = smul.u32 16, %s21
        %p219 = scmp.lt.s32.totalorder %s218, 15
        %s220 = scalar_select %p219, %s218, 15
        %s221 = smul.addr %s220, 8
        %s222 = scalar_lea.vmem %s4, %s221
        %s223 = smul.u32 16, %s21
      $region24: #{resblock_forward.3} parent=11 // pred_fallthru
        _
    $region12: #{resblock_forward.3} parent=5 // pred_fallthru
      _
    %p224 = scmp.lt.s32.totalorder %s11, 2
    // Predicated region
    $region25: #{resblock_forward.3} parent=5 // pred_check
      %p225 = pneg %p224
    $region26: #{resblock_forward.3} parent=5 // pred_check_branch
      %227 = sbr.rel (%p225) target = $region28
    $region27: #{resblock_forward.3} parent=5 // pred_region
      // Predicated region
      $region29: #{resblock_forward.3} parent=27 // pred_check
        %p228 = pneg %p43
      $region30: #{resblock_forward.3} parent=27 // pred_check_branch
        %230 = sbr.rel (%p228) target = $region32
      $region31: #{resblock_forward.3} parent=27 // pred_region
        %p231 = scmp.lt.s32.totalorder %s18, 1
        %s232 = scalar_select %p231, %s18, 1
        %s233 = smul.addr %s232, 32
        %s234 = smul.addr %s233, 4
        %s235 = scalar_lea.vmem %s0, %s234
      $region32: #{resblock_forward.3} parent=27 // pred_fallthru
        _
      // Predicated region
      $region33: #{resblock_forward.3} parent=27 // pred_check
        %p236 = pneg %p69
      $region34: #{resblock_forward.3} parent=27 // pred_check_branch
        %238 = sbr.rel (%p236) target = $region36
      $region35: #{resblock_forward.3} parent=27 // pred_region
        %p239 = scmp.lt.s32.totalorder %s18, 1
        %s240 = scalar_select %p239, %s18, 1
        %s241 = smul.addr %s240, 32
        %s242 = smul.addr %s241, 4
        %s243 = scalar_lea.vmem %s1, %s242
      $region36: #{resblock_forward.3} parent=27 // pred_fallthru
        _
    $region28: #{resblock_forward.3} parent=5 // pred_fallthru
      _
    %p244 = scmp.le.s32.totalorder 1, %s11
    %p245 = scmp.lt.s32.totalorder %s11, 3
    %p246 = pnand %p244, %p245
    %p247 = pneg %p246
    // Predicated region
    $region37: #{resblock_forward.3} parent=5 // pred_check
      _
    $region38: #{resblock_forward.3} parent=5 // pred_check_branch
      %249 = sbr.rel (%p246) target = $region40
    $region39: #{resblock_forward.3} parent=5 // pred_region
      %s250 = ssub.s32 %s11, 1
      %p251 = scmp.lt.s32.totalorder %s20, 1
      %s252 = scalar_select %p251, %s20, 1
      %s253 = smul.addr %s252, 32
      %s254 = smul.addr %s253, 4
      %s255 = scalar_lea.vmem %s0, %s254
      %p256 = pneg %p49
      %p257 = pneg %p46
      %p258 = scmp.lt.s32.totalorder %s20, 1
      %s259 = scalar_select %p258, %s20, 1
      %s260 = smul.addr %s259, 32
      %s261 = smul.addr %s260, 4
      %s262 = scalar_lea.vmem %s1, %s261
      %p263 = pneg %p75
      %p264 = pneg %p72
      %s265 = smul.u32 16, %s21
      %p266 = scmp.lt.s32.totalorder %s265, 15
      %s267 = scalar_select %p266, %s265, 15
      %s268 = smul.addr %s267, 6
      %s269 = smul.addr %s268, 4
      %s270 = scalar_lea.vmem %s2, %s269
      %p271 = pneg %p101
      %p272 = pneg %p98
      %s273 = smul.u32 16, %s21
      %p274 = scmp.lt.s32.totalorder %s273, 15
      %s275 = scalar_select %p274, %s273, 15
      %s276 = smul.addr %s275, 4
      %s277 = scalar_lea.vmem %s3, %s276
      %p278 = pneg %p127
      %p279 = pneg %p124
      %s280 = smul.u32 16, %s21
      %p281 = scmp.lt.s32.totalorder %s280, 15
      %s282 = scalar_select %p281, %s280, 15
      %s283 = smul.addr %s282, 8
      %s284 = scalar_lea.vmem %s4, %s283
      %p285 = pneg %p153
      %p286 = pneg %p150
      %p287 = pneg %p181
      %p288 = pneg %p178
      %s289 = smul.u32 16, %s21
      %p290 = scmp.lt.s32.totalorder %s20, 1
      %s291 = scalar_select %p290, %s20, 1
      %p292 = scmp.lt.s32.totalorder %s289, 15
      %s293 = scalar_select %p292, %s289, 15
      %s294 = smul.addr %s291, 16
      %s295 = sadd.s32 %s293, %s294
      %s296 = smul.addr %s295, 8
      %s297 = scalar_lea.vmem %s5, %s296
      %p298 = scmp.lt.s32.totalorder %s20, 1
      %s299 = scalar_select %p298, %s20, 1
      %s300 = smul.addr %s299, 32
      %s301 = smul.addr %s300, 4
      %s302 = scalar_lea.vmem %s0, %s301
      %p303 = scmp.lt.s32.totalorder %s20, 1
      %s304 = scalar_select %p303, %s20, 1
      %s305 = smul.addr %s304, 32
      %s306 = smul.addr %s305, 4
      %s307 = scalar_lea.vmem %s1, %s306
      %s308 = smul.u32 16, %s21
      %p309 = scmp.lt.s32.totalorder %s308, 15
      %s310 = scalar_select %p309, %s308, 15
      %s311 = smul.addr %s310, 6
      %s312 = smul.addr %s311, 4
      %s313 = scalar_lea.vmem %s2, %s312
      %s314 = smul.u32 16, %s21
      %s315 = smul.u32 16, %s21
      %p316 = scmp.lt.s32.totalorder %s315, 15
      %s317 = scalar_select %p316, %s315, 15
      %s318 = smul.addr %s317, 4
      %s319 = scalar_lea.vmem %s3, %s318
      %s320 = smul.u32 16, %s21
      %s321 = smul.u32 16, %s21
      %p322 = scmp.lt.s32.totalorder %s321, 15
      %s323 = scalar_select %p322, %s321, 15
      %s324 = smul.addr %s323, 8
      %s325 = scalar_lea.vmem %s4, %s324
      %s326 = smul.u32 16, %s21
      %s327 = smul.u32 16, %s21
      %p328 = scmp.lt.s32.totalorder %s20, 1
      %s329 = scalar_select %p328, %s20, 1
      %p330 = scmp.lt.s32.totalorder %s327, 15
      %s331 = scalar_select %p330, %s327, 15
      %s332 = smul.addr %s329, 16
      %s333 = sadd.s32 %s331, %s332
      %s334 = smul.addr %s333, 8
      %s335 = scalar_lea.vmem %s5, %s334
      %s336 = smul.u32 16, %s21
      %v340 = vlaneseq
      %v341 = vand.u32 %v340, 127
      %vm342 = vcmp.lt.s32.totalorder %v341, 0
      %v343 = vsub.s32 0, %v341
      %v344 = vsel %vm342, %v343, %v341
      %v345 = vshrl.u32 %v344, 3
      %v346 = vand.u32 %v344, 7
      %v347 = vsub.s32 0, %v346
      %v348 = vsel %vm342, %v347, %v346
      %vm349 = vcmp.ne.s32.totalorder %v348, 0
      %vm350 = vcmp.lt.s32.totalorder %v348, 0
      %vm351 = vmand %vm350, %vm349
      %v352 = vadd.s32 %v348, 8
      %v353 = vsel %vm351, %v352, %v348
      %vm354 = vcmp.gt.s32.totalorder %v353, 0
      %vm355 = vcmp.lt.s32.totalorder %v353, 7
      %v356 = vld [vmem:[%s307] sm:$0xf]
      %v357 = vld [vmem:[%s307 + $0x4] sm:$0xf]
      %v358 = vld [vmem:[%s307 + $0x8] sm:$0xf]
      %v359 = vld [vmem:[%s307 + $0xc] sm:$0xf]
      %v360 = vld [vmem:[%s307 + $0x10] sm:$0xf]
      %v361 = vld [vmem:[%s307 + $0x14] sm:$0xf]
      %v362 = vld [vmem:[%s307 + $0x18] sm:$0xf]
      %v363 = vld [vmem:[%s307 + $0x1c] sm:$0xf]
      %v364 = vsel %vm354, 1, 0
      %vm365 = vcmp.eq.s32.totalorder %v364, 1
      %vm366 = vmpackc.low %vm365, %vm365
      %v367 = vsel %vm366, %v356, 0
      %v368 = vsel %vm366, %v357, 0
      %v369 = vsel %vm366, %v358, 0
      %v370 = vsel %vm366, %v359, 0
      %v371 = vsel %vm366, %v360, 0
      %v372 = vsel %vm366, %v361, 0
      %v373 = vsel %vm366, %v362, 0
      %v374 = vsel %vm366, %v363, 0
      %v383 = vunpack.c.l.b16 %v367
      %v384 = vunpack.c.l.b16 %v368
      %v385 = vunpack.c.l.b16 %v369
      %v386 = vunpack.c.l.b16 %v370
      %v387 = vunpack.c.l.b16 %v371
      %v388 = vunpack.c.l.b16 %v372
      %v389 = vunpack.c.l.b16 %v373
      %v390 = vunpack.c.l.b16 %v374
      %v391 = vpack.c.b16 %v384, %v383
      %v392 = vpack.c.b16 %v386, %v385
      %v393 = vpack.c.b16 %v388, %v387
      %v394 = vpack.c.b16 %v390, %v389
      %vm399 = vcmask 654336
      %400 = vst.msk [vmem:[#allocation2] sm:$0xff] %vm399, %v391
      %401 = vst.msk [vmem:[#allocation2 + $0x8] sm:$0xff] %vm399, %v392
      %402 = vst.msk [vmem:[#allocation2 + $0x10] sm:$0xff] %vm399, %v393
      %403 = vst.msk [vmem:[#allocation2 + $0x18] sm:$0xff] %vm399, %v394
      %v412 = vunpack.c.l.b16 %v356
      %v413 = vunpack.c.l.b16 %v357
      %v414 = vunpack.c.l.b16 %v358
      %v415 = vunpack.c.l.b16 %v359
      %v416 = vunpack.c.l.b16 %v360
      %v417 = vunpack.c.l.b16 %v361
      %v418 = vunpack.c.l.b16 %v362
      %v419 = vunpack.c.l.b16 %v363
      %v420 = vpack.c.b16 %v413, %v412
      %v421 = vpack.c.b16 %v415, %v414
      %v422 = vpack.c.b16 %v417, %v416
      %v423 = vpack.c.b16 %v419, %v418
      %424 = vrot.lane.b32.xlu0 %v420, 127
      %v425 = vpop.permute.xlu0 %424
      %426 = vrot.lane.b32.xlu0 %v421, 127
      %v427 = vpop.permute.xlu0 %426
      %428 = vrot.lane.b32.xlu0 %v422, 127
      %v429 = vpop.permute.xlu0 %428
      %430 = vrot.lane.b32.xlu0 %v423, 127
      %v431 = vpop.permute.xlu0 %430
      %436 = vst.msk [vmem:[#allocation2 + $0x20] sm:$0xff] %vm399, %v425
      %437 = vst.msk [vmem:[#allocation2 + $0x28] sm:$0xff] %vm399, %v427
      %438 = vst.msk [vmem:[#allocation2 + $0x30] sm:$0xff] %vm399, %v429
      %439 = vst.msk [vmem:[#allocation2 + $0x38] sm:$0xff] %vm399, %v431
      %v440 = vsel %vm355, 1, 0
      %vm441 = vcmp.eq.s32.totalorder %v440, 1
      %vm442 = vmpackc.low %vm441, %vm441
      %v443 = vsel %vm442, 65537, 0
      %444 = vrot.lane.b32.xlu0 %v443, 2
      %v445 = vpop.permute.xlu0 %444
      %vm446 = vcmp.ne.s16.totalorder %v445, 0
      %v447 = vsel %vm446, %v356, 0
      %v448 = vsel %vm446, %v357, 0
      %v449 = vsel %vm446, %v358, 0
      %v450 = vsel %vm446, %v359, 0
      %v451 = vsel %vm446, %v360, 0
      %v452 = vsel %vm446, %v361, 0
      %v453 = vsel %vm446, %v362, 0
      %v454 = vsel %vm446, %v363, 0
      %v463 = vunpack.c.l.b16 %v447
      %v464 = vunpack.c.l.b16 %v448
      %v465 = vunpack.c.l.b16 %v449
      %v466 = vunpack.c.l.b16 %v450
      %v467 = vunpack.c.l.b16 %v451
      %v468 = vunpack.c.l.b16 %v452
      %v469 = vunpack.c.l.b16 %v453
      %v470 = vunpack.c.l.b16 %v454
      %v471 = vpack.c.b16 %v464, %v463
      %v472 = vpack.c.b16 %v466, %v465
      %v473 = vpack.c.b16 %v468, %v467
      %v474 = vpack.c.b16 %v470, %v469
      %475 = vrot.lane.b32.xlu0 %v471, 126
      %v476 = vpop.permute.xlu0 %475
      %477 = vrot.lane.b32.xlu0 %v472, 126
      %v478 = vpop.permute.xlu0 %477
      %479 = vrot.lane.b32.xlu0 %v473, 126
      %v480 = vpop.permute.xlu0 %479
      %481 = vrot.lane.b32.xlu0 %v474, 126
      %v482 = vpop.permute.xlu0 %481
      %487 = vst.msk [vmem:[#allocation2 + $0x40] sm:$0xff] %vm399, %v476
      %488 = vst.msk [vmem:[#allocation2 + $0x48] sm:$0xff] %vm399, %v478
      %489 = vst.msk [vmem:[#allocation2 + $0x50] sm:$0xff] %vm399, %v480
      %490 = vst.msk [vmem:[#allocation2 + $0x58] sm:$0xff] %vm399, %v482
      %s491 = scalar_lea.vmem %s307, 32
      %v492 = vld [vmem:[%s491] sm:$0xf]
      %v493 = vld [vmem:[%s491 + $0x4] sm:$0xf]
      %v494 = vld [vmem:[%s491 + $0x8] sm:$0xf]
      %v495 = vld [vmem:[%s491 + $0xc] sm:$0xf]
      %v496 = vld [vmem:[%s491 + $0x10] sm:$0xf]
      %v497 = vld [vmem:[%s491 + $0x14] sm:$0xf]
      %v498 = vld [vmem:[%s491 + $0x18] sm:$0xf]
      %v499 = vld [vmem:[%s491 + $0x1c] sm:$0xf]
      %v500 = vsel %vm366, %v492, 0
      %v501 = vsel %vm366, %v493, 0
      %v502 = vsel %vm366, %v494, 0
      %v503 = vsel %vm366, %v495, 0
      %v504 = vsel %vm366, %v496, 0
      %v505 = vsel %vm366, %v497, 0
      %v506 = vsel %vm366, %v498, 0
      %v507 = vsel %vm366, %v499, 0
      %v516 = vunpack.c.l.b16 %v500
      %v517 = vunpack.c.l.b16 %v501
      %v518 = vunpack.c.l.b16 %v502
      %v519 = vunpack.c.l.b16 %v503
      %v520 = vunpack.c.l.b16 %v504
      %v521 = vunpack.c.l.b16 %v505
      %v522 = vunpack.c.l.b16 %v506
      %v523 = vunpack.c.l.b16 %v507
      %v524 = vpack.c.b16 %v517, %v516
      %v525 = vpack.c.b16 %v519, %v518
      %v526 = vpack.c.b16 %v521, %v520
      %v527 = vpack.c.b16 %v523, %v522
      %532 = vst.msk [vmem:[#allocation2 + $0x60] sm:$0xff] %vm399, %v524
      %533 = vst.msk [vmem:[#allocation2 + $0x68] sm:$0xff] %vm399, %v525
      %534 = vst.msk [vmem:[#allocation2 + $0x70] sm:$0xff] %vm399, %v526
      %535 = vst.msk [vmem:[#allocation2 + $0x78] sm:$0xff] %vm399, %v527
      %v544 = vunpack.c.l.b16 %v492
      %v545 = vunpack.c.l.b16 %v493
      %v546 = vunpack.c.l.b16 %v494
      %v547 = vunpack.c.l.b16 %v495
      %v548 = vunpack.c.l.b16 %v496
      %v549 = vunpack.c.l.b16 %v497
      %v550 = vunpack.c.l.b16 %v498
      %v551 = vunpack.c.l.b16 %v499
      %v552 = vpack.c.b16 %v545, %v544
      %v553 = vpack.c.b16 %v547, %v546
      %v554 = vpack.c.b16 %v549, %v548
      %v555 = vpack.c.b16 %v551, %v550
      %556 = vrot.lane.b32.xlu0 %v552, 127
      %v557 = vpop.permute.xlu0 %556
      %558 = vrot.lane.b32.xlu0 %v553, 127
      %v559 = vpop.permute.xlu0 %558
      %560 = vrot.lane.b32.xlu0 %v554, 127
      %v561 = vpop.permute.xlu0 %560
      %562 = vrot.lane.b32.xlu0 %v555, 127
      %v563 = vpop.permute.xlu0 %562
      %568 = vst.msk [vmem:[#allocation2 + $0x80] sm:$0xff] %vm399, %v557
      %569 = vst.msk [vmem:[#allocation2 + $0x88] sm:$0xff] %vm399, %v559
      %570 = vst.msk [vmem:[#allocation2 + $0x90] sm:$0xff] %vm399, %v561
      %571 = vst.msk [vmem:[#allocation2 + $0x98] sm:$0xff] %vm399, %v563
      %v572 = vsel %vm446, %v492, 0
      %v573 = vsel %vm446, %v493, 0
      %v574 = vsel %vm446, %v494, 0
      %v575 = vsel %vm446, %v495, 0
      %v576 = vsel %vm446, %v496, 0
      %v577 = vsel %vm446, %v497, 0
      %v578 = vsel %vm446, %v498, 0
      %v579 = vsel %vm446, %v499, 0
      %v588 = vunpack.c.l.b16 %v572
      %v589 = vunpack.c.l.b16 %v573
      %v590 = vunpack.c.l.b16 %v574
      %v591 = vunpack.c.l.b16 %v575
      %v592 = vunpack.c.l.b16 %v576
      %v593 = vunpack.c.l.b16 %v577
      %v594 = vunpack.c.l.b16 %v578
      %v595 = vunpack.c.l.b16 %v579
      %v596 = vpack.c.b16 %v589, %v588
      %v597 = vpack.c.b16 %v591, %v590
      %v598 = vpack.c.b16 %v593, %v592
      %v599 = vpack.c.b16 %v595, %v594
      %600 = vrot.lane.b32.xlu0 %v596, 126
      %v601 = vpop.permute.xlu0 %600
      %602 = vrot.lane.b32.xlu0 %v597, 126
      %v603 = vpop.permute.xlu0 %602
      %604 = vrot.lane.b32.xlu0 %v598, 126
      %v605 = vpop.permute.xlu0 %604
      %606 = vrot.lane.b32.xlu0 %v599, 126
      %v607 = vpop.permute.xlu0 %606
      %612 = vst.msk [vmem:[#allocation2 + $0xa0] sm:$0xff] %vm399, %v601
      %613 = vst.msk [vmem:[#allocation2 + $0xa8] sm:$0xff] %vm399, %v603
      %614 = vst.msk [vmem:[#allocation2 + $0xb0] sm:$0xff] %vm399, %v605
      %615 = vst.msk [vmem:[#allocation2 + $0xb8] sm:$0xff] %vm399, %v607
      %s616 = scalar_lea.vmem %s307, 64
      %v617 = vld [vmem:[%s616] sm:$0xf]
      %v618 = vld [vmem:[%s616 + $0x4] sm:$0xf]
      %v619 = vld [vmem:[%s616 + $0x8] sm:$0xf]
      %v620 = vld [vmem:[%s616 + $0xc] sm:$0xf]
      %v621 = vld [vmem:[%s616 + $0x10] sm:$0xf]
      %v622 = vld [vmem:[%s616 + $0x14] sm:$0xf]
      %v623 = vld [vmem:[%s616 + $0x18] sm:$0xf]
      %v624 = vld [vmem:[%s616 + $0x1c] sm:$0xf]
      %v625 = vsel %vm366, %v617, 0
      %v626 = vsel %vm366, %v618, 0
      %v627 = vsel %vm366, %v619, 0
      %v628 = vsel %vm366, %v620, 0
      %v629 = vsel %vm366, %v621, 0
      %v630 = vsel %vm366, %v622, 0
      %v631 = vsel %vm366, %v623, 0
      %v632 = vsel %vm366, %v624, 0
      %v641 = vunpack.c.l.b16 %v625
      %v642 = vunpack.c.l.b16 %v626
      %v643 = vunpack.c.l.b16 %v627
      %v644 = vunpack.c.l.b16 %v628
      %v645 = vunpack.c.l.b16 %v629
      %v646 = vunpack.c.l.b16 %v630
      %v647 = vunpack.c.l.b16 %v631
      %v648 = vunpack.c.l.b16 %v632
      %v649 = vpack.c.b16 %v642, %v641
      %v650 = vpack.c.b16 %v644, %v643
      %v651 = vpack.c.b16 %v646, %v645
      %v652 = vpack.c.b16 %v648, %v647
      %657 = vst.msk [vmem:[#allocation2 + $0xc0] sm:$0xff] %vm399, %v649
      %658 = vst.msk [vmem:[#allocation2 + $0xc8] sm:$0xff] %vm399, %v650
      %659 = vst.msk [vmem:[#allocation2 + $0xd0] sm:$0xff] %vm399, %v651
      %660 = vst.msk [vmem:[#allocation2 + $0xd8] sm:$0xff] %vm399, %v652
      %v669 = vunpack.c.l.b16 %v617
      %v670 = vunpack.c.l.b16 %v618
      %v671 = vunpack.c.l.b16 %v619
      %v672 = vunpack.c.l.b16 %v620
      %v673 = vunpack.c.l.b16 %v621
      %v674 = vunpack.c.l.b16 %v622
      %v675 = vunpack.c.l.b16 %v623
      %v676 = vunpack.c.l.b16 %v624
      %v677 = vpack.c.b16 %v670, %v669
      %v678 = vpack.c.b16 %v672, %v671
      %v679 = vpack.c.b16 %v674, %v673
      %v680 = vpack.c.b16 %v676, %v675
      %681 = vrot.lane.b32.xlu0 %v677, 127
      %v682 = vpop.permute.xlu0 %681
      %683 = vrot.lane.b32.xlu0 %v678, 127
      %v684 = vpop.permute.xlu0 %683
      %685 = vrot.lane.b32.xlu0 %v679, 127
      %v686 = vpop.permute.xlu0 %685
      %687 = vrot.lane.b32.xlu0 %v680, 127
      %v688 = vpop.permute.xlu0 %687
      %693 = vst.msk [vmem:[#allocation2 + $0xe0] sm:$0xff] %vm399, %v682
      %694 = vst.msk [vmem:[#allocation2 + $0xe8] sm:$0xff] %vm399, %v684
      %695 = vst.msk [vmem:[#allocation2 + $0xf0] sm:$0xff] %vm399, %v686
      %696 = vst.msk [vmem:[#allocation2 + $0xf8] sm:$0xff] %vm399, %v688
      %v697 = vsel %vm446, %v617, 0
      %v698 = vsel %vm446, %v618, 0
      %v699 = vsel %vm446, %v619, 0
      %v700 = vsel %vm446, %v620, 0
      %v701 = vsel %vm446, %v621, 0
      %v702 = vsel %vm446, %v622, 0
      %v703 = vsel %vm446, %v623, 0
      %v704 = vsel %vm446, %v624, 0
      %v713 = vunpack.c.l.b16 %v697
      %v714 = vunpack.c.l.b16 %v698
      %v715 = vunpack.c.l.b16 %v699
      %v716 = vunpack.c.l.b16 %v700
      %v717 = vunpack.c.l.b16 %v701
      %v718 = vunpack.c.l.b16 %v702
      %v719 = vunpack.c.l.b16 %v703
      %v720 = vunpack.c.l.b16 %v704
      %v721 = vpack.c.b16 %v714, %v713
      %v722 = vpack.c.b16 %v716, %v715
      %v723 = vpack.c.b16 %v718, %v717
      %v724 = vpack.c.b16 %v720, %v719
      %725 = vrot.lane.b32.xlu0 %v721, 126
      %v726 = vpop.permute.xlu0 %725
      %727 = vrot.lane.b32.xlu0 %v722, 126
      %v728 = vpop.permute.xlu0 %727
      %729 = vrot.lane.b32.xlu0 %v723, 126
      %v730 = vpop.permute.xlu0 %729
      %731 = vrot.lane.b32.xlu0 %v724, 126
      %v732 = vpop.permute.xlu0 %731
      %737 = vst.msk [vmem:[#allocation2 + $0x100] sm:$0xff] %vm399, %v726
      %738 = vst.msk [vmem:[#allocation2 + $0x108] sm:$0xff] %vm399, %v728
      %739 = vst.msk [vmem:[#allocation2 + $0x110] sm:$0xff] %vm399, %v730
      %740 = vst.msk [vmem:[#allocation2 + $0x118] sm:$0xff] %vm399, %v732
      %s741 = scalar_lea.vmem %s307, 96
      %v742 = vld [vmem:[%s741] sm:$0xf]
      %v743 = vld [vmem:[%s741 + $0x4] sm:$0xf]
      %v744 = vld [vmem:[%s741 + $0x8] sm:$0xf]
      %v745 = vld [vmem:[%s741 + $0xc] sm:$0xf]
      %v746 = vld [vmem:[%s741 + $0x10] sm:$0xf]
      %v747 = vld [vmem:[%s741 + $0x14] sm:$0xf]
      %v748 = vld [vmem:[%s741 + $0x18] sm:$0xf]
      %v749 = vld [vmem:[%s741 + $0x1c] sm:$0xf]
      %v750 = vsel %vm366, %v742, 0
      %v751 = vsel %vm366, %v743, 0
      %v752 = vsel %vm366, %v744, 0
      %v753 = vsel %vm366, %v745, 0
      %v754 = vsel %vm366, %v746, 0
      %v755 = vsel %vm366, %v747, 0
      %v756 = vsel %vm366, %v748, 0
      %v757 = vsel %vm366, %v749, 0
      %v766 = vunpack.c.l.b16 %v750
      %v767 = vunpack.c.l.b16 %v751
      %v768 = vunpack.c.l.b16 %v752
      %v769 = vunpack.c.l.b16 %v753
      %v770 = vunpack.c.l.b16 %v754
      %v771 = vunpack.c.l.b16 %v755
      %v772 = vunpack.c.l.b16 %v756
      %v773 = vunpack.c.l.b16 %v757
      %v774 = vpack.c.b16 %v767, %v766
      %v775 = vpack.c.b16 %v769, %v768
      %v776 = vpack.c.b16 %v771, %v770
      %v777 = vpack.c.b16 %v773, %v772
      %782 = vst.msk [vmem:[#allocation2 + $0x120] sm:$0xff] %vm399, %v774
      %783 = vst.msk [vmem:[#allocation2 + $0x128] sm:$0xff] %vm399, %v775
      %784 = vst.msk [vmem:[#allocation2 + $0x130] sm:$0xff] %vm399, %v776
      %785 = vst.msk [vmem:[#allocation2 + $0x138] sm:$0xff] %vm399, %v777
      %v794 = vunpack.c.l.b16 %v742
      %v795 = vunpack.c.l.b16 %v743
      %v796 = vunpack.c.l.b16 %v744
      %v797 = vunpack.c.l.b16 %v745
      %v798 = vunpack.c.l.b16 %v746
      %v799 = vunpack.c.l.b16 %v747
      %v800 = vunpack.c.l.b16 %v748
      %v801 = vunpack.c.l.b16 %v749
      %v802 = vpack.c.b16 %v795, %v794
      %v803 = vpack.c.b16 %v797, %v796
      %v804 = vpack.c.b16 %v799, %v798
      %v805 = vpack.c.b16 %v801, %v800
      %806 = vrot.lane.b32.xlu0 %v802, 127
      %v807 = vpop.permute.xlu0 %806
      %808 = vrot.lane.b32.xlu0 %v803, 127
      %v809 = vpop.permute.xlu0 %808
      %810 = vrot.lane.b32.xlu0 %v804, 127
      %v811 = vpop.permute.xlu0 %810
      %812 = vrot.lane.b32.xlu0 %v805, 127
      %v813 = vpop.permute.xlu0 %812
      %818 = vst.msk [vmem:[#allocation2 + $0x140] sm:$0xff] %vm399, %v807
      %819 = vst.msk [vmem:[#allocation2 + $0x148] sm:$0xff] %vm399, %v809
      %820 = vst.msk [vmem:[#allocation2 + $0x150] sm:$0xff] %vm399, %v811
      %821 = vst.msk [vmem:[#allocation2 + $0x158] sm:$0xff] %vm399, %v813
      %v822 = vsel %vm446, %v742, 0
      %v823 = vsel %vm446, %v743, 0
      %v824 = vsel %vm446, %v744, 0
      %v825 = vsel %vm446, %v745, 0
      %v826 = vsel %vm446, %v746, 0
      %v827 = vsel %vm446, %v747, 0
      %v828 = vsel %vm446, %v748, 0
      %v829 = vsel %vm446, %v749, 0
      %v838 = vunpack.c.l.b16 %v822
      %v839 = vunpack.c.l.b16 %v823
      %v840 = vunpack.c.l.b16 %v824
      %v841 = vunpack.c.l.b16 %v825
      %v842 = vunpack.c.l.b16 %v826
      %v843 = vunpack.c.l.b16 %v827
      %v844 = vunpack.c.l.b16 %v828
      %v845 = vunpack.c.l.b16 %v829
      %v846 = vpack.c.b16 %v839, %v838
      %v847 = vpack.c.b16 %v841, %v840
      %v848 = vpack.c.b16 %v843, %v842
      %v849 = vpack.c.b16 %v845, %v844
      %850 = vrot.lane.b32.xlu0 %v846, 126
      %v851 = vpop.permute.xlu0 %850
      %852 = vrot.lane.b32.xlu0 %v847, 126
      %v853 = vpop.permute.xlu0 %852
      %854 = vrot.lane.b32.xlu0 %v848, 126
      %v855 = vpop.permute.xlu0 %854
      %856 = vrot.lane.b32.xlu0 %v849, 126
      %v857 = vpop.permute.xlu0 %856
      %862 = vst.msk [vmem:[#allocation2 + $0x160] sm:$0xff] %vm399, %v851
      %863 = vst.msk [vmem:[#allocation2 + $0x168] sm:$0xff] %vm399, %v853
      %864 = vst.msk [vmem:[#allocation2 + $0x170] sm:$0xff] %vm399, %v855
      %865 = vst.msk [vmem:[#allocation2 + $0x178] sm:$0xff] %vm399, %v857
      %v866 = vld [vmem:[%s313] sm:$0xff]
      %v867 = vld [vmem:[%s313 + $0x8] sm:$0xff]
      %v868 = vld [vmem:[%s313 + $0x10] sm:$0xff]
      %v869 = vld [vmem:[%s313 + $0x18] sm:$0xff]
      %v870 = vld [vmem:[%s313 + $0x20] sm:$0xff]
      %v871 = vld [vmem:[%s313 + $0x28] sm:$0xff]
      %v872 = vld [vmem:[%s313 + $0x30] sm:$0xff]
      %v873 = vld [vmem:[%s313 + $0x38] sm:$0xff]
      %v874 = vld [vmem:[%s313 + $0x40] sm:$0xff]
      %v875 = vld [vmem:[%s313 + $0x48] sm:$0xff]
      %v876 = vld [vmem:[%s313 + $0x50] sm:$0xff]
      %v877 = vld [vmem:[%s313 + $0x58] sm:$0xff]
      %v878 = vld [vmem:[%s313 + $0x60] sm:$0xff]
      %v879 = vld [vmem:[%s313 + $0x68] sm:$0xff]
      %v880 = vld [vmem:[%s313 + $0x70] sm:$0xff]
      %v881 = vld [vmem:[%s313 + $0x78] sm:$0xff]
      %v882 = vld [vmem:[%s313 + $0x80] sm:$0xff]
      %v883 = vld [vmem:[%s313 + $0x88] sm:$0xff]
      %v884 = vld [vmem:[%s313 + $0x90] sm:$0xff]
      %v885 = vld [vmem:[%s313 + $0x98] sm:$0xff]
      %v886 = vld [vmem:[%s313 + $0xa0] sm:$0xff]
      %v887 = vld [vmem:[%s313 + $0xa8] sm:$0xff]
      %v888 = vld [vmem:[%s313 + $0xb0] sm:$0xff]
      %v889 = vld [vmem:[%s313 + $0xb8] sm:$0xff]
      %v890 = vld [vmem:[%s313 + $0xc0] sm:$0xff]
      %v891 = vld [vmem:[%s313 + $0xc8] sm:$0xff]
      %v892 = vld [vmem:[%s313 + $0xd0] sm:$0xff]
      %v893 = vld [vmem:[%s313 + $0xd8] sm:$0xff]
      %v894 = vld [vmem:[%s313 + $0xe0] sm:$0xff]
      %v895 = vld [vmem:[%s313 + $0xe8] sm:$0xff]
      %v896 = vld [vmem:[%s313 + $0xf0] sm:$0xff]
      %v897 = vld [vmem:[%s313 + $0xf8] sm:$0xff]
      %v898 = vld [vmem:[%s313 + $0x100] sm:$0xff]
      %v899 = vld [vmem:[%s313 + $0x108] sm:$0xff]
      %v900 = vld [vmem:[%s313 + $0x110] sm:$0xff]
      %v901 = vld [vmem:[%s313 + $0x118] sm:$0xff]
      %v902 = vld [vmem:[%s313 + $0x120] sm:$0xff]
      %v903 = vld [vmem:[%s313 + $0x128] sm:$0xff]
      %v904 = vld [vmem:[%s313 + $0x130] sm:$0xff]
      %v905 = vld [vmem:[%s313 + $0x138] sm:$0xff]
      %v906 = vld [vmem:[%s313 + $0x140] sm:$0xff]
      %v907 = vld [vmem:[%s313 + $0x148] sm:$0xff]
      %v908 = vld [vmem:[%s313 + $0x150] sm:$0xff]
      %v909 = vld [vmem:[%s313 + $0x158] sm:$0xff]
      %v910 = vld [vmem:[%s313 + $0x160] sm:$0xff]
      %v911 = vld [vmem:[%s313 + $0x168] sm:$0xff]
      %v912 = vld [vmem:[%s313 + $0x170] sm:$0xff]
      %v913 = vld [vmem:[%s313 + $0x178] sm:$0xff]
      %v914 = vld [vmem:[#allocation2] sm:$0xff]
      %v915 = vld [vmem:[#allocation2 + $0x8] sm:$0xff]
      %v916 = vld [vmem:[#allocation2 + $0x10] sm:$0xff]
      %v917 = vld [vmem:[#allocation2 + $0x18] sm:$0xff]
      %v918 = vld [vmem:[#allocation2 + $0x20] sm:$0xff]
      %v919 = vld [vmem:[#allocation2 + $0x28] sm:$0xff]
      %v920 = vld [vmem:[#allocation2 + $0x30] sm:$0xff]
      %v921 = vld [vmem:[#allocation2 + $0x38] sm:$0xff]
      %v922 = vld [vmem:[#allocation2 + $0x40] sm:$0xff]
      %v923 = vld [vmem:[#allocation2 + $0x48] sm:$0xff]
      %v924 = vld [vmem:[#allocation2 + $0x50] sm:$0xff]
      %v925 = vld [vmem:[#allocation2 + $0x58] sm:$0xff]
      %v926 = vld [vmem:[#allocation2 + $0x60] sm:$0xff]
      %v927 = vld [vmem:[#allocation2 + $0x68] sm:$0xff]
      %v928 = vld [vmem:[#allocation2 + $0x70] sm:$0xff]
      %v929 = vld [vmem:[#allocation2 + $0x78] sm:$0xff]
      %v930 = vld [vmem:[#allocation2 + $0x80] sm:$0xff]
      %v931 = vld [vmem:[#allocation2 + $0x88] sm:$0xff]
      %v932 = vld [vmem:[#allocation2 + $0x90] sm:$0xff]
      %v933 = vld [vmem:[#allocation2 + $0x98] sm:$0xff]
      %v934 = vld [vmem:[#allocation2 + $0xa0] sm:$0xff]
      %v935 = vld [vmem:[#allocation2 + $0xa8] sm:$0xff]
      %v936 = vld [vmem:[#allocation2 + $0xb0] sm:$0xff]
      %v937 = vld [vmem:[#allocation2 + $0xb8] sm:$0xff]
      %v938 = vld [vmem:[#allocation2 + $0xc0] sm:$0xff]
      %v939 = vld [vmem:[#allocation2 + $0xc8] sm:$0xff]
      %v940 = vld [vmem:[#allocation2 + $0xd0] sm:$0xff]
      %v941 = vld [vmem:[#allocation2 + $0xd8] sm:$0xff]
      %v942 = vld [vmem:[#allocation2 + $0xe0] sm:$0xff]
      %v943 = vld [vmem:[#allocation2 + $0xe8] sm:$0xff]
      %v944 = vld [vmem:[#allocation2 + $0xf0] sm:$0xff]
      %v945 = vld [vmem:[#allocation2 + $0xf8] sm:$0xff]
      %v946 = vld [vmem:[#allocation2 + $0x100] sm:$0xff]
      %v947 = vld [vmem:[#allocation2 + $0x108] sm:$0xff]
      %v948 = vld [vmem:[#allocation2 + $0x110] sm:$0xff]
      %v949 = vld [vmem:[#allocation2 + $0x118] sm:$0xff]
      %v950 = vld [vmem:[#allocation2 + $0x120] sm:$0xff]
      %v951 = vld [vmem:[#allocation2 + $0x128] sm:$0xff]
      %v952 = vld [vmem:[#allocation2 + $0x130] sm:$0xff]
      %v953 = vld [vmem:[#allocation2 + $0x138] sm:$0xff]
      %v954 = vld [vmem:[#allocation2 + $0x140] sm:$0xff]
      %v955 = vld [vmem:[#allocation2 + $0x148] sm:$0xff]
      %v956 = vld [vmem:[#allocation2 + $0x150] sm:$0xff]
      %v957 = vld [vmem:[#allocation2 + $0x158] sm:$0xff]
      %v958 = vld [vmem:[#allocation2 + $0x160] sm:$0xff]
      %v959 = vld [vmem:[#allocation2 + $0x168] sm:$0xff]
      %v960 = vld [vmem:[#allocation2 + $0x170] sm:$0xff]
      %v961 = vld [vmem:[#allocation2 + $0x178] sm:$0xff]
      %s962 = scalar_lea.vmem %s313, 384
      %v963 = vld [vmem:[%s962] sm:$0xff]
      %v964 = vld [vmem:[%s962 + $0x8] sm:$0xff]
      %v965 = vld [vmem:[%s962 + $0x10] sm:$0xff]
      %v966 = vld [vmem:[%s962 + $0x18] sm:$0xff]
      %v967 = vld [vmem:[%s962 + $0x20] sm:$0xff]
      %v968 = vld [vmem:[%s962 + $0x28] sm:$0xff]
      %v969 = vld [vmem:[%s962 + $0x30] sm:$0xff]
      %v970 = vld [vmem:[%s962 + $0x38] sm:$0xff]
      %v971 = vld [vmem:[%s962 + $0x40] sm:$0xff]
      %v972 = vld [vmem:[%s962 + $0x48] sm:$0xff]
      %v973 = vld [vmem:[%s962 + $0x50] sm:$0xff]
      %v974 = vld [vmem:[%s962 + $0x58] sm:$0xff]
      %v975 = vld [vmem:[%s962 + $0x60] sm:$0xff]
      %v976 = vld [vmem:[%s962 + $0x68] sm:$0xff]
      %v977 = vld [vmem:[%s962 + $0x70] sm:$0xff]
      %v978 = vld [vmem:[%s962 + $0x78] sm:$0xff]
      %v979 = vld [vmem:[%s962 + $0x80] sm:$0xff]
      %v980 = vld [vmem:[%s962 + $0x88] sm:$0xff]
      %v981 = vld [vmem:[%s962 + $0x90] sm:$0xff]
      %v982 = vld [vmem:[%s962 + $0x98] sm:$0xff]
      %v983 = vld [vmem:[%s962 + $0xa0] sm:$0xff]
      %v984 = vld [vmem:[%s962 + $0xa8] sm:$0xff]
      %v985 = vld [vmem:[%s962 + $0xb0] sm:$0xff]
      %v986 = vld [vmem:[%s962 + $0xb8] sm:$0xff]
      %v987 = vld [vmem:[%s962 + $0xc0] sm:$0xff]
      %v988 = vld [vmem:[%s962 + $0xc8] sm:$0xff]
      %v989 = vld [vmem:[%s962 + $0xd0] sm:$0xff]
      %v990 = vld [vmem:[%s962 + $0xd8] sm:$0xff]
      %v991 = vld [vmem:[%s962 + $0xe0] sm:$0xff]
      %v992 = vld [vmem:[%s962 + $0xe8] sm:$0xff]
      %v993 = vld [vmem:[%s962 + $0xf0] sm:$0xff]
      %v994 = vld [vmem:[%s962 + $0xf8] sm:$0xff]
      %v995 = vld [vmem:[%s962 + $0x100] sm:$0xff]
      %v996 = vld [vmem:[%s962 + $0x108] sm:$0xff]
      %v997 = vld [vmem:[%s962 + $0x110] sm:$0xff]
      %v998 = vld [vmem:[%s962 + $0x118] sm:$0xff]
      %v999 = vld [vmem:[%s962 + $0x120] sm:$0xff]
      %v1000 = vld [vmem:[%s962 + $0x128] sm:$0xff]
      %v1001 = vld [vmem:[%s962 + $0x130] sm:$0xff]
      %v1002 = vld [vmem:[%s962 + $0x138] sm:$0xff]
      %v1003 = vld [vmem:[%s962 + $0x140] sm:$0xff]
      %v1004 = vld [vmem:[%s962 + $0x148] sm:$0xff]
      %v1005 = vld [vmem:[%s962 + $0x150] sm:$0xff]
      %v1006 = vld [vmem:[%s962 + $0x158] sm:$0xff]
      %v1007 = vld [vmem:[%s962 + $0x160] sm:$0xff]
      %v1008 = vld [vmem:[%s962 + $0x168] sm:$0xff]
      %v1009 = vld [vmem:[%s962 + $0x170] sm:$0xff]
      %v1010 = vld [vmem:[%s962 + $0x178] sm:$0xff]
      %v1059 = vunpack.c.l.b16 %v963
      %v1060 = vunpack.c.h.b16 %v963
      %v1061 = vunpack.c.l.b16 %v964
      %v1062 = vunpack.c.h.b16 %v964
      %v1063 = vunpack.c.l.b16 %v965
      %v1064 = vunpack.c.h.b16 %v965
      %v1065 = vunpack.c.l.b16 %v966
      %v1066 = vunpack.c.h.b16 %v966
      %v1067 = vunpack.c.l.b16 %v967
      %v1068 = vunpack.c.h.b16 %v967
      %v1069 = vunpack.c.l.b16 %v968
      %v1070 = vunpack.c.h.b16 %v968
      %v1071 = vunpack.c.l.b16 %v969
      %v1072 = vunpack.c.h.b16 %v969
      %v1073 = vunpack.c.l.b16 %v970
      %v1074 = vunpack.c.h.b16 %v970
      %v1075 = vunpack.c.l.b16 %v971
      %v1076 = vunpack.c.h.b16 %v971
      %v1077 = vunpack.c.l.b16 %v972
      %v1078 = vunpack.c.h.b16 %v972
      %v1079 = vunpack.c.l.b16 %v973
      %v1080 = vunpack.c.h.b16 %v973
      %v1081 = vunpack.c.l.b16 %v974
      %v1082 = vunpack.c.h.b16 %v974
      %v1083 = vunpack.c.l.b16 %v975
      %v1084 = vunpack.c.h.b16 %v975
      %v1085 = vunpack.c.l.b16 %v976
      %v1086 = vunpack.c.h.b16 %v976
      %v1087 = vunpack.c.l.b16 %v977
      %v1088 = vunpack.c.h.b16 %v977
      %v1089 = vunpack.c.l.b16 %v978
      %v1090 = vunpack.c.h.b16 %v978
      %v1091 = vunpack.c.l.b16 %v979
      %v1092 = vunpack.c.h.b16 %v979
      %v1093 = vunpack.c.l.b16 %v980
      %v1094 = vunpack.c.h.b16 %v980
      %v1095 = vunpack.c.l.b16 %v981
      %v1096 = vunpack.c.h.b16 %v981
      %v1097 = vunpack.c.l.b16 %v982
      %v1098 = vunpack.c.h.b16 %v982
      %v1099 = vunpack.c.l.b16 %v983
      %v1100 = vunpack.c.h.b16 %v983
      %v1101 = vunpack.c.l.b16 %v984
      %v1102 = vunpack.c.h.b16 %v984
      %v1103 = vunpack.c.l.b16 %v985
      %v1104 = vunpack.c.h.b16 %v985
      %v1105 = vunpack.c.l.b16 %v986
      %v1106 = vunpack.c.h.b16 %v986
      %v1107 = vunpack.c.l.b16 %v987
      %v1108 = vunpack.c.h.b16 %v987
      %v1109 = vunpack.c.l.b16 %v988
      %v1110 = vunpack.c.h.b16 %v988
      %v1111 = vunpack.c.l.b16 %v989
      %v1112 = vunpack.c.h.b16 %v989
      %v1113 = vunpack.c.l.b16 %v990
      %v1114 = vunpack.c.h.b16 %v990
      %v1115 = vunpack.c.l.b16 %v991
      %v1116 = vunpack.c.h.b16 %v991
      %v1117 = vunpack.c.l.b16 %v992
      %v1118 = vunpack.c.h.b16 %v992
      %v1119 = vunpack.c.l.b16 %v993
      %v1120 = vunpack.c.h.b16 %v993
      %v1121 = vunpack.c.l.b16 %v994
      %v1122 = vunpack.c.h.b16 %v994
      %v1123 = vunpack.c.l.b16 %v995
      %v1124 = vunpack.c.h.b16 %v995
      %v1125 = vunpack.c.l.b16 %v996
      %v1126 = vunpack.c.h.b16 %v996
      %v1127 = vunpack.c.l.b16 %v997
      %v1128 = vunpack.c.h.b16 %v997
      %v1129 = vunpack.c.l.b16 %v998
      %v1130 = vunpack.c.h.b16 %v998
      %v1131 = vunpack.c.l.b16 %v999
      %v1132 = vunpack.c.h.b16 %v999
      %v1133 = vunpack.c.l.b16 %v1000
      %v1134 = vunpack.c.h.b16 %v1000
      %v1135 = vunpack.c.l.b16 %v1001
      %v1136 = vunpack.c.h.b16 %v1001
      %v1137 = vunpack.c.l.b16 %v1002
      %v1138 = vunpack.c.h.b16 %v1002
      %v1139 = vunpack.c.l.b16 %v1003
      %v1140 = vunpack.c.h.b16 %v1003
      %v1141 = vunpack.c.l.b16 %v1004
      %v1142 = vunpack.c.h.b16 %v1004
      %v1143 = vunpack.c.l.b16 %v1005
      %v1144 = vunpack.c.h.b16 %v1005
      %v1145 = vunpack.c.l.b16 %v1006
      %v1146 = vunpack.c.h.b16 %v1006
      %v1147 = vunpack.c.l.b16 %v1007
      %v1148 = vunpack.c.h.b16 %v1007
      %v1149 = vunpack.c.l.b16 %v1008
      %v1150 = vunpack.c.h.b16 %v1008
      %v1151 = vunpack.c.l.b16 %v1009
      %v1152 = vunpack.c.h.b16 %v1009
      %v1153 = vunpack.c.l.b16 %v1010
      %v1154 = vunpack.c.h.b16 %v1010
      %v1155 = vpack.c.b16 %v1065, %v1059
      %v1156 = vpack.c.b16 %v1066, %v1060
      %v1157 = vpack.c.b16 %v1067, %v1061
      %v1158 = vpack.c.b16 %v1068, %v1062
      %v1159 = vpack.c.b16 %v1069, %v1063
      %v1160 = vpack.c.b16 %v1070, %v1064
      %v1161 = vpack.c.b16 %v1077, %v1071
      %v1162 = vpack.c.b16 %v1078, %v1072
      %v1163 = vpack.c.b16 %v1079, %v1073
      %v1164 = vpack.c.b16 %v1080, %v1074
      %v1165 = vpack.c.b16 %v1081, %v1075
      %v1166 = vpack.c.b16 %v1082, %v1076
      %v1167 = vpack.c.b16 %v1089, %v1083
      %v1168 = vpack.c.b16 %v1090, %v1084
      %v1169 = vpack.c.b16 %v1091, %v1085
      %v1170 = vpack.c.b16 %v1092, %v1086
      %v1171 = vpack.c.b16 %v1093, %v1087
      %v1172 = vpack.c.b16 %v1094, %v1088
      %v1173 = vpack.c.b16 %v1101, %v1095
      %v1174 = vpack.c.b16 %v1102, %v1096
      %v1175 = vpack.c.b16 %v1103, %v1097
      %v1176 = vpack.c.b16 %v1104, %v1098
      %v1177 = vpack.c.b16 %v1105, %v1099
      %v1178 = vpack.c.b16 %v1106, %v1100
      %v1179 = vpack.c.b16 %v1113, %v1107
      %v1180 = vpack.c.b16 %v1114, %v1108
      %v1181 = vpack.c.b16 %v1115, %v1109
      %v1182 = vpack.c.b16 %v1116, %v1110
      %v1183 = vpack.c.b16 %v1117, %v1111
      %v1184 = vpack.c.b16 %v1118, %v1112
      %v1185 = vpack.c.b16 %v1125, %v1119
      %v1186 = vpack.c.b16 %v1126, %v1120
      %v1187 = vpack.c.b16 %v1127, %v1121
      %v1188 = vpack.c.b16 %v1128, %v1122
      %v1189 = vpack.c.b16 %v1129, %v1123
      %v1190 = vpack.c.b16 %v1130, %v1124
      %v1191 = vpack.c.b16 %v1137, %v1131
      %v1192 = vpack.c.b16 %v1138, %v1132
      %v1193 = vpack.c.b16 %v1139, %v1133
      %v1194 = vpack.c.b16 %v1140, %v1134
      %v1195 = vpack.c.b16 %v1141, %v1135
      %v1196 = vpack.c.b16 %v1142, %v1136
      %v1197 = vpack.c.b16 %v1149, %v1143
      %v1198 = vpack.c.b16 %v1150, %v1144
      %v1199 = vpack.c.b16 %v1151, %v1145
      %v1200 = vpack.c.b16 %v1152, %v1146
      %v1201 = vpack.c.b16 %v1153, %v1147
      %v1202 = vpack.c.b16 %v1154, %v1148
      %1299 = vrot.lane.b32.xlu0 %v914, 120
      %v1300 = vpop.permute.xlu0 %1299
      %1301 = vrot.lane.b32.xlu0 %v915, 120
      %v1302 = vpop.permute.xlu0 %1301
      %1303 = vrot.lane.b32.xlu0 %v916, 120
      %v1304 = vpop.permute.xlu0 %1303
      %1305 = vrot.lane.b32.xlu0 %v917, 120
      %v1306 = vpop.permute.xlu0 %1305
      %1307 = vrot.lane.b32.xlu0 %v918, 120
      %v1308 = vpop.permute.xlu0 %1307
      %1309 = vrot.lane.b32.xlu0 %v919, 120
      %v1310 = vpop.permute.xlu0 %1309
      %1311 = vrot.lane.b32.xlu0 %v920, 120
      %v1312 = vpop.permute.xlu0 %1311
      %1313 = vrot.lane.b32.xlu0 %v921, 120
      %v1314 = vpop.permute.xlu0 %1313
      %1315 = vrot.lane.b32.xlu0 %v922, 120
      %v1316 = vpop.permute.xlu0 %1315
      %1317 = vrot.lane.b32.xlu0 %v923, 120
      %v1318 = vpop.permute.xlu0 %1317
      %1319 = vrot.lane.b32.xlu0 %v924, 120
      %v1320 = vpop.permute.xlu0 %1319
      %1321 = vrot.lane.b32.xlu0 %v925, 120
      %v1322 = vpop.permute.xlu0 %1321
      %1323 = vrot.lane.b32.xlu0 %v926, 120
      %v1324 = vpop.permute.xlu0 %1323
      %1325 = vrot.lane.b32.xlu0 %v927, 120
      %v1326 = vpop.permute.xlu0 %1325
      %1327 = vrot.lane.b32.xlu0 %v928, 120
      %v1328 = vpop.permute.xlu0 %1327
      %1329 = vrot.lane.b32.xlu0 %v929, 120
      %v1330 = vpop.permute.xlu0 %1329
      %1331 = vrot.lane.b32.xlu0 %v930, 120
      %v1332 = vpop.permute.xlu0 %1331
      %1333 = vrot.lane.b32.xlu0 %v931, 120
      %v1334 = vpop.permute.xlu0 %1333
      %1335 = vrot.lane.b32.xlu0 %v932, 120
      %v1336 = vpop.permute.xlu0 %1335
      %1337 = vrot.lane.b32.xlu0 %v933, 120
      %v1338 = vpop.permute.xlu0 %1337
      %1339 = vrot.lane.b32.xlu0 %v934, 120
      %v1340 = vpop.permute.xlu0 %1339
      %1341 = vrot.lane.b32.xlu0 %v935, 120
      %v1342 = vpop.permute.xlu0 %1341
      %1343 = vrot.lane.b32.xlu0 %v936, 120
      %v1344 = vpop.permute.xlu0 %1343
      %1345 = vrot.lane.b32.xlu0 %v937, 120
      %v1346 = vpop.permute.xlu0 %1345
      %1347 = vrot.lane.b32.xlu0 %v938, 120
      %v1348 = vpop.permute.xlu0 %1347
      %1349 = vrot.lane.b32.xlu0 %v939, 120
      %v1350 = vpop.permute.xlu0 %1349
      %1351 = vrot.lane.b32.xlu0 %v940, 120
      %v1352 = vpop.permute.xlu0 %1351
      %1353 = vrot.lane.b32.xlu0 %v941, 120
      %v1354 = vpop.permute.xlu0 %1353
      %1355 = vrot.lane.b32.xlu0 %v942, 120
      %v1356 = vpop.permute.xlu0 %1355
      %1357 = vrot.lane.b32.xlu0 %v943, 120
      %v1358 = vpop.permute.xlu0 %1357
      %1359 = vrot.lane.b32.xlu0 %v944, 120
      %v1360 = vpop.permute.xlu0 %1359
      %1361 = vrot.lane.b32.xlu0 %v945, 120
      %v1362 = vpop.permute.xlu0 %1361
      %1363 = vrot.lane.b32.xlu0 %v946, 120
      %v1364 = vpop.permute.xlu0 %1363
      %1365 = vrot.lane.b32.xlu0 %v947, 120
      %v1366 = vpop.permute.xlu0 %1365
      %1367 = vrot.lane.b32.xlu0 %v948, 120
      %v1368 = vpop.permute.xlu0 %1367
      %1369 = vrot.lane.b32.xlu0 %v949, 120
      %v1370 = vpop.permute.xlu0 %1369
      %1371 = vrot.lane.b32.xlu0 %v950, 120
      %v1372 = vpop.permute.xlu0 %1371
      %1373 = vrot.lane.b32.xlu0 %v951, 120
      %v1374 = vpop.permute.xlu0 %1373
      %1375 = vrot.lane.b32.xlu0 %v952, 120
      %v1376 = vpop.permute.xlu0 %1375
      %1377 = vrot.lane.b32.xlu0 %v953, 120
      %v1378 = vpop.permute.xlu0 %1377
      %1379 = vrot.lane.b32.xlu0 %v954, 120
      %v1380 = vpop.permute.xlu0 %1379
      %1381 = vrot.lane.b32.xlu0 %v955, 120
      %v1382 = vpop.permute.xlu0 %1381
      %1383 = vrot.lane.b32.xlu0 %v956, 120
      %v1384 = vpop.permute.xlu0 %1383
      %1385 = vrot.lane.b32.xlu0 %v957, 120
      %v1386 = vpop.permute.xlu0 %1385
      %1387 = vrot.lane.b32.xlu0 %v958, 120
      %v1388 = vpop.permute.xlu0 %1387
      %1389 = vrot.lane.b32.xlu0 %v959, 120
      %v1390 = vpop.permute.xlu0 %1389
      %1391 = vrot.lane.b32.xlu0 %v960, 120
      %v1392 = vpop.permute.xlu0 %1391
      %1393 = vrot.lane.b32.xlu0 %v961, 120
      %v1394 = vpop.permute.xlu0 %1393
      %1443 = vmatprep.subr.bf16.mxu0 0
      %1444 = vmatpush1.bf16.msra.mxu0 %v1300
      %1445 = vmatprep.subr.bf16.mxu0 0
      %1446 = vmatpush1.bf16.msra.mxu0 %v1302
      %1447 = vmatprep.subr.bf16.mxu0 0
      %1448 = vmatpush1.bf16.msra.mxu0 %v1304
      %1449 = vmatprep.subr.bf16.mxu0 0
      %1450 = vmatpush1.bf16.msra.mxu0 %v1306
      %1451 = vmatprep.subr.bf16.mxu0 0
      %1452 = vmatpush1.bf16.msra.mxu0 %v1308
      %1453 = vmatprep.subr.bf16.mxu0 0
      %1454 = vmatpush1.bf16.msra.mxu0 %v1310
      %1455 = vmatprep.subr.bf16.mxu0 0
      %1456 = vmatpush1.bf16.msra.mxu0 %v1312
      %1457 = vmatprep.subr.bf16.mxu0 0
      %1458 = vmatpush1.bf16.msra.mxu0 %v1314
      %1459 = vmatprep.subr.bf16.mxu0 0
      %1460 = vmatpush1.bf16.msra.mxu0 %v1316
      %1461 = vmatprep.subr.bf16.mxu0 0
      %1462 = vmatpush1.bf16.msra.mxu0 %v1318
      %1463 = vmatprep.subr.bf16.mxu0 0
      %1464 = vmatpush1.bf16.msra.mxu0 %v1320
      %1465 = vmatprep.subr.bf16.mxu0 0
      %1466 = vmatpush1.bf16.msra.mxu0 %v1322
      %1467 = vmatprep.subr.bf16.mxu0 0
      %1468 = vmatpush1.bf16.msra.mxu0 %v1324
      %1469 = vmatprep.subr.bf16.mxu0 0
      %1470 = vmatpush1.bf16.msra.mxu0 %v1326
      %1471 = vmatprep.subr.bf16.mxu0 0
      %1472 = vmatpush1.bf16.msra.mxu0 %v1328
      %1473 = vmatprep.subr.bf16.mxu0 0
      %1474 = vmatpush1.bf16.msra.mxu0 %v1330
      %1475 = vmatprep.mubr.bf16.mxu0 %v1156
      %1476 = vmatmul.mubr.bf16.gmra.mrb[0].mxu0 %v1155
      %v1477 = vpop.f32.mrb[0].mxu0
      %v1478 = vadd.f32 0.0, %v1477
      %v1479 = vpop.f32.mrb[0].mxu0
      %v1480 = vpop.f32.mrb[0].mxu0
      %v1481 = vadd.f32 0.0, %v1480
      %v1482 = vpop.f32.mrb[0].mxu0
      %1483 = vmatprep.mubr.bf16.mxu0 %v1162
      %1484 = vmatmul.mubr.bf16.gmra.mrb[0].mxu0 %v1161
      %v1485 = vpop.f32.mrb[0].mxu0
      %v1486 = vadd.f32 0.0, %v1485
      %v1487 = vpop.f32.mrb[0].mxu0
      %v1488 = vpop.f32.mrb[0].mxu0
      %v1489 = vadd.f32 0.0, %v1488
      %v1490 = vpop.f32.mrb[0].mxu0
      %1491 = vmatprep.mubr.bf16.mxu0 %v1168
      %1492 = vmatmul.mubr.bf16.gmra.mrb[0].mxu0 %v1167
      %v1493 = vpop.f32.mrb[0].mxu0
      %v1494 = vadd.f32 0.0, %v1493
      %v1495 = vpop.f32.mrb[0].mxu0
      %v1496 = vpop.f32.mrb[0].mxu0
      %v1497 = vadd.f32 0.0, %v1496
      %v1498 = vpop.f32.mrb[0].mxu0
      %1499 = vmatprep.mubr.bf16.mxu0 %v1174
      %1500 = vmatmul.mubr.bf16.gmra.mrb[0].mxu0 %v1173
      %v1501 = vpop.f32.mrb[0].mxu0
      %v1502 = vadd.f32 0.0, %v1501
      %v1503 = vpop.f32.mrb[0].mxu0
      %v1504 = vpop.f32.mrb[0].mxu0
      %v1505 = vadd.f32 0.0, %v1504
      %v1506 = vpop.f32.mrb[0].mxu0
      %1507 = vmatprep.mubr.bf16.mxu0 %v1180
      %1508 = vmatmul.mubr.bf16.gmra.mrb[0].mxu0 %v1179
      %v1509 = vpop.f32.mrb[0].mxu0
      %v1510 = vadd.f32 0.0, %v1509
      %v1511 = vpop.f32.mrb[0].mxu0
      %v1512 = vpop.f32.mrb[0].mxu0
      %v1513 = vadd.f32 0.0, %v1512
      %v1514 = vpop.f32.mrb[0].mxu0
      %1515 = vmatprep.mubr.bf16.mxu0 %v1186
      %1516 = vmatmul.mubr.bf16.gmra.mrb[0].mxu0 %v1185
      %v1517 = vpop.f32.mrb[0].mxu0
      %v1518 = vadd.f32 0.0, %v1517
      %v1519 = vpop.f32.mrb[0].mxu0
      %v1520 = vpop.f32.mrb[0].mxu0
      %v1521 = vadd.f32 0.0, %v1520
      %v1522 = vpop.f32.mrb[0].mxu0
      %1523 = vmatprep.mubr.bf16.mxu0 %v1192
      %1524 = vmatmul.mubr.bf16.gmra.mrb[0].mxu0 %v1191
      %v1525 = vpop.f32.mrb[0].mxu0
      %v1526 = vadd.f32 0.0, %v1525
      %v1527 = vpop.f32.mrb[0].mxu0
      %v1528 = vpop.f32.mrb[0].mxu0
      %v1529 = vadd.f32 0.0, %v1528
      %v1530 = vpop.f32.mrb[0].mxu0
      %1531 = vmatprep.mubr.bf16.mxu0 %v1198
      %1532 = vmatmul.mubr.bf16.gmra.mrb[0].mxu0 %v1197
      %v1533 = vpop.f32.mrb[0].mxu0
      %v1534 = vadd.f32 0.0, %v1533
      %v1535 = vpop.f32.mrb[0].mxu0
      %v1536 = vpop.f32.mrb[0].mxu0
      %v1537 = vadd.f32 0.0, %v1536
      %v1538 = vpop.f32.mrb[0].mxu0
      %1539 = vdwg.mxu0
      %1540 = vmatprep.subr.bf16.mxu0 0
      %1541 = vmatpush1.bf16.msra.mxu0 %v1332
      %1542 = vmatprep.subr.bf16.mxu0 0
      %1543 = vmatpush1.bf16.msra.mxu0 %v1334
      %1544 = vmatprep.subr.bf16.mxu0 0
      %1545 = vmatpush1.bf16.msra.mxu0 %v1336
      %1546 = vmatprep.subr.bf16.mxu0 0
      %1547 = vmatpush1.bf16.msra.mxu0 %v1338
      %1548 = vmatprep.subr.bf16.mxu0 0
      %1549 = vmatpush1.bf16.msra.mxu0 %v1340
      %1550 = vmatprep.subr.bf16.mxu0 0
      %1551 = vmatpush1.bf16.msra.mxu0 %v1342
      %1552 = vmatprep.subr.bf16.mxu0 0
      %1553 = vmatpush1.bf16.msra.mxu0 %v1344
      %1554 = vmatprep.subr.bf16.mxu0 0
      %1555 = vmatpush1.bf16.msra.mxu0 %v1346
      %1556 = vmatprep.subr.bf16.mxu0 0
      %1557 = vmatpush1.bf16.msra.mxu0 %v1348
      %1558 = vmatprep.subr.bf16.mxu0 0
      %1559 = vmatpush1.bf16.msra.mxu0 %v1350
      %1560 = vmatprep.subr.bf16.mxu0 0
      %1561 = vmatpush1.bf16.msra.mxu0 %v1352
      %1562 = vmatprep.subr.bf16.mxu0 0
      %1563 = vmatpush1.bf16.msra.mxu0 %v1354
      %1564 = vmatprep.subr.bf16.mxu0 0
      %1565 = vmatpush1.bf16.msra.mxu0 %v1356
      %1566 = vmatprep.subr.bf16.mxu0 0
      %1567 = vmatpush1.bf16.msra.mxu0 %v1358
      %1568 = vmatprep.subr.bf16.mxu0 0
      %1569 = vmatpush1.bf16.msra.mxu0 %v1360
      %1570 = vmatprep.subr.bf16.mxu0 0
      %1571 = vmatpush1.bf16.msra.mxu0 %v1362
      %1572 = vmatprep.mubr.bf16.mxu0 %v1158
      %1573 = vmatmul.mubr.bf16.gmra.mrb[0].mxu0 %v1157
      %v1574 = vpop.f32.mrb[0].mxu0
      %v1575 = vadd.f32 %v1478, %v1574
      %v1576 = vpop.f32.mrb[0].mxu0
      %v1577 = vpop.f32.mrb[0].mxu0
      %v1578 = vadd.f32 %v1481, %v1577
      %v1579 = vpop.f32.mrb[0].mxu0
      %1580 = vmatprep.mubr.bf16.mxu0 %v1164
      %1581 = vmatmul.mubr.bf16.gmra.mrb[0].mxu0 %v1163
      %v1582 = vpop.f32.mrb[0].mxu0
      %v1583 = vadd.f32 %v1486, %v1582
      %v1584 = vpop.f32.mrb[0].mxu0
      %v1585 = vpop.f32.mrb[0].mxu0
      %v1586 = vadd.f32 %v1489, %v1585
      %v1587 = vpop.f32.mrb[0].mxu0
      %1588 = vmatprep.mubr.bf16.mxu0 %v1170
      %1589 = vmatmul.mubr.bf16.gmra.mrb[0].mxu0 %v1169
      %v1590 = vpop.f32.mrb[0].mxu0
      %v1591 = vadd.f32 %v1494, %v1590
      %v1592 = vpop.f32.mrb[0].mxu0
      %v1593 = vpop.f32.mrb[0].mxu0
      %v1594 = vadd.f32 %v1497, %v1593
      %v1595 = vpop.f32.mrb[0].mxu0
      %1596 = vmatprep.mubr.bf16.mxu0 %v1176
      %1597 = vmatmul.mubr.bf16.gmra.mrb[0].mxu0 %v1175
      %v1598 = vpop.f32.mrb[0].mxu0
      %v1599 = vadd.f32 %v1502, %v1598
      %v1600 = vpop.f32.mrb[0].mxu0
      %v1601 = vpop.f32.mrb[0].mxu0
      %v1602 = vadd.f32 %v1505, %v1601
      %v1603 = vpop.f32.mrb[0].mxu0
      %1604 = vmatprep.mubr.bf16.mxu0 %v1182
      %1605 = vmatmul.mubr.bf16.gmra.mrb[0].mxu0 %v1181
      %v1606 = vpop.f32.mrb[0].mxu0
      %v1607 = vadd.f32 %v1510, %v1606
      %v1608 = vpop.f32.mrb[0].mxu0
      %v1609 = vpop.f32.mrb[0].mxu0
      %v1610 = vadd.f32 %v1513, %v1609
      %v1611 = vpop.f32.mrb[0].mxu0
      %1612 = vmatprep.mubr.bf16.mxu0 %v1188
      %1613 = vmatmul.mubr.bf16.gmra.mrb[0].mxu0 %v1187
      %v1614 = vpop.f32.mrb[0].mxu0
      %v1615 = vadd.f32 %v1518, %v1614
      %v1616 = vpop.f32.mrb[0].mxu0
      %v1617 = vpop.f32.mrb[0].mxu0
      %v1618 = vadd.f32 %v1521, %v1617
      %v1619 = vpop.f32.mrb[0].mxu0
      %1620 = vmatprep.mubr.bf16.mxu0 %v1194
      %1621 = vmatmul.mubr.bf16.gmra.mrb[0].mxu0 %v1193
      %v1622 = vpop.f32.mrb[0].mxu0
      %v1623 = vadd.f32 %v1526, %v1622
      %v1624 = vpop.f32.mrb[0].mxu0
      %v1625 = vpop.f32.mrb[0].mxu0
      %v1626 = vadd.f32 %v1529, %v1625
      %v1627 = vpop.f32.mrb[0].mxu0
      %1628 = vmatprep.mubr.bf16.mxu0 %v1200
      %1629 = vmatmul.mubr.bf16.gmra.mrb[0].mxu0 %v1199
      %v1630 = vpop.f32.mrb[0].mxu0
      %v1631 = vadd.f32 %v1534, %v1630
      %v1632 = vpop.f32.mrb[0].mxu0
      %v1633 = vpop.f32.mrb[0].mxu0
      %v1634 = vadd.f32 %v1537, %v1633
      %v1635 = vpop.f32.mrb[0].mxu0
      %1636 = vdwg.mxu0
      %1637 = vmatprep.subr.bf16.mxu0 0
      %1638 = vmatpush1.bf16.msra.mxu0 %v1364
      %1639 = vmatprep.subr.bf16.mxu0 0
      %1640 = vmatpush1.bf16.msra.mxu0 %v1366
      %1641 = vmatprep.subr.bf16.mxu0 0
      %1642 = vmatpush1.bf16.msra.mxu0 %v1368
      %1643 = vmatprep.subr.bf16.mxu0 0
      %1644 = vmatpush1.bf16.msra.mxu0 %v1370
      %1645 = vmatprep.subr.bf16.mxu0 0
      %1646 = vmatpush1.bf16.msra.mxu0 %v1372
      %1647 = vmatprep.subr.bf16.mxu0 0
      %1648 = vmatpush1.bf16.msra.mxu0 %v1374
      %1649 = vmatprep.subr.bf16.mxu0 0
      %1650 = vmatpush1.bf16.msra.mxu0 %v1376
      %1651 = vmatprep.subr.bf16.mxu0 0
      %1652 = vmatpush1.bf16.msra.mxu0 %v1378
      %1653 = vmatprep.subr.bf16.mxu0 0
      %1654 = vmatpush1.bf16.msra.mxu0 %v1380
      %1655 = vmatprep.subr.bf16.mxu0 0
      %1656 = vmatpush1.bf16.msra.mxu0 %v1382
      %1657 = vmatprep.subr.bf16.mxu0 0
      %1658 = vmatpush1.bf16.msra.mxu0 %v1384
      %1659 = vmatprep.subr.bf16.mxu0 0
      %1660 = vmatpush1.bf16.msra.mxu0 %v1386
      %1661 = vmatprep.subr.bf16.mxu0 0
      %1662 = vmatpush1.bf16.msra.mxu0 %v1388
      %1663 = vmatprep.subr.bf16.mxu0 0
      %1664 = vmatpush1.bf16.msra.mxu0 %v1390
      %1665 = vmatprep.subr.bf16.mxu0 0
      %1666 = vmatpush1.bf16.msra.mxu0 %v1392
      %1667 = vmatprep.subr.bf16.mxu0 0
      %1668 = vmatpush1.bf16.msra.mxu0 %v1394
      %1669 = vmatprep.mubr.bf16.mxu0 %v1160
      %1670 = vmatmul.mubr.bf16.gmra.mrb[0].mxu0 %v1159
      %v1671 = vpop.f32.mrb[0].mxu0
      %v1672 = vadd.f32 %v1575, %v1671
      %v1673 = vpop.f32.mrb[0].mxu0
      %v1674 = vpop.f32.mrb[0].mxu0
      %v1675 = vadd.f32 %v1578, %v1674
      %v1676 = vpop.f32.mrb[0].mxu0
      %1677 = vmatprep.mubr.bf16.mxu0 %v1166
      %1678 = vmatmul.mubr.bf16.gmra.mrb[0].mxu0 %v1165
      %v1679 = vpop.f32.mrb[0].mxu0
      %v1680 = vadd.f32 %v1583, %v1679
      %v1681 = vpop.f32.mrb[0].mxu0
      %v1682 = vpop.f32.mrb[0].mxu0
      %v1683 = vadd.f32 %v1586, %v1682
      %v1684 = vpop.f32.mrb[0].mxu0
      %1685 = vmatprep.mubr.bf16.mxu0 %v1172
      %1686 = vmatmul.mubr.bf16.gmra.mrb[0].mxu0 %v1171
      %v1687 = vpop.f32.mrb[0].mxu0
      %v1688 = vadd.f32 %v1591, %v1687
      %v1689 = vpop.f32.mrb[0].mxu0
      %v1690 = vpop.f32.mrb[0].mxu0
      %v1691 = vadd.f32 %v1594, %v1690
      %v1692 = vpop.f32.mrb[0].mxu0
      %1693 = vmatprep.mubr.bf16.mxu0 %v1178
      %1694 = vmatmul.mubr.bf16.gmra.mrb[0].mxu0 %v1177
      %v1695 = vpop.f32.mrb[0].mxu0
      %v1696 = vadd.f32 %v1599, %v1695
      %v1697 = vpop.f32.mrb[0].mxu0
      %v1698 = vpop.f32.mrb[0].mxu0
      %v1699 = vadd.f32 %v1602, %v1698
      %v1700 = vpop.f32.mrb[0].mxu0
      %1701 = vmatprep.mubr.bf16.mxu0 %v1184
      %1702 = vmatmul.mubr.bf16.gmra.mrb[0].mxu0 %v1183
      %v1703 = vpop.f32.mrb[0].mxu0
      %v1704 = vadd.f32 %v1607, %v1703
      %v1705 = vpop.f32.mrb[0].mxu0
      %v1706 = vpop.f32.mrb[0].mxu0
      %v1707 = vadd.f32 %v1610, %v1706
      %v1708 = vpop.f32.mrb[0].mxu0
      %1709 = vmatprep.mubr.bf16.mxu0 %v1190
      %1710 = vmatmul.mubr.bf16.gmra.mrb[0].mxu0 %v1189
      %v1711 = vpop.f32.mrb[0].mxu0
      %v1712 = vadd.f32 %v1615, %v1711
      %v1713 = vpop.f32.mrb[0].mxu0
      %v1714 = vpop.f32.mrb[0].mxu0
      %v1715 = vadd.f32 %v1618, %v1714
      %v1716 = vpop.f32.mrb[0].mxu0
      %1717 = vmatprep.mubr.bf16.mxu0 %v1196
      %1718 = vmatmul.mubr.bf16.gmra.mrb[0].mxu0 %v1195
      %v1719 = vpop.f32.mrb[0].mxu0
      %v1720 = vadd.f32 %v1623, %v1719
      %v1721 = vpop.f32.mrb[0].mxu0
      %v1722 = vpop.f32.mrb[0].mxu0
      %v1723 = vadd.f32 %v1626, %v1722
      %v1724 = vpop.f32.mrb[0].mxu0
      %1725 = vmatprep.mubr.bf16.mxu0 %v1202
      %1726 = vmatmul.mubr.bf16.gmra.mrb[0].mxu0 %v1201
      %v1727 = vpop.f32.mrb[0].mxu0
      %v1728 = vadd.f32 %v1631, %v1727
      %v1729 = vpop.f32.mrb[0].mxu0
      %v1730 = vpop.f32.mrb[0].mxu0
      %v1731 = vadd.f32 %v1634, %v1730
      %v1732 = vpop.f32.mrb[0].mxu0
      %1733 = vdwg.mxu0
      %v1782 = vunpack.c.l.b16 %v866
      %v1783 = vunpack.c.h.b16 %v866
      %v1784 = vunpack.c.l.b16 %v867
      %v1785 = vunpack.c.h.b16 %v867
      %v1786 = vunpack.c.l.b16 %v868
      %v1787 = vunpack.c.h.b16 %v868
      %v1788 = vunpack.c.l.b16 %v869
      %v1789 = vunpack.c.h.b16 %v869
      %v1790 = vunpack.c.l.b16 %v870
      %v1791 = vunpack.c.h.b16 %v870
      %v1792 = vunpack.c.l.b16 %v871
      %v1793 = vunpack.c.h.b16 %v871
      %v1794 = vunpack.c.l.b16 %v872
      %v1795 = vunpack.c.h.b16 %v872
      %v1796 = vunpack.c.l.b16 %v873
      %v1797 = vunpack.c.h.b16 %v873
      %v1798 = vunpack.c.l.b16 %v874
      %v1799 = vunpack.c.h.b16 %v874
      %v1800 = vunpack.c.l.b16 %v875
      %v1801 = vunpack.c.h.b16 %v875
      %v1802 = vunpack.c.l.b16 %v876
      %v1803 = vunpack.c.h.b16 %v876
      %v1804 = vunpack.c.l.b16 %v877
      %v1805 = vunpack.c.h.b16 %v877
      %v1806 = vunpack.c.l.b16 %v878
      %v1807 = vunpack.c.h.b16 %v878
      %v1808 = vunpack.c.l.b16 %v879
      %v1809 = vunpack.c.h.b16 %v879
      %v1810 = vunpack.c.l.b16 %v880
      %v1811 = vunpack.c.h.b16 %v880
      %v1812 = vunpack.c.l.b16 %v881
      %v1813 = vunpack.c.h.b16 %v881
      %v1814 = vunpack.c.l.b16 %v882
      %v1815 = vunpack.c.h.b16 %v882
      %v1816 = vunpack.c.l.b16 %v883
      %v1817 = vunpack.c.h.b16 %v883
      %v1818 = vunpack.c.l.b16 %v884
      %v1819 = vunpack.c.h.b16 %v884
      %v1820 = vunpack.c.l.b16 %v885
      %v1821 = vunpack.c.h.b16 %v885
      %v1822 = vunpack.c.l.b16 %v886
      %v1823 = vunpack.c.h.b16 %v886
      %v1824 = vunpack.c.l.b16 %v887
      %v1825 = vunpack.c.h.b16 %v887
      %v1826 = vunpack.c.l.b16 %v888
      %v1827 = vunpack.c.h.b16 %v888
      %v1828 = vunpack.c.l.b16 %v889
      %v1829 = vunpack.c.h.b16 %v889
      %v1830 = vunpack.c.l.b16 %v890
      %v1831 = vunpack.c.h.b16 %v890
      %v1832 = vunpack.c.l.b16 %v891
      %v1833 = vunpack.c.h.b16 %v891
      %v1834 = vunpack.c.l.b16 %v892
      %v1835 = vunpack.c.h.b16 %v892
      %v1836 = vunpack.c.l.b16 %v893
      %v1837 = vunpack.c.h.b16 %v893
      %v1838 = vunpack.c.l.b16 %v894
      %v1839 = vunpack.c.h.b16 %v894
      %v1840 = vunpack.c.l.b16 %v895
      %v1841 = vunpack.c.h.b16 %v895
      %v1842 = vunpack.c.l.b16 %v896
      %v1843 = vunpack.c.h.b16 %v896
      %v1844 = vunpack.c.l.b16 %v897
      %v1845 = vunpack.c.h.b16 %v897
      %v1846 = vunpack.c.l.b16 %v898
      %v1847 = vunpack.c.h.b16 %v898
      %v1848 = vunpack.c.l.b16 %v899
      %v1849 = vunpack.c.h.b16 %v899
      %v1850 = vunpack.c.l.b16 %v900
      %v1851 = vunpack.c.h.b16 %v900
      %v1852 = vunpack.c.l.b16 %v901
      %v1853 = vunpack.c.h.b16 %v901
      %v1854 = vunpack.c.l.b16 %v902
      %v1855 = vunpack.c.h.b16 %v902
      %v1856 = vunpack.c.l.b16 %v903
      %v1857 = vunpack.c.h.b16 %v903
      %v1858 = vunpack.c.l.b16 %v904
      %v1859 = vunpack.c.h.b16 %v904
      %v1860 = vunpack.c.l.b16 %v905
      %v1861 = vunpack.c.h.b16 %v905
      %v1862 = vunpack.c.l.b16 %v906
      %v1863 = vunpack.c.h.b16 %v906
      %v1864 = vunpack.c.l.b16 %v907
      %v1865 = vunpack.c.h.b16 %v907
      %v1866 = vunpack.c.l.b16 %v908
      %v1867 = vunpack.c.h.b16 %v908
      %v1868 = vunpack.c.l.b16 %v909
      %v1869 = vunpack.c.h.b16 %v909
      %v1870 = vunpack.c.l.b16 %v910
      %v1871 = vunpack.c.h.b16 %v910
      %v1872 = vunpack.c.l.b16 %v911
      %v1873 = vunpack.c.h.b16 %v911
      %v1874 = vunpack.c.l.b16 %v912
      %v1875 = vunpack.c.h.b16 %v912
      %v1876 = vunpack.c.l.b16 %v913
      %v1877 = vunpack.c.h.b16 %v913
      %v1878 = vpack.c.b16 %v1788, %v1782
      %v1879 = vpack.c.b16 %v1789, %v1783
      %v1880 = vpack.c.b16 %v1790, %v1784
      %v1881 = vpack.c.b16 %v1791, %v1785
      %v1882 = vpack.c.b16 %v1792, %v1786
      %v1883 = vpack.c.b16 %v1793, %v1787
      %v1884 = vpack.c.b16 %v1800, %v1794
      %v1885 = vpack.c.b16 %v1801, %v1795
      %v1886 = vpack.c.b16 %v1802, %v1796
      %v1887 = vpack.c.b16 %v1803, %v1797
      %v1888 = vpack.c.b16 %v1804, %v1798
      %v1889 = vpack.c.b16 %v1805, %v1799
      %v1890 = vpack.c.b16 %v1812, %v1806
      %v1891 = vpack.c.b16 %v1813, %v1807
      %v1892 = vpack.c.b16 %v1814, %v1808
      %v1893 = vpack.c.b16 %v1815, %v1809
      %v1894 = vpack.c.b16 %v1816, %v1810
      %v1895 = vpack.c.b16 %v1817, %v1811
      %v1896 = vpack.c.b16 %v1824, %v1818
      %v1897 = vpack.c.b16 %v1825, %v1819
      %v1898 = vpack.c.b16 %v1826, %v1820
      %v1899 = vpack.c.b16 %v1827, %v1821
      %v1900 = vpack.c.b16 %v1828, %v1822
      %v1901 = vpack.c.b16 %v1829, %v1823
      %v1902 = vpack.c.b16 %v1836, %v1830
      %v1903 = vpack.c.b16 %v1837, %v1831
      %v1904 = vpack.c.b16 %v1838, %v1832
      %v1905 = vpack.c.b16 %v1839, %v1833
      %v1906 = vpack.c.b16 %v1840, %v1834
      %v1907 = vpack.c.b16 %v1841, %v1835
      %v1908 = vpack.c.b16 %v1848, %v1842
      %v1909 = vpack.c.b16 %v1849, %v1843
      %v1910 = vpack.c.b16 %v1850, %v1844
      %v1911 = vpack.c.b16 %v1851, %v1845
      %v1912 = vpack.c.b16 %v1852, %v1846
      %v1913 = vpack.c.b16 %v1853, %v1847
      %v1914 = vpack.c.b16 %v1860, %v1854
      %v1915 = vpack.c.b16 %v1861, %v1855
      %v1916 = vpack.c.b16 %v1862, %v1856
      %v1917 = vpack.c.b16 %v1863, %v1857
      %v1918 = vpack.c.b16 %v1864, %v1858
      %v1919 = vpack.c.b16 %v1865, %v1859
      %v1920 = vpack.c.b16 %v1872, %v1866
      %v1921 = vpack.c.b16 %v1873, %v1867
      %v1922 = vpack.c.b16 %v1874, %v1868
      %v1923 = vpack.c.b16 %v1875, %v1869
      %v1924 = vpack.c.b16 %v1876, %v1870
      %v1925 = vpack.c.b16 %v1877, %v1871
      %1974 = vmatprep.subr.bf16.mxu0 0
      %1975 = vmatpush1.bf16.msra.mxu0 %v914
      %1976 = vmatprep.subr.bf16.mxu0 0
      %1977 = vmatpush1.bf16.msra.mxu0 %v915
      %1978 = vmatprep.subr.bf16.mxu0 0
      %1979 = vmatpush1.bf16.msra.mxu0 %v916
      %1980 = vmatprep.subr.bf16.mxu0 0
      %1981 = vmatpush1.bf16.msra.mxu0 %v917
      %1982 = vmatprep.subr.bf16.mxu0 0
      %1983 = vmatpush1.bf16.msra.mxu0 %v918
      %1984 = vmatprep.subr.bf16.mxu0 0
      %1985 = vmatpush1.bf16.msra.mxu0 %v919
      %1986 = vmatprep.subr.bf16.mxu0 0
      %1987 = vmatpush1.bf16.msra.mxu0 %v920
      %1988 = vmatprep.subr.bf16.mxu0 0
      %1989 = vmatpush1.bf16.msra.mxu0 %v921
      %1990 = vmatprep.subr.bf16.mxu0 0
      %1991 = vmatpush1.bf16.msra.mxu0 %v922
      %1992 = vmatprep.subr.bf16.mxu0 0
      %1993 = vmatpush1.bf16.msra.mxu0 %v923
      %1994 = vmatprep.subr.bf16.mxu0 0
      %1995 = vmatpush1.bf16.msra.mxu0 %v924
      %1996 = vmatprep.subr.bf16.mxu0 0
      %1997 = vmatpush1.bf16.msra.mxu0 %v925
      %1998 = vmatprep.subr.bf16.mxu0 0
      %1999 = vmatpush1.bf16.msra.mxu0 %v926
      %2000 = vmatprep.subr.bf16.mxu0 0
      %2001 = vmatpush1.bf16.msra.mxu0 %v927
      %2002 = vmatprep.subr.bf16.mxu0 0
      %2003 = vmatpush1.bf16.msra.mxu0 %v928
      %2004 = vmatprep.subr.bf16.mxu0 0
      %2005 = vmatpush1.bf16.msra.mxu0 %v929
      %2006 = vmatprep.mubr.bf16.mxu0 %v1879
      %2007 = vmatmul.mubr.bf16.gmra.mrb[0].mxu0 %v1878
      %v2008 = vpop.f32.mrb[0].mxu0
      %v2009 = vadd.f32 %v1672, %v2008
      %v2010 = vpop.f32.mrb[0].mxu0
      %v2011 = vpop.f32.mrb[0].mxu0
      %v2012 = vadd.f32 %v1675, %v2011
      %v2013 = vpop.f32.mrb[0].mxu0
      %2014 = vmatprep.mubr.bf16.mxu0 %v1885
      %2015 = vmatmul.mubr.bf16.gmra.mrb[0].mxu0 %v1884
      %v2016 = vpop.f32.mrb[0].mxu0
      %v2017 = vadd.f32 %v1680, %v2016
      %v2018 = vpop.f32.mrb[0].mxu0
      %v2019 = vpop.f32.mrb[0].mxu0
      %v2020 = vadd.f32 %v1683, %v2019
      %v2021 = vpop.f32.mrb[0].mxu0
      %2022 = vmatprep.mubr.bf16.mxu0 %v1891
      %2023 = vmatmul.mubr.bf16.gmra.mrb[0].mxu0 %v1890
      %v2024 = vpop.f32.mrb[0].mxu0
      %v2025 = vadd.f32 %v1688, %v2024
      %v2026 = vpop.f32.mrb[0].mxu0
      %v2027 = vpop.f32.mrb[0].mxu0
      %v2028 = vadd.f32 %v1691, %v2027
      %v2029 = vpop.f32.mrb[0].mxu0
      %2030 = vmatprep.mubr.bf16.mxu0 %v1897
      %2031 = vmatmul.mubr.bf16.gmra.mrb[0].mxu0 %v1896
      %v2032 = vpop.f32.mrb[0].mxu0
      %v2033 = vadd.f32 %v1696, %v2032
      %v2034 = vpop.f32.mrb[0].mxu0
      %v2035 = vpop.f32.mrb[0].mxu0
      %v2036 = vadd.f32 %v1699, %v2035
      %v2037 = vpop.f32.mrb[0].mxu0
      %2038 = vmatprep.mubr.bf16.mxu0 %v1903
      %2039 = vmatmul.mubr.bf16.gmra.mrb[0].mxu0 %v1902
      %v2040 = vpop.f32.mrb[0].mxu0
      %v2041 = vadd.f32 %v1704, %v2040
      %v2042 = vpop.f32.mrb[0].mxu0
      %v2043 = vpop.f32.mrb[0].mxu0
      %v2044 = vadd.f32 %v1707, %v2043
      %v2045 = vpop.f32.mrb[0].mxu0
      %2046 = vmatprep.mubr.bf16.mxu0 %v1909
      %2047 = vmatmul.mubr.bf16.gmra.mrb[0].mxu0 %v1908
      %v2048 = vpop.f32.mrb[0].mxu0
      %v2049 = vadd.f32 %v1712, %v2048
      %v2050 = vpop.f32.mrb[0].mxu0
      %v2051 = vpop.f32.mrb[0].mxu0
      %v2052 = vadd.f32 %v1715, %v2051
      %v2053 = vpop.f32.mrb[0].mxu0
      %2054 = vmatprep.mubr.bf16.mxu0 %v1915
      %2055 = vmatmul.mubr.bf16.gmra.mrb[0].mxu0 %v1914
      %v2056 = vpop.f32.mrb[0].mxu0
      %v2057 = vadd.f32 %v1720, %v2056
      %v2058 = vpop.f32.mrb[0].mxu0
      %v2059 = vpop.f32.mrb[0].mxu0
      %v2060 = vadd.f32 %v1723, %v2059
      %v2061 = vpop.f32.mrb[0].mxu0
      %2062 = vmatprep.mubr.bf16.mxu0 %v1921
      %2063 = vmatmul.mubr.bf16.gmra.mrb[0].mxu0 %v1920
      %v2064 = vpop.f32.mrb[0].mxu0
      %v2065 = vadd.f32 %v1728, %v2064
      %v2066 = vpop.f32.mrb[0].mxu0
      %v2067 = vpop.f32.mrb[0].mxu0
      %v2068 = vadd.f32 %v1731, %v2067
      %v2069 = vpop.f32.mrb[0].mxu0
      %2070 = vdwg.mxu0
      %2071 = vmatprep.subr.bf16.mxu0 0
      %2072 = vmatpush1.bf16.msra.mxu0 %v930
      %2073 = vmatprep.subr.bf16.mxu0 0
      %2074 = vmatpush1.bf16.msra.mxu0 %v931
      %2075 = vmatprep.subr.bf16.mxu0 0
      %2076 = vmatpush1.bf16.msra.mxu0 %v932
      %2077 = vmatprep.subr.bf16.mxu0 0
      %2078 = vmatpush1.bf16.msra.mxu0 %v933
      %2079 = vmatprep.subr.bf16.mxu0 0
      %2080 = vmatpush1.bf16.msra.mxu0 %v934
      %2081 = vmatprep.subr.bf16.mxu0 0
      %2082 = vmatpush1.bf16.msra.mxu0 %v935
      %2083 = vmatprep.subr.bf16.mxu0 0
      %2084 = vmatpush1.bf16.msra.mxu0 %v936
      %2085 = vmatprep.subr.bf16.mxu0 0
      %2086 = vmatpush1.bf16.msra.mxu0 %v937
      %2087 = vmatprep.subr.bf16.mxu0 0
      %2088 = vmatpush1.bf16.msra.mxu0 %v938
      %2089 = vmatprep.subr.bf16.mxu0 0
      %2090 = vmatpush1.bf16.msra.mxu0 %v939
      %2091 = vmatprep.subr.bf16.mxu0 0
      %2092 = vmatpush1.bf16.msra.mxu0 %v940
      %2093 = vmatprep.subr.bf16.mxu0 0
      %2094 = vmatpush1.bf16.msra.mxu0 %v941
      %2095 = vmatprep.subr.bf16.mxu0 0
      %2096 = vmatpush1.bf16.msra.mxu0 %v942
      %2097 = vmatprep.subr.bf16.mxu0 0
      %2098 = vmatpush1.bf16.msra.mxu0 %v943
      %2099 = vmatprep.subr.bf16.mxu0 0
      %2100 = vmatpush1.bf16.msra.mxu0 %v944
      %2101 = vmatprep.subr.bf16.mxu0 0
      %2102 = vmatpush1.bf16.msra.mxu0 %v945
      %2103 = vmatprep.mubr.bf16.mxu0 %v1881
      %2104 = vmatmul.mubr.bf16.gmra.mrb[0].mxu0 %v1880
      %v2105 = vpop.f32.mrb[0].mxu0
      %v2106 = vadd.f32 %v2009, %v2105
      %v2107 = vpop.f32.mrb[0].mxu0
      %v2108 = vpop.f32.mrb[0].mxu0
      %v2109 = vadd.f32 %v2012, %v2108
      %v2110 = vpop.f32.mrb[0].mxu0
      %2111 = vmatprep.mubr.bf16.mxu0 %v1887
      %2112 = vmatmul.mubr.bf16.gmra.mrb[0].mxu0 %v1886
      %v2113 = vpop.f32.mrb[0].mxu0
      %v2114 = vadd.f32 %v2017, %v2113
      %v2115 = vpop.f32.mrb[0].mxu0
      %v2116 = vpop.f32.mrb[0].mxu0
      %v2117 = vadd.f32 %v2020, %v2116
      %v2118 = vpop.f32.mrb[0].mxu0
      %2119 = vmatprep.mubr.bf16.mxu0 %v1893
      %2120 = vmatmul.mubr.bf16.gmra.mrb[0].mxu0 %v1892
      %v2121 = vpop.f32.mrb[0].mxu0
      %v2122 = vadd.f32 %v2025, %v2121
      %v2123 = vpop.f32.mrb[0].mxu0
      %v2124 = vpop.f32.mrb[0].mxu0
      %v2125 = vadd.f32 %v2028, %v2124
      %v2126 = vpop.f32.mrb[0].mxu0
      %2127 = vmatprep.mubr.bf16.mxu0 %v1899
      %2128 = vmatmul.mubr.bf16.gmra.mrb[0].mxu0 %v1898
      %v2129 = vpop.f32.mrb[0].mxu0
      %v2130 = vadd.f32 %v2033, %v2129
      %v2131 = vpop.f32.mrb[0].mxu0
      %v2132 = vpop.f32.mrb[0].mxu0
      %v2133 = vadd.f32 %v2036, %v2132
      %v2134 = vpop.f32.mrb[0].mxu0
      %2135 = vmatprep.mubr.bf16.mxu0 %v1905
      %2136 = vmatmul.mubr.bf16.gmra.mrb[0].mxu0 %v1904
      %v2137 = vpop.f32.mrb[0].mxu0
      %v2138 = vadd.f32 %v2041, %v2137
      %v2139 = vpop.f32.mrb[0].mxu0
      %v2140 = vpop.f32.mrb[0].mxu0
      %v2141 = vadd.f32 %v2044, %v2140
      %v2142 = vpop.f32.mrb[0].mxu0
      %2143 = vmatprep.mubr.bf16.mxu0 %v1911
      %2144 = vmatmul.mubr.bf16.gmra.mrb[0].mxu0 %v1910
      %v2145 = vpop.f32.mrb[0].mxu0
      %v2146 = vadd.f32 %v2049, %v2145
      %v2147 = vpop.f32.mrb[0].mxu0
      %v2148 = vpop.f32.mrb[0].mxu0
      %v2149 = vadd.f32 %v2052, %v2148
      %v2150 = vpop.f32.mrb[0].mxu0
      %2151 = vmatprep.mubr.bf16.mxu0 %v1917
      %2152 = vmatmul.mubr.bf16.gmra.mrb[0].mxu0 %v1916
      %v2153 = vpop.f32.mrb[0].mxu0
      %v2154 = vadd.f32 %v2057, %v2153
      %v2155 = vpop.f32.mrb[0].mxu0
      %v2156 = vpop.f32.mrb[0].mxu0
      %v2157 = vadd.f32 %v2060, %v2156
      %v2158 = vpop.f32.mrb[0].mxu0
      %2159 = vmatprep.mubr.bf16.mxu0 %v1923
      %2160 = vmatmul.mubr.bf16.gmra.mrb[0].mxu0 %v1922
      %v2161 = vpop.f32.mrb[0].mxu0
      %v2162 = vadd.f32 %v2065, %v2161
      %v2163 = vpop.f32.mrb[0].mxu0
      %v2164 = vpop.f32.mrb[0].mxu0
      %v2165 = vadd.f32 %v2068, %v2164
      %v2166 = vpop.f32.mrb[0].mxu0
      %2167 = vdwg.mxu0
      %2168 = vmatprep.subr.bf16.mxu0 0
      %2169 = vmatpush1.bf16.msra.mxu0 %v946
      %2170 = vmatprep.subr.bf16.mxu0 0
      %2171 = vmatpush1.bf16.msra.mxu0 %v947
      %2172 = vmatprep.subr.bf16.mxu0 0
      %2173 = vmatpush1.bf16.msra.mxu0 %v948
      %2174 = vmatprep.subr.bf16.mxu0 0
      %2175 = vmatpush1.bf16.msra.mxu0 %v949
      %2176 = vmatprep.subr.bf16.mxu0 0
      %2177 = vmatpush1.bf16.msra.mxu0 %v950
      %2178 = vmatprep.subr.bf16.mxu0 0
      %2179 = vmatpush1.bf16.msra.mxu0 %v951
      %2180 = vmatprep.subr.bf16.mxu0 0
      %2181 = vmatpush1.bf16.msra.mxu0 %v952
      %2182 = vmatprep.subr.bf16.mxu0 0
      %2183 = vmatpush1.bf16.msra.mxu0 %v953
      %2184 = vmatprep.subr.bf16.mxu0 0
      %2185 = vmatpush1.bf16.msra.mxu0 %v954
      %2186 = vmatprep.subr.bf16.mxu0 0
      %2187 = vmatpush1.bf16.msra.mxu0 %v955
      %2188 = vmatprep.subr.bf16.mxu0 0
      %2189 = vmatpush1.bf16.msra.mxu0 %v956
      %2190 = vmatprep.subr.bf16.mxu0 0
      %2191 = vmatpush1.bf16.msra.mxu0 %v957
      %2192 = vmatprep.subr.bf16.mxu0 0
      %2193 = vmatpush1.bf16.msra.mxu0 %v958
      %2194 = vmatprep.subr.bf16.mxu0 0
      %2195 = vmatpush1.bf16.msra.mxu0 %v959
      %2196 = vmatprep.subr.bf16.mxu0 0
      %2197 = vmatpush1.bf16.msra.mxu0 %v960
      %2198 = vmatprep.subr.bf16.mxu0 0
      %2199 = vmatpush1.bf16.msra.mxu0 %v961
      %2200 = vmatprep.mubr.bf16.mxu0 %v1883
      %2201 = vmatmul.mubr.bf16.gmra.mrb[0].mxu0 %v1882
      %v2202 = vpop.f32.mrb[0].mxu0
      %v2203 = vadd.f32 %v2106, %v2202
      %v2204 = vpop.f32.mrb[0].mxu0
      %v2205 = vpop.f32.mrb[0].mxu0
      %v2206 = vadd.f32 %v2109, %v2205
      %v2207 = vpop.f32.mrb[0].mxu0
      %2208 = vmatprep.mubr.bf16.mxu0 %v1889
      %2209 = vmatmul.mubr.bf16.gmra.mrb[0].mxu0 %v1888
      %v2210 = vpop.f32.mrb[0].mxu0
      %v2211 = vadd.f32 %v2114, %v2210
      %v2212 = vpop.f32.mrb[0].mxu0
      %v2213 = vpop.f32.mrb[0].mxu0
      %v2214 = vadd.f32 %v2117, %v2213
      %v2215 = vpop.f32.mrb[0].mxu0
      %2216 = vmatprep.mubr.bf16.mxu0 %v1895
      %2217 = vmatmul.mubr.bf16.gmra.mrb[0].mxu0 %v1894
      %v2218 = vpop.f32.mrb[0].mxu0
      %v2219 = vadd.f32 %v2122, %v2218
      %v2220 = vpop.f32.mrb[0].mxu0
      %v2221 = vpop.f32.mrb[0].mxu0
      %v2222 = vadd.f32 %v2125, %v2221
      %v2223 = vpop.f32.mrb[0].mxu0
      %2224 = vmatprep.mubr.bf16.mxu0 %v1901
      %2225 = vmatmul.mubr.bf16.gmra.mrb[0].mxu0 %v1900
      %v2226 = vpop.f32.mrb[0].mxu0
      %v2227 = vadd.f32 %v2130, %v2226
      %v2228 = vpop.f32.mrb[0].mxu0
      %v2229 = vpop.f32.mrb[0].mxu0
      %v2230 = vadd.f32 %v2133, %v2229
      %v2231 = vpop.f32.mrb[0].mxu0
      %2232 = vmatprep.mubr.bf16.mxu0 %v1907
      %2233 = vmatmul.mubr.bf16.gmra.mrb[0].mxu0 %v1906
      %v2234 = vpop.f32.mrb[0].mxu0
      %v2235 = vadd.f32 %v2138, %v2234
      %v2236 = vpop.f32.mrb[0].mxu0
      %v2237 = vpop.f32.mrb[0].mxu0
      %v2238 = vadd.f32 %v2141, %v2237
      %v2239 = vpop.f32.mrb[0].mxu0
      %2240 = vmatprep.mubr.bf16.mxu0 %v1913
      %2241 = vmatmul.mubr.bf16.gmra.mrb[0].mxu0 %v1912
      %v2242 = vpop.f32.mrb[0].mxu0
      %v2243 = vadd.f32 %v2146, %v2242
      %v2244 = vpop.f32.mrb[0].mxu0
      %v2245 = vpop.f32.mrb[0].mxu0
      %v2246 = vadd.f32 %v2149, %v2245
      %v2247 = vpop.f32.mrb[0].mxu0
      %2248 = vmatprep.mubr.bf16.mxu0 %v1919
      %2249 = vmatmul.mubr.bf16.gmra.mrb[0].mxu0 %v1918
      %v2250 = vpop.f32.mrb[0].mxu0
      %v2251 = vadd.f32 %v2154, %v2250
      %v2252 = vpop.f32.mrb[0].mxu0
      %v2253 = vpop.f32.mrb[0].mxu0
      %v2254 = vadd.f32 %v2157, %v2253
      %v2255 = vpop.f32.mrb[0].mxu0
      %2256 = vmatprep.mubr.bf16.mxu0 %v1925
      %2257 = vmatmul.mubr.bf16.gmra.mrb[0].mxu0 %v1924
      %v2258 = vpop.f32.mrb[0].mxu0
      %v2259 = vadd.f32 %v2162, %v2258
      %v2260 = vpop.f32.mrb[0].mxu0
      %v2261 = vpop.f32.mrb[0].mxu0
      %v2262 = vadd.f32 %v2165, %v2261
      %v2263 = vpop.f32.mrb[0].mxu0
      %2264 = vdwg.mxu0
      %s2265 = scalar_lea.vmem %s313, 768
      %v2266 = vld [vmem:[%s2265] sm:$0xff]
      %v2267 = vld [vmem:[%s2265 + $0x8] sm:$0xff]
      %v2268 = vld [vmem:[%s2265 + $0x10] sm:$0xff]
      %v2269 = vld [vmem:[%s2265 + $0x18] sm:$0xff]
      %v2270 = vld [vmem:[%s2265 + $0x20] sm:$0xff]
      %v2271 = vld [vmem:[%s2265 + $0x28] sm:$0xff]
      %v2272 = vld [vmem:[%s2265 + $0x30] sm:$0xff]
      %v2273 = vld [vmem:[%s2265 + $0x38] sm:$0xff]
      %v2274 = vld [vmem:[%s2265 + $0x40] sm:$0xff]
      %v2275 = vld [vmem:[%s2265 + $0x48] sm:$0xff]
      %v2276 = vld [vmem:[%s2265 + $0x50] sm:$0xff]
      %v2277 = vld [vmem:[%s2265 + $0x58] sm:$0xff]
      %v2278 = vld [vmem:[%s2265 + $0x60] sm:$0xff]
      %v2279 = vld [vmem:[%s2265 + $0x68] sm:$0xff]
      %v2280 = vld [vmem:[%s2265 + $0x70] sm:$0xff]
      %v2281 = vld [vmem:[%s2265 + $0x78] sm:$0xff]
      %v2282 = vld [vmem:[%s2265 + $0x80] sm:$0xff]
      %v2283 = vld [vmem:[%s2265 + $0x88] sm:$0xff]
      %v2284 = vld [vmem:[%s2265 + $0x90] sm:$0xff]
      %v2285 = vld [vmem:[%s2265 + $0x98] sm:$0xff]
      %v2286 = vld [vmem:[%s2265 + $0xa0] sm:$0xff]
      %v2287 = vld [vmem:[%s2265 + $0xa8] sm:$0xff]
      %v2288 = vld [vmem:[%s2265 + $0xb0] sm:$0xff]
      %v2289 = vld [vmem:[%s2265 + $0xb8] sm:$0xff]
      %v2290 = vld [vmem:[%s2265 + $0xc0] sm:$0xff]
      %v2291 = vld [vmem:[%s2265 + $0xc8] sm:$0xff]
      %v2292 = vld [vmem:[%s2265 + $0xd0] sm:$0xff]
      %v2293 = vld [vmem:[%s2265 + $0xd8] sm:$0xff]
      %v2294 = vld [vmem:[%s2265 + $0xe0] sm:$0xff]
      %v2295 = vld [vmem:[%s2265 + $0xe8] sm:$0xff]
      %v2296 = vld [vmem:[%s2265 + $0xf0] sm:$0xff]
      %v2297 = vld [vmem:[%s2265 + $0xf8] sm:$0xff]
      %v2298 = vld [vmem:[%s2265 + $0x100] sm:$0xff]
      %v2299 = vld [vmem:[%s2265 + $0x108] sm:$0xff]
      %v2300 = vld [vmem:[%s2265 + $0x110] sm:$0xff]
      %v2301 = vld [vmem:[%s2265 + $0x118] sm:$0xff]
      %v2302 = vld [vmem:[%s2265 + $0x120] sm:$0xff]
      %v2303 = vld [vmem:[%s2265 + $0x128] sm:$0xff]
      %v2304 = vld [vmem:[%s2265 + $0x130] sm:$0xff]
      %v2305 = vld [vmem:[%s2265 + $0x138] sm:$0xff]
      %v2306 = vld [vmem:[%s2265 + $0x140] sm:$0xff]
      %v2307 = vld [vmem:[%s2265 + $0x148] sm:$0xff]
      %v2308 = vld [vmem:[%s2265 + $0x150] sm:$0xff]
      %v2309 = vld [vmem:[%s2265 + $0x158] sm:$0xff]
      %v2310 = vld [vmem:[%s2265 + $0x160] sm:$0xff]
      %v2311 = vld [vmem:[%s2265 + $0x168] sm:$0xff]
      %v2312 = vld [vmem:[%s2265 + $0x170] sm:$0xff]
      %v2313 = vld [vmem:[%s2265 + $0x178] sm:$0xff]
      %v2362 = vunpack.c.l.b16 %v2266
      %v2363 = vunpack.c.h.b16 %v2266
      %v2364 = vunpack.c.l.b16 %v2267
      %v2365 = vunpack.c.h.b16 %v2267
      %v2366 = vunpack.c.l.b16 %v2268
      %v2367 = vunpack.c.h.b16 %v2268
      %v2368 = vunpack.c.l.b16 %v2269
      %v2369 = vunpack.c.h.b16 %v2269
      %v2370 = vunpack.c.l.b16 %v2270
      %v2371 = vunpack.c.h.b16 %v2270
      %v2372 = vunpack.c.l.b16 %v2271
      %v2373 = vunpack.c.h.b16 %v2271
      %v2374 = vunpack.c.l.b16 %v2272
      %v2375 = vunpack.c.h.b16 %v2272
      %v2376 = vunpack.c.l.b16 %v2273
      %v2377 = vunpack.c.h.b16 %v2273
      %v2378 = vunpack.c.l.b16 %v2274
      %v2379 = vunpack.c.h.b16 %v2274
      %v2380 = vunpack.c.l.b16 %v2275
      %v2381 = vunpack.c.h.b16 %v2275
      %v2382 = vunpack.c.l.b16 %v2276
      %v2383 = vunpack.c.h.b16 %v2276
      %v2384 = vunpack.c.l.b16 %v2277
      %v2385 = vunpack.c.h.b16 %v2277
      %v2386 = vunpack.c.l.b16 %v2278
      %v2387 = vunpack.c.h.b16 %v2278
      %v2388 = vunpack.c.l.b16 %v2279
      %v2389 = vunpack.c.h.b16 %v2279
      %v2390 = vunpack.c.l.b16 %v2280
      %v2391 = vunpack.c.h.b16 %v2280
      %v2392 = vunpack.c.l.b16 %v2281
      %v2393 = vunpack.c.h.b16 %v2281
      %v2394 = vunpack.c.l.b16 %v2282
      %v2395 = vunpack.c.h.b16 %v2282
      %v2396 = vunpack.c.l.b16 %v2283
      %v2397 = vunpack.c.h.b16 %v2283
      %v2398 = vunpack.c.l.b16 %v2284
      %v2399 = vunpack.c.h.b16 %v2284
      %v2400 = vunpack.c.l.b16 %v2285
      %v2401 = vunpack.c.h.b16 %v2285
      %v2402 = vunpack.c.l.b16 %v2286
      %v2403 = vunpack.c.h.b16 %v2286
      %v2404 = vunpack.c.l.b16 %v2287
      %v2405 = vunpack.c.h.b16 %v2287
      %v2406 = vunpack.c.l.b16 %v2288
      %v2407 = vunpack.c.h.b16 %v2288
      %v2408 = vunpack.c.l.b16 %v2289
      %v2409 = vunpack.c.h.b16 %v2289
      %v2410 = vunpack.c.l.b16 %v2290
      %v2411 = vunpack.c.h.b16 %v2290
      %v2412 = vunpack.c.l.b16 %v2291
      %v2413 = vunpack.c.h.b16 %v2291
      %v2414 = vunpack.c.l.b16 %v2292
      %v2415 = vunpack.c.h.b16 %v2292
      %v2416 = vunpack.c.l.b16 %v2293
      %v2417 = vunpack.c.h.b16 %v2293
      %v2418 = vunpack.c.l.b16 %v2294
      %v2419 = vunpack.c.h.b16 %v2294
      %v2420 = vunpack.c.l.b16 %v2295
      %v2421 = vunpack.c.h.b16 %v2295
      %v2422 = vunpack.c.l.b16 %v2296
      %v2423 = vunpack.c.h.b16 %v2296
      %v2424 = vunpack.c.l.b16 %v2297
      %v2425 = vunpack.c.h.b16 %v2297
      %v2426 = vunpack.c.l.b16 %v2298
      %v2427 = vunpack.c.h.b16 %v2298
      %v2428 = vunpack.c.l.b16 %v2299
      %v2429 = vunpack.c.h.b16 %v2299
      %v2430 = vunpack.c.l.b16 %v2300
      %v2431 = vunpack.c.h.b16 %v2300
      %v2432 = vunpack.c.l.b16 %v2301
      %v2433 = vunpack.c.h.b16 %v2301
      %v2434 = vunpack.c.l.b16 %v2302
      %v2435 = vunpack.c.h.b16 %v2302
      %v2436 = vunpack.c.l.b16 %v2303
      %v2437 = vunpack.c.h.b16 %v2303
      %v2438 = vunpack.c.l.b16 %v2304
      %v2439 = vunpack.c.h.b16 %v2304
      %v2440 = vunpack.c.l.b16 %v2305
      %v2441 = vunpack.c.h.b16 %v2305
      %v2442 = vunpack.c.l.b16 %v2306
      %v2443 = vunpack.c.h.b16 %v2306
      %v2444 = vunpack.c.l.b16 %v2307
      %v2445 = vunpack.c.h.b16 %v2307
      %v2446 = vunpack.c.l.b16 %v2308
      %v2447 = vunpack.c.h.b16 %v2308
      %v2448 = vunpack.c.l.b16 %v2309
      %v2449 = vunpack.c.h.b16 %v2309
      %v2450 = vunpack.c.l.b16 %v2310
      %v2451 = vunpack.c.h.b16 %v2310
      %v2452 = vunpack.c.l.b16 %v2311
      %v2453 = vunpack.c.h.b16 %v2311
      %v2454 = vunpack.c.l.b16 %v2312
      %v2455 = vunpack.c.h.b16 %v2312
      %v2456 = vunpack.c.l.b16 %v2313
      %v2457 = vunpack.c.h.b16 %v2313
      %v2458 = vpack.c.b16 %v2368, %v2362
      %v2459 = vpack.c.b16 %v2369, %v2363
      %v2460 = vpack.c.b16 %v2370, %v2364
      %v2461 = vpack.c.b16 %v2371, %v2365
      %v2462 = vpack.c.b16 %v2372, %v2366
      %v2463 = vpack.c.b16 %v2373, %v2367
      %v2464 = vpack.c.b16 %v2380, %v2374
      %v2465 = vpack.c.b16 %v2381, %v2375
      %v2466 = vpack.c.b16 %v2382, %v2376
      %v2467 = vpack.c.b16 %v2383, %v2377
      %v2468 = vpack.c.b16 %v2384, %v2378
      %v2469 = vpack.c.b16 %v2385, %v2379
      %v2470 = vpack.c.b16 %v2392, %v2386
      %v2471 = vpack.c.b16 %v2393, %v2387
      %v2472 = vpack.c.b16 %v2394, %v2388
      %v2473 = vpack.c.b16 %v2395, %v2389
      %v2474 = vpack.c.b16 %v2396, %v2390
      %v2475 = vpack.c.b16 %v2397, %v2391
      %v2476 = vpack.c.b16 %v2404, %v2398
      %v2477 = vpack.c.b16 %v2405, %v2399
      %v2478 = vpack.c.b16 %v2406, %v2400
      %v2479 = vpack.c.b16 %v2407, %v2401
      %v2480 = vpack.c.b16 %v2408, %v2402
      %v2481 = vpack.c.b16 %v2409, %v2403
      %v2482 = vpack.c.b16 %v2416, %v2410
      %v2483 = vpack.c.b16 %v2417, %v2411
      %v2484 = vpack.c.b16 %v2418, %v2412
      %v2485 = vpack.c.b16 %v2419, %v2413
      %v2486 = vpack.c.b16 %v2420, %v2414
      %v2487 = vpack.c.b16 %v2421, %v2415
      %v2488 = vpack.c.b16 %v2428, %v2422
      %v2489 = vpack.c.b16 %v2429, %v2423
      %v2490 = vpack.c.b16 %v2430, %v2424
      %v2491 = vpack.c.b16 %v2431, %v2425
      %v2492 = vpack.c.b16 %v2432, %v2426
      %v2493 = vpack.c.b16 %v2433, %v2427
      %v2494 = vpack.c.b16 %v2440, %v2434
      %v2495 = vpack.c.b16 %v2441, %v2435
      %v2496 = vpack.c.b16 %v2442, %v2436
      %v2497 = vpack.c.b16 %v2443, %v2437
      %v2498 = vpack.c.b16 %v2444, %v2438
      %v2499 = vpack.c.b16 %v2445, %v2439
      %v2500 = vpack.c.b16 %v2452, %v2446
      %v2501 = vpack.c.b16 %v2453, %v2447
      %v2502 = vpack.c.b16 %v2454, %v2448
      %v2503 = vpack.c.b16 %v2455, %v2449
      %v2504 = vpack.c.b16 %v2456, %v2450
      %v2505 = vpack.c.b16 %v2457, %v2451
      %2554 = vrot.lane.b32.xlu0 %v914, 112
      %v2555 = vpop.permute.xlu0 %2554
      %2556 = vrot.lane.b32.xlu0 %v915, 112
      %v2557 = vpop.permute.xlu0 %2556
      %2558 = vrot.lane.b32.xlu0 %v916, 112
      %v2559 = vpop.permute.xlu0 %2558
      %2560 = vrot.lane.b32.xlu0 %v917, 112
      %v2561 = vpop.permute.xlu0 %2560
      %2562 = vrot.lane.b32.xlu0 %v918, 112
      %v2563 = vpop.permute.xlu0 %2562
      %2564 = vrot.lane.b32.xlu0 %v919, 112
      %v2565 = vpop.permute.xlu0 %2564
      %2566 = vrot.lane.b32.xlu0 %v920, 112
      %v2567 = vpop.permute.xlu0 %2566
      %2568 = vrot.lane.b32.xlu0 %v921, 112
      %v2569 = vpop.permute.xlu0 %2568
      %2570 = vrot.lane.b32.xlu0 %v922, 112
      %v2571 = vpop.permute.xlu0 %2570
      %2572 = vrot.lane.b32.xlu0 %v923, 112
      %v2573 = vpop.permute.xlu0 %2572
      %2574 = vrot.lane.b32.xlu0 %v924, 112
      %v2575 = vpop.permute.xlu0 %2574
      %2576 = vrot.lane.b32.xlu0 %v925, 112
      %v2577 = vpop.permute.xlu0 %2576
      %2578 = vrot.lane.b32.xlu0 %v926, 112
      %v2579 = vpop.permute.xlu0 %2578
      %2580 = vrot.lane.b32.xlu0 %v927, 112
      %v2581 = vpop.permute.xlu0 %2580
      %2582 = vrot.lane.b32.xlu0 %v928, 112
      %v2583 = vpop.permute.xlu0 %2582
      %2584 = vrot.lane.b32.xlu0 %v929, 112
      %v2585 = vpop.permute.xlu0 %2584
      %2586 = vrot.lane.b32.xlu0 %v930, 112
      %v2587 = vpop.permute.xlu0 %2586
      %2588 = vrot.lane.b32.xlu0 %v931, 112
      %v2589 = vpop.permute.xlu0 %2588
      %2590 = vrot.lane.b32.xlu0 %v932, 112
      %v2591 = vpop.permute.xlu0 %2590
      %2592 = vrot.lane.b32.xlu0 %v933, 112
      %v2593 = vpop.permute.xlu0 %2592
      %2594 = vrot.lane.b32.xlu0 %v934, 112
      %v2595 = vpop.permute.xlu0 %2594
      %2596 = vrot.lane.b32.xlu0 %v935, 112
      %v2597 = vpop.permute.xlu0 %2596
      %2598 = vrot.lane.b32.xlu0 %v936, 112
      %v2599 = vpop.permute.xlu0 %2598
      %2600 = vrot.lane.b32.xlu0 %v937, 112
      %v2601 = vpop.permute.xlu0 %2600
      %2602 = vrot.lane.b32.xlu0 %v938, 112
      %v2603 = vpop.permute.xlu0 %2602
      %2604 = vrot.lane.b32.xlu0 %v939, 112
      %v2605 = vpop.permute.xlu0 %2604
      %2606 = vrot.lane.b32.xlu0 %v940, 112
      %v2607 = vpop.permute.xlu0 %2606
      %2608 = vrot.lane.b32.xlu0 %v941, 112
      %v2609 = vpop.permute.xlu0 %2608
      %2610 = vrot.lane.b32.xlu0 %v942, 112
      %v2611 = vpop.permute.xlu0 %2610
      %2612 = vrot.lane.b32.xlu0 %v943, 112
      %v2613 = vpop.permute.xlu0 %2612
      %2614 = vrot.lane.b32.xlu0 %v944, 112
      %v2615 = vpop.permute.xlu0 %2614
      %2616 = vrot.lane.b32.xlu0 %v945, 112
      %v2617 = vpop.permute.xlu0 %2616
      %2618 = vrot.lane.b32.xlu0 %v946, 112
      %v2619 = vpop.permute.xlu0 %2618
      %2620 = vrot.lane.b32.xlu0 %v947, 112
      %v2621 = vpop.permute.xlu0 %2620
      %2622 = vrot.lane.b32.xlu0 %v948, 112
      %v2623 = vpop.permute.xlu0 %2622
      %2624 = vrot.lane.b32.xlu0 %v949, 112
      %v2625 = vpop.permute.xlu0 %2624
      %2626 = vrot.lane.b32.xlu0 %v950, 112
      %v2627 = vpop.permute.xlu0 %2626
      %2628 = vrot.lane.b32.xlu0 %v951, 112
      %v2629 = vpop.permute.xlu0 %2628
      %2630 = vrot.lane.b32.xlu0 %v952, 112
      %v2631 = vpop.permute.xlu0 %2630
      %2632 = vrot.lane.b32.xlu0 %v953, 112
      %v2633 = vpop.permute.xlu0 %2632
      %2634 = vrot.lane.b32.xlu0 %v954, 112
      %v2635 = vpop.permute.xlu0 %2634
      %2636 = vrot.lane.b32.xlu0 %v955, 112
      %v2637 = vpop.permute.xlu0 %2636
      %2638 = vrot.lane.b32.xlu0 %v956, 112
      %v2639 = vpop.permute.xlu0 %2638
      %2640 = vrot.lane.b32.xlu0 %v957, 112
      %v2641 = vpop.permute.xlu0 %2640
      %2642 = vrot.lane.b32.xlu0 %v958, 112
      %v2643 = vpop.permute.xlu0 %2642
      %2644 = vrot.lane.b32.xlu0 %v959, 112
      %v2645 = vpop.permute.xlu0 %2644
      %2646 = vrot.lane.b32.xlu0 %v960, 112
      %v2647 = vpop.permute.xlu0 %2646
      %2648 = vrot.lane.b32.xlu0 %v961, 112
      %v2649 = vpop.permute.xlu0 %2648
      %2698 = vmatprep.subr.bf16.mxu0 0
      %2699 = vmatpush1.bf16.msra.mxu0 %v2555
      %2700 = vmatprep.subr.bf16.mxu0 0
      %2701 = vmatpush1.bf16.msra.mxu0 %v2557
      %2702 = vmatprep.subr.bf16.mxu0 0
      %2703 = vmatpush1.bf16.msra.mxu0 %v2559
      %2704 = vmatprep.subr.bf16.mxu0 0
      %2705 = vmatpush1.bf16.msra.mxu0 %v2561
      %2706 = vmatprep.subr.bf16.mxu0 0
      %2707 = vmatpush1.bf16.msra.mxu0 %v2563
      %2708 = vmatprep.subr.bf16.mxu0 0
      %2709 = vmatpush1.bf16.msra.mxu0 %v2565
      %2710 = vmatprep.subr.bf16.mxu0 0
      %2711 = vmatpush1.bf16.msra.mxu0 %v2567
      %2712 = vmatprep.subr.bf16.mxu0 0
      %2713 = vmatpush1.bf16.msra.mxu0 %v2569
      %2714 = vmatprep.subr.bf16.mxu0 0
      %2715 = vmatpush1.bf16.msra.mxu0 %v2571
      %2716 = vmatprep.subr.bf16.mxu0 0
      %2717 = vmatpush1.bf16.msra.mxu0 %v2573
      %2718 = vmatprep.subr.bf16.mxu0 0
      %2719 = vmatpush1.bf16.msra.mxu0 %v2575
      %2720 = vmatprep.subr.bf16.mxu0 0
      %2721 = vmatpush1.bf16.msra.mxu0 %v2577
      %2722 = vmatprep.subr.bf16.mxu0 0
      %2723 = vmatpush1.bf16.msra.mxu0 %v2579
      %2724 = vmatprep.subr.bf16.mxu0 0
      %2725 = vmatpush1.bf16.msra.mxu0 %v2581
      %2726 = vmatprep.subr.bf16.mxu0 0
      %2727 = vmatpush1.bf16.msra.mxu0 %v2583
      %2728 = vmatprep.subr.bf16.mxu0 0
      %2729 = vmatpush1.bf16.msra.mxu0 %v2585
      %2730 = vmatprep.mubr.bf16.mxu0 %v2459
      %2731 = vmatmul.mubr.bf16.gmra.mrb[0].mxu0 %v2458
      %v2732 = vpop.f32.mrb[0].mxu0
      %v2733 = vadd.f32 0.0, %v2732
      %v2734 = vpop.f32.mrb[0].mxu0
      %v2735 = vpop.f32.mrb[0].mxu0
      %v2736 = vadd.f32 0.0, %v2735
      %v2737 = vpop.f32.mrb[0].mxu0
      %2738 = vmatprep.mubr.bf16.mxu0 %v2465
      %2739 = vmatmul.mubr.bf16.gmra.mrb[0].mxu0 %v2464
      %v2740 = vpop.f32.mrb[0].mxu0
      %v2741 = vadd.f32 0.0, %v2740
      %v2742 = vpop.f32.mrb[0].mxu0
      %v2743 = vpop.f32.mrb[0].mxu0
      %v2744 = vadd.f32 0.0, %v2743
      %v2745 = vpop.f32.mrb[0].mxu0
      %2746 = vmatprep.mubr.bf16.mxu0 %v2471
      %2747 = vmatmul.mubr.bf16.gmra.mrb[0].mxu0 %v2470
      %v2748 = vpop.f32.mrb[0].mxu0
      %v2749 = vadd.f32 0.0, %v2748
      %v2750 = vpop.f32.mrb[0].mxu0
      %v2751 = vpop.f32.mrb[0].mxu0
      %v2752 = vadd.f32 0.0, %v2751
      %v2753 = vpop.f32.mrb[0].mxu0
      %2754 = vmatprep.mubr.bf16.mxu0 %v2477
      %2755 = vmatmul.mubr.bf16.gmra.mrb[0].mxu0 %v2476
      %v2756 = vpop.f32.mrb[0].mxu0
      %v2757 = vadd.f32 0.0, %v2756
      %v2758 = vpop.f32.mrb[0].mxu0
      %v2759 = vpop.f32.mrb[0].mxu0
      %v2760 = vadd.f32 0.0, %v2759
      %v2761 = vpop.f32.mrb[0].mxu0
      %2762 = vmatprep.mubr.bf16.mxu0 %v2483
      %2763 = vmatmul.mubr.bf16.gmra.mrb[0].mxu0 %v2482
      %v2764 = vpop.f32.mrb[0].mxu0
      %v2765 = vadd.f32 0.0, %v2764
      %v2766 = vpop.f32.mrb[0].mxu0
      %v2767 = vpop.f32.mrb[0].mxu0
      %v2768 = vadd.f32 0.0, %v2767
      %v2769 = vpop.f32.mrb[0].mxu0
      %2770 = vmatprep.mubr.bf16.mxu0 %v2489
      %2771 = vmatmul.mubr.bf16.gmra.mrb[0].mxu0 %v2488
      %v2772 = vpop.f32.mrb[0].mxu0
      %v2773 = vadd.f32 0.0, %v2772
      %v2774 = vpop.f32.mrb[0].mxu0
      %v2775 = vpop.f32.mrb[0].mxu0
      %v2776 = vadd.f32 0.0, %v2775
      %v2777 = vpop.f32.mrb[0].mxu0
      %2778 = vmatprep.mubr.bf16.mxu0 %v2495
      %2779 = vmatmul.mubr.bf16.gmra.mrb[0].mxu0 %v2494
      %v2780 = vpop.f32.mrb[0].mxu0
      %v2781 = vadd.f32 0.0, %v2780
      %v2782 = vpop.f32.mrb[0].mxu0
      %v2783 = vpop.f32.mrb[0].mxu0
      %v2784 = vadd.f32 0.0, %v2783
      %v2785 = vpop.f32.mrb[0].mxu0
      %2786 = vmatprep.mubr.bf16.mxu0 %v2501
      %2787 = vmatmul.mubr.bf16.gmra.mrb[0].mxu0 %v2500
      %v2788 = vpop.f32.mrb[0].mxu0
      %v2789 = vadd.f32 0.0, %v2788
      %v2790 = vpop.f32.mrb[0].mxu0
      %v2791 = vpop.f32.mrb[0].mxu0
      %v2792 = vadd.f32 0.0, %v2791
      %v2793 = vpop.f32.mrb[0].mxu0
      %2794 = vdwg.mxu0
      %2795 = vmatprep.subr.bf16.mxu0 0
      %2796 = vmatpush1.bf16.msra.mxu0 %v2587
      %2797 = vmatprep.subr.bf16.mxu0 0
      %2798 = vmatpush1.bf16.msra.mxu0 %v2589
      %2799 = vmatprep.subr.bf16.mxu0 0
      %2800 = vmatpush1.bf16.msra.mxu0 %v2591
      %2801 = vmatprep.subr.bf16.mxu0 0
      %2802 = vmatpush1.bf16.msra.mxu0 %v2593
      %2803 = vmatprep.subr.bf16.mxu0 0
      %2804 = vmatpush1.bf16.msra.mxu0 %v2595
      %2805 = vmatprep.subr.bf16.mxu0 0
      %2806 = vmatpush1.bf16.msra.mxu0 %v2597
      %2807 = vmatprep.subr.bf16.mxu0 0
      %2808 = vmatpush1.bf16.msra.mxu0 %v2599
      %2809 = vmatprep.subr.bf16.mxu0 0
      %2810 = vmatpush1.bf16.msra.mxu0 %v2601
      %2811 = vmatprep.subr.bf16.mxu0 0
      %2812 = vmatpush1.bf16.msra.mxu0 %v2603
      %2813 = vmatprep.subr.bf16.mxu0 0
      %2814 = vmatpush1.bf16.msra.mxu0 %v2605
      %2815 = vmatprep.subr.bf16.mxu0 0
      %2816 = vmatpush1.bf16.msra.mxu0 %v2607
      %2817 = vmatprep.subr.bf16.mxu0 0
      %2818 = vmatpush1.bf16.msra.mxu0 %v2609
      %2819 = vmatprep.subr.bf16.mxu0 0
      %2820 = vmatpush1.bf16.msra.mxu0 %v2611
      %2821 = vmatprep.subr.bf16.mxu0 0
      %2822 = vmatpush1.bf16.msra.mxu0 %v2613
      %2823 = vmatprep.subr.bf16.mxu0 0
      %2824 = vmatpush1.bf16.msra.mxu0 %v2615
      %2825 = vmatprep.subr.bf16.mxu0 0
      %2826 = vmatpush1.bf16.msra.mxu0 %v2617
      %2827 = vmatprep.mubr.bf16.mxu0 %v2461
      %2828 = vmatmul.mubr.bf16.gmra.mrb[0].mxu0 %v2460
      %v2829 = vpop.f32.mrb[0].mxu0
      %v2830 = vadd.f32 %v2733, %v2829
      %v2831 = vpop.f32.mrb[0].mxu0
      %v2832 = vpop.f32.mrb[0].mxu0
      %v2833 = vadd.f32 %v2736, %v2832
      %v2834 = vpop.f32.mrb[0].mxu0
      %2835 = vmatprep.mubr.bf16.mxu0 %v2467
      %2836 = vmatmul.mubr.bf16.gmra.mrb[0].mxu0 %v2466
      %v2837 = vpop.f32.mrb[0].mxu0
      %v2838 = vadd.f32 %v2741, %v2837
      %v2839 = vpop.f32.mrb[0].mxu0
      %v2840 = vpop.f32.mrb[0].mxu0
      %v2841 = vadd.f32 %v2744, %v2840
      %v2842 = vpop.f32.mrb[0].mxu0
      %2843 = vmatprep.mubr.bf16.mxu0 %v2473
      %2844 = vmatmul.mubr.bf16.gmra.mrb[0].mxu0 %v2472
      %v2845 = vpop.f32.mrb[0].mxu0
      %v2846 = vadd.f32 %v2749, %v2845
      %v2847 = vpop.f32.mrb[0].mxu0
      %v2848 = vpop.f32.mrb[0].mxu0
      %v2849 = vadd.f32 %v2752, %v2848
      %v2850 = vpop.f32.mrb[0].mxu0
      %2851 = vmatprep.mubr.bf16.mxu0 %v2479
      %2852 = vmatmul.mubr.bf16.gmra.mrb[0].mxu0 %v2478
      %v2853 = vpop.f32.mrb[0].mxu0
      %v2854 = vadd.f32 %v2757, %v2853
      %v2855 = vpop.f32.mrb[0].mxu0
      %v2856 = vpop.f32.mrb[0].mxu0
      %v2857 = vadd.f32 %v2760, %v2856
      %v2858 = vpop.f32.mrb[0].mxu0
      %2859 = vmatprep.mubr.bf16.mxu0 %v2485
      %2860 = vmatmul.mubr.bf16.gmra.mrb[0].mxu0 %v2484
      %v2861 = vpop.f32.mrb[0].mxu0
      %v2862 = vadd.f32 %v2765, %v2861
      %v2863 = vpop.f32.mrb[0].mxu0
      %v2864 = vpop.f32.mrb[0].mxu0
      %v2865 = vadd.f32 %v2768, %v2864
      %v2866 = vpop.f32.mrb[0].mxu0
      %2867 = vmatprep.mubr.bf16.mxu0 %v2491
      %2868 = vmatmul.mubr.bf16.gmra.mrb[0].mxu0 %v2490
      %v2869 = vpop.f32.mrb[0].mxu0
      %v2870 = vadd.f32 %v2773, %v2869
      %v2871 = vpop.f32.mrb[0].mxu0
      %v2872 = vpop.f32.mrb[0].mxu0
      %v2873 = vadd.f32 %v2776, %v2872
      %v2874 = vpop.f32.mrb[0].mxu0
      %2875 = vmatprep.mubr.bf16.mxu0 %v2497
      %2876 = vmatmul.mubr.bf16.gmra.mrb[0].mxu0 %v2496
      %v2877 = vpop.f32.mrb[0].mxu0
      %v2878 = vadd.f32 %v2781, %v2877
      %v2879 = vpop.f32.mrb[0].mxu0
      %v2880 = vpop.f32.mrb[0].mxu0
      %v2881 = vadd.f32 %v2784, %v2880
      %v2882 = vpop.f32.mrb[0].mxu0
      %2883 = vmatprep.mubr.bf16.mxu0 %v2503
      %2884 = vmatmul.mubr.bf16.gmra.mrb[0].mxu0 %v2502
      %v2885 = vpop.f32.mrb[0].mxu0
      %v2886 = vadd.f32 %v2789, %v2885
      %v2887 = vpop.f32.mrb[0].mxu0
      %v2888 = vpop.f32.mrb[0].mxu0
      %v2889 = vadd.f32 %v2792, %v2888
      %v2890 = vpop.f32.mrb[0].mxu0
      %2891 = vdwg.mxu0
      %2892 = vmatprep.subr.bf16.mxu0 0
      %2893 = vmatpush1.bf16.msra.mxu0 %v2619
      %2894 = vmatprep.subr.bf16.mxu0 0
      %2895 = vmatpush1.bf16.msra.mxu0 %v2621
      %2896 = vmatprep.subr.bf16.mxu0 0
      %2897 = vmatpush1.bf16.msra.mxu0 %v2623
      %2898 = vmatprep.subr.bf16.mxu0 0
      %2899 = vmatpush1.bf16.msra.mxu0 %v2625
      %2900 = vmatprep.subr.bf16.mxu0 0
      %2901 = vmatpush1.bf16.msra.mxu0 %v2627
      %2902 = vmatprep.subr.bf16.mxu0 0
      %2903 = vmatpush1.bf16.msra.mxu0 %v2629
      %2904 = vmatprep.subr.bf16.mxu0 0
      %2905 = vmatpush1.bf16.msra.mxu0 %v2631
      %2906 = vmatprep.subr.bf16.mxu0 0
      %2907 = vmatpush1.bf16.msra.mxu0 %v2633
      %2908 = vmatprep.subr.bf16.mxu0 0
      %2909 = vmatpush1.bf16.msra.mxu0 %v2635
      %2910 = vmatprep.subr.bf16.mxu0 0
      %2911 = vmatpush1.bf16.msra.mxu0 %v2637
      %2912 = vmatprep.subr.bf16.mxu0 0
      %2913 = vmatpush1.bf16.msra.mxu0 %v2639
      %2914 = vmatprep.subr.bf16.mxu0 0
      %2915 = vmatpush1.bf16.msra.mxu0 %v2641
      %2916 = vmatprep.subr.bf16.mxu0 0
      %2917 = vmatpush1.bf16.msra.mxu0 %v2643
      %2918 = vmatprep.subr.bf16.mxu0 0
      %2919 = vmatpush1.bf16.msra.mxu0 %v2645
      %2920 = vmatprep.subr.bf16.mxu0 0
      %2921 = vmatpush1.bf16.msra.mxu0 %v2647
      %2922 = vmatprep.subr.bf16.mxu0 0
      %2923 = vmatpush1.bf16.msra.mxu0 %v2649
      %2924 = vmatprep.mubr.bf16.mxu0 %v2463
      %2925 = vmatmul.mubr.bf16.gmra.mrb[0].mxu0 %v2462
      %v2926 = vpop.f32.mrb[0].mxu0
      %v2927 = vadd.f32 %v2830, %v2926
      %v2928 = vpop.f32.mrb[0].mxu0
      %v2929 = vpop.f32.mrb[0].mxu0
      %v2930 = vadd.f32 %v2833, %v2929
      %v2931 = vpop.f32.mrb[0].mxu0
      %2932 = vmatprep.mubr.bf16.mxu0 %v2469
      %2933 = vmatmul.mubr.bf16.gmra.mrb[0].mxu0 %v2468
      %v2934 = vpop.f32.mrb[0].mxu0
      %v2935 = vadd.f32 %v2838, %v2934
      %v2936 = vpop.f32.mrb[0].mxu0
      %v2937 = vpop.f32.mrb[0].mxu0
      %v2938 = vadd.f32 %v2841, %v2937
      %v2939 = vpop.f32.mrb[0].mxu0
      %2940 = vmatprep.mubr.bf16.mxu0 %v2475
      %2941 = vmatmul.mubr.bf16.gmra.mrb[0].mxu0 %v2474
      %v2942 = vpop.f32.mrb[0].mxu0
      %v2943 = vadd.f32 %v2846, %v2942
      %v2944 = vpop.f32.mrb[0].mxu0
      %v2945 = vpop.f32.mrb[0].mxu0
      %v2946 = vadd.f32 %v2849, %v2945
      %v2947 = vpop.f32.mrb[0].mxu0
      %2948 = vmatprep.mubr.bf16.mxu0 %v2481
      %2949 = vmatmul.mubr.bf16.gmra.mrb[0].mxu0 %v2480
      %v2950 = vpop.f32.mrb[0].mxu0
      %v2951 = vadd.f32 %v2854, %v2950
      %v2952 = vpop.f32.mrb[0].mxu0
      %v2953 = vpop.f32.mrb[0].mxu0
      %v2954 = vadd.f32 %v2857, %v2953
      %v2955 = vpop.f32.mrb[0].mxu0
      %2956 = vmatprep.mubr.bf16.mxu0 %v2487
      %2957 = vmatmul.mubr.bf16.gmra.mrb[0].mxu0 %v2486
      %v2958 = vpop.f32.mrb[0].mxu0
      %v2959 = vadd.f32 %v2862, %v2958
      %v2960 = vpop.f32.mrb[0].mxu0
      %v2961 = vpop.f32.mrb[0].mxu0
      %v2962 = vadd.f32 %v2865, %v2961
      %v2963 = vpop.f32.mrb[0].mxu0
      %2964 = vmatprep.mubr.bf16.mxu0 %v2493
      %2965 = vmatmul.mubr.bf16.gmra.mrb[0].mxu0 %v2492
      %v2966 = vpop.f32.mrb[0].mxu0
      %v2967 = vadd.f32 %v2870, %v2966
      %v2968 = vpop.f32.mrb[0].mxu0
      %v2969 = vpop.f32.mrb[0].mxu0
      %v2970 = vadd.f32 %v2873, %v2969
      %v2971 = vpop.f32.mrb[0].mxu0
      %2972 = vmatprep.mubr.bf16.mxu0 %v2499
      %2973 = vmatmul.mubr.bf16.gmra.mrb[0].mxu0 %v2498
      %v2974 = vpop.f32.mrb[0].mxu0
      %v2975 = vadd.f32 %v2878, %v2974
      %v2976 = vpop.f32.mrb[0].mxu0
      %v2977 = vpop.f32.mrb[0].mxu0
      %v2978 = vadd.f32 %v2881, %v2977
      %v2979 = vpop.f32.mrb[0].mxu0
      %2980 = vmatprep.mubr.bf16.mxu0 %v2505
      %2981 = vmatmul.mubr.bf16.gmra.mrb[0].mxu0 %v2504
      %v2982 = vpop.f32.mrb[0].mxu0
      %v2983 = vadd.f32 %v2886, %v2982
      %v2984 = vpop.f32.mrb[0].mxu0
      %v2985 = vpop.f32.mrb[0].mxu0
      %v2986 = vadd.f32 %v2889, %v2985
      %v2987 = vpop.f32.mrb[0].mxu0
      %2988 = vdwg.mxu0
      %v2989 = vadd.f32 %v2203, %v2927
      %v2990 = vadd.f32 %v2206, %v2930
      %v2991 = vadd.f32 %v2211, %v2935
      %v2992 = vadd.f32 %v2214, %v2938
      %v2993 = vadd.f32 %v2219, %v2943
      %v2994 = vadd.f32 %v2222, %v2946
      %v2995 = vadd.f32 %v2227, %v2951
      %v2996 = vadd.f32 %v2230, %v2954
      %v2997 = vadd.f32 %v2235, %v2959
      %v2998 = vadd.f32 %v2238, %v2962
      %v2999 = vadd.f32 %v2243, %v2967
      %v3000 = vadd.f32 %v2246, %v2970
      %v3001 = vadd.f32 %v2251, %v2975
      %v3002 = vadd.f32 %v2254, %v2978
      %v3003 = vadd.f32 %v2259, %v2983
      %v3004 = vadd.f32 %v2262, %v2986
      %v3005 = vld [vmem:[%s302] sm:$0xf]
      %v3006 = vld [vmem:[%s302 + $0x4] sm:$0xf]
      %v3007 = vld [vmem:[%s302 + $0x8] sm:$0xf]
      %v3008 = vld [vmem:[%s302 + $0xc] sm:$0xf]
      %v3009 = vld [vmem:[%s302 + $0x10] sm:$0xf]
      %v3010 = vld [vmem:[%s302 + $0x14] sm:$0xf]
      %v3011 = vld [vmem:[%s302 + $0x18] sm:$0xf]
      %v3012 = vld [vmem:[%s302 + $0x1c] sm:$0xf]
      %v3013 = vunpack.c.l.bf16 %v3005
      %v3014 = vunpack.c.l.bf16 %v3006
      %v3015 = vunpack.c.l.bf16 %v3007
      %v3016 = vunpack.c.l.bf16 %v3008
      %v3017 = vunpack.c.l.bf16 %v3009
      %v3018 = vunpack.c.l.bf16 %v3010
      %v3019 = vunpack.c.l.bf16 %v3011
      %v3020 = vunpack.c.l.bf16 %v3012
      %v3021 = vmul.f32 %v3013, 0.140625
      %v3022 = vmul.f32 %v3014, 0.140625
      %v3023 = vmul.f32 %v3015, 0.140625
      %v3024 = vmul.f32 %v3016, 0.140625
      %v3025 = vmul.f32 %v3017, 0.140625
      %v3026 = vmul.f32 %v3018, 0.140625
      %v3027 = vmul.f32 %v3019, 0.140625
      %v3028 = vmul.f32 %v3020, 0.140625
      %v3029 = vadd.f32 %v3021, 0.0
      %v3030 = vadd.f32 %v3022, 0.0
      %v3031 = vadd.f32 %v3023, 0.0
      %v3032 = vadd.f32 %v3024, 0.0
      %v3033 = vadd.f32 %v3025, 0.0
      %v3034 = vadd.f32 %v3026, 0.0
      %v3035 = vadd.f32 %v3027, 0.0
      %v3036 = vadd.f32 %v3028, 0.0
      %3045 = vrot.lane.b32.xlu0 %v3013, 118
      %v3046 = vpop.permute.xlu0 %3045
      %3047 = vrot.lane.b32.xlu0 %v3014, 118
      %v3048 = vpop.permute.xlu0 %3047
      %3049 = vrot.lane.b32.xlu0 %v3015, 118
      %v3050 = vpop.permute.xlu0 %3049
      %3051 = vrot.lane.b32.xlu0 %v3016, 118
      %v3052 = vpop.permute.xlu0 %3051
      %3053 = vrot.lane.b32.xlu0 %v3017, 118
      %v3054 = vpop.permute.xlu0 %3053
      %3055 = vrot.lane.b32.xlu0 %v3018, 118
      %v3056 = vpop.permute.xlu0 %3055
      %3057 = vrot.lane.b32.xlu0 %v3019, 118
      %v3058 = vpop.permute.xlu0 %3057
      %3059 = vrot.lane.b32.xlu0 %v3020, 118
      %v3060 = vpop.permute.xlu0 %3059
      %v3069 = vsel %vm441, %v3046, 0.0
      %v3070 = vsel %vm441, %v3048, 0.0
      %v3071 = vsel %vm441, %v3050, 0.0
      %v3072 = vsel %vm441, %v3052, 0.0
      %v3073 = vsel %vm441, %v3054, 0.0
      %v3074 = vsel %vm441, %v3056, 0.0
      %v3075 = vsel %vm441, %v3058, 0.0
      %v3076 = vsel %vm441, %v3060, 0.0
      %v3077 = vmul.f32 %v3069, 0.046875
      %v3078 = vmul.f32 %v3070, 0.046875
      %v3079 = vmul.f32 %v3071, 0.046875
      %v3080 = vmul.f32 %v3072, 0.046875
      %v3081 = vmul.f32 %v3073, 0.046875
      %v3082 = vmul.f32 %v3074, 0.046875
      %v3083 = vmul.f32 %v3075, 0.046875
      %v3084 = vmul.f32 %v3076, 0.046875
      %3093 = vrot.lane.b32.xlu0 %v3077, 9
      %v3094 = vpop.permute.xlu0 %3093
      %3095 = vrot.lane.b32.xlu0 %v3078, 9
      %v3096 = vpop.permute.xlu0 %3095
      %3097 = vrot.lane.b32.xlu0 %v3079, 9
      %v3098 = vpop.permute.xlu0 %3097
      %3099 = vrot.lane.b32.xlu0 %v3080, 9
      %v3100 = vpop.permute.xlu0 %3099
      %3101 = vrot.lane.b32.xlu0 %v3081, 9
      %v3102 = vpop.permute.xlu0 %3101
      %3103 = vrot.lane.b32.xlu0 %v3082, 9
      %v3104 = vpop.permute.xlu0 %3103
      %3105 = vrot.lane.b32.xlu0 %v3083, 9
      %v3106 = vpop.permute.xlu0 %3105
      %3107 = vrot.lane.b32.xlu0 %v3084, 9
      %v3108 = vpop.permute.xlu0 %3107
      %v3117 = vadd.f32 %v3029, %v3094
      %v3118 = vadd.f32 %v3030, %v3096
      %v3119 = vadd.f32 %v3031, %v3098
      %v3120 = vadd.f32 %v3032, %v3100
      %v3121 = vadd.f32 %v3033, %v3102
      %v3122 = vadd.f32 %v3034, %v3104
      %v3123 = vadd.f32 %v3035, %v3106
      %v3124 = vadd.f32 %v3036, %v3108
      %v3125 = vmul.f32 %v3013, 0.046875
      %v3126 = vmul.f32 %v3014, 0.046875
      %v3127 = vmul.f32 %v3015, 0.046875
      %v3128 = vmul.f32 %v3016, 0.046875
      %v3129 = vmul.f32 %v3017, 0.046875
      %v3130 = vmul.f32 %v3018, 0.046875
      %v3131 = vmul.f32 %v3019, 0.046875
      %v3132 = vmul.f32 %v3020, 0.046875
      %3141 = vrot.lane.b32.xlu0 %v3125, 120
      %v3142 = vpop.permute.xlu0 %3141
      %3143 = vrot.lane.b32.xlu0 %v3126, 120
      %v3144 = vpop.permute.xlu0 %3143
      %3145 = vrot.lane.b32.xlu0 %v3127, 120
      %v3146 = vpop.permute.xlu0 %3145
      %3147 = vrot.lane.b32.xlu0 %v3128, 120
      %v3148 = vpop.permute.xlu0 %3147
      %3149 = vrot.lane.b32.xlu0 %v3129, 120
      %v3150 = vpop.permute.xlu0 %3149
      %3151 = vrot.lane.b32.xlu0 %v3130, 120
      %v3152 = vpop.permute.xlu0 %3151
      %3153 = vrot.lane.b32.xlu0 %v3131, 120
      %v3154 = vpop.permute.xlu0 %3153
      %3155 = vrot.lane.b32.xlu0 %v3132, 120
      %v3156 = vpop.permute.xlu0 %3155
      %v3165 = vadd.f32 %v3117, %v3142
      %v3166 = vadd.f32 %v3118, %v3144
      %v3167 = vadd.f32 %v3119, %v3146
      %v3168 = vadd.f32 %v3120, %v3148
      %v3169 = vadd.f32 %v3121, %v3150
      %v3170 = vadd.f32 %v3122, %v3152
      %v3171 = vadd.f32 %v3123, %v3154
      %v3172 = vadd.f32 %v3124, %v3156
      %3173 = vrot.lane.b32.xlu0 %v3013, 110
      %v3174 = vpop.permute.xlu0 %3173
      %3175 = vrot.lane.b32.xlu0 %v3014, 110
      %v3176 = vpop.permute.xlu0 %3175
      %3177 = vrot.lane.b32.xlu0 %v3015, 110
      %v3178 = vpop.permute.xlu0 %3177
      %3179 = vrot.lane.b32.xlu0 %v3016, 110
      %v3180 = vpop.permute.xlu0 %3179
      %3181 = vrot.lane.b32.xlu0 %v3017, 110
      %v3182 = vpop.permute.xlu0 %3181
      %3183 = vrot.lane.b32.xlu0 %v3018, 110
      %v3184 = vpop.permute.xlu0 %3183
      %3185 = vrot.lane.b32.xlu0 %v3019, 110
      %v3186 = vpop.permute.xlu0 %3185
      %3187 = vrot.lane.b32.xlu0 %v3020, 110
      %v3188 = vpop.permute.xlu0 %3187
      %v3197 = vsel %vm441, %v3174, 0.0
      %v3198 = vsel %vm441, %v3176, 0.0
      %v3199 = vsel %vm441, %v3178, 0.0
      %v3200 = vsel %vm441, %v3180, 0.0
      %v3201 = vsel %vm441, %v3182, 0.0
      %v3202 = vsel %vm441, %v3184, 0.0
      %v3203 = vsel %vm441, %v3186, 0.0
      %v3204 = vsel %vm441, %v3188, 0.0
      %v3205 = vmul.f32 %v3197, 0.015625
      %v3206 = vmul.f32 %v3198, 0.015625
      %v3207 = vmul.f32 %v3199, 0.015625
      %v3208 = vmul.f32 %v3200, 0.015625
      %v3209 = vmul.f32 %v3201, 0.015625
      %v3210 = vmul.f32 %v3202, 0.015625
      %v3211 = vmul.f32 %v3203, 0.015625
      %v3212 = vmul.f32 %v3204, 0.015625
      %3221 = vrot.lane.b32.xlu0 %v3205, 9
      %v3222 = vpop.permute.xlu0 %3221
      %3223 = vrot.lane.b32.xlu0 %v3206, 9
      %v3224 = vpop.permute.xlu0 %3223
      %3225 = vrot.lane.b32.xlu0 %v3207, 9
      %v3226 = vpop.permute.xlu0 %3225
      %3227 = vrot.lane.b32.xlu0 %v3208, 9
      %v3228 = vpop.permute.xlu0 %3227
      %3229 = vrot.lane.b32.xlu0 %v3209, 9
      %v3230 = vpop.permute.xlu0 %3229
      %3231 = vrot.lane.b32.xlu0 %v3210, 9
      %v3232 = vpop.permute.xlu0 %3231
      %3233 = vrot.lane.b32.xlu0 %v3211, 9
      %v3234 = vpop.permute.xlu0 %3233
      %3235 = vrot.lane.b32.xlu0 %v3212, 9
      %v3236 = vpop.permute.xlu0 %3235
      %v3245 = vadd.f32 %v3165, %v3222
      %v3246 = vadd.f32 %v3166, %v3224
      %v3247 = vadd.f32 %v3167, %v3226
      %v3248 = vadd.f32 %v3168, %v3228
      %v3249 = vadd.f32 %v3169, %v3230
      %v3250 = vadd.f32 %v3170, %v3232
      %v3251 = vadd.f32 %v3171, %v3234
      %v3252 = vadd.f32 %v3172, %v3236
      %s3253 = scalar_lea.vmem %s302, 32
      %v3254 = vld [vmem:[%s3253] sm:$0xf]
      %v3255 = vld [vmem:[%s3253 + $0x4] sm:$0xf]
      %v3256 = vld [vmem:[%s3253 + $0x8] sm:$0xf]
      %v3257 = vld [vmem:[%s3253 + $0xc] sm:$0xf]
      %v3258 = vld [vmem:[%s3253 + $0x10] sm:$0xf]
      %v3259 = vld [vmem:[%s3253 + $0x14] sm:$0xf]
      %v3260 = vld [vmem:[%s3253 + $0x18] sm:$0xf]
      %v3261 = vld [vmem:[%s3253 + $0x1c] sm:$0xf]
      %v3262 = vunpack.c.l.bf16 %v3254
      %v3263 = vunpack.c.l.bf16 %v3255
      %v3264 = vunpack.c.l.bf16 %v3256
      %v3265 = vunpack.c.l.bf16 %v3257
      %v3266 = vunpack.c.l.bf16 %v3258
      %v3267 = vunpack.c.l.bf16 %v3259
      %v3268 = vunpack.c.l.bf16 %v3260
      %v3269 = vunpack.c.l.bf16 %v3261
      %3278 = vrot.lane.b32.xlu0 %v3262, 120
      %v3279 = vpop.permute.xlu0 %3278
      %3280 = vrot.lane.b32.xlu0 %v3263, 120
      %v3281 = vpop.permute.xlu0 %3280
      %3282 = vrot.lane.b32.xlu0 %v3264, 120
      %v3283 = vpop.permute.xlu0 %3282
      %3284 = vrot.lane.b32.xlu0 %v3265, 120
      %v3285 = vpop.permute.xlu0 %3284
      %3286 = vrot.lane.b32.xlu0 %v3266, 120
      %v3287 = vpop.permute.xlu0 %3286
      %3288 = vrot.lane.b32.xlu0 %v3267, 120
      %v3289 = vpop.permute.xlu0 %3288
      %3290 = vrot.lane.b32.xlu0 %v3268, 120
      %v3291 = vpop.permute.xlu0 %3290
      %3292 = vrot.lane.b32.xlu0 %v3269, 120
      %v3293 = vpop.permute.xlu0 %3292
      %v3302 = vsel %vm365, %v3279, 0.0
      %v3303 = vsel %vm365, %v3281, 0.0
      %v3304 = vsel %vm365, %v3283, 0.0
      %v3305 = vsel %vm365, %v3285, 0.0
      %v3306 = vsel %vm365, %v3287, 0.0
      %v3307 = vsel %vm365, %v3289, 0.0
      %v3308 = vsel %vm365, %v3291, 0.0
      %v3309 = vsel %vm365, %v3293, 0.0
      %v3310 = vmul.f32 %v3302, 0.046875
      %v3311 = vmul.f32 %v3303, 0.046875
      %v3312 = vmul.f32 %v3304, 0.046875
      %v3313 = vmul.f32 %v3305, 0.046875
      %v3314 = vmul.f32 %v3306, 0.046875
      %v3315 = vmul.f32 %v3307, 0.046875
      %v3316 = vmul.f32 %v3308, 0.046875
      %v3317 = vmul.f32 %v3309, 0.046875
      %3326 = vrot.lane.b32.xlu0 %v3310, 9
      %v3327 = vpop.permute.xlu0 %3326
      %3328 = vrot.lane.b32.xlu0 %v3311, 9
      %v3329 = vpop.permute.xlu0 %3328
      %3330 = vrot.lane.b32.xlu0 %v3312, 9
      %v3331 = vpop.permute.xlu0 %3330
      %3332 = vrot.lane.b32.xlu0 %v3313, 9
      %v3333 = vpop.permute.xlu0 %3332
      %3334 = vrot.lane.b32.xlu0 %v3314, 9
      %v3335 = vpop.permute.xlu0 %3334
      %3336 = vrot.lane.b32.xlu0 %v3315, 9
      %v3337 = vpop.permute.xlu0 %3336
      %3338 = vrot.lane.b32.xlu0 %v3316, 9
      %v3339 = vpop.permute.xlu0 %3338
      %3340 = vrot.lane.b32.xlu0 %v3317, 9
      %v3341 = vpop.permute.xlu0 %3340
      %v3350 = vadd.f32 %v3245, %v3327
      %v3351 = vadd.f32 %v3246, %v3329
      %v3352 = vadd.f32 %v3247, %v3331
      %v3353 = vadd.f32 %v3248, %v3333
      %v3354 = vadd.f32 %v3249, %v3335
      %v3355 = vadd.f32 %v3250, %v3337
      %v3356 = vadd.f32 %v3251, %v3339
      %v3357 = vadd.f32 %v3252, %v3341
      %v3358 = vmul.f32 %v3262, 0.140625
      %v3359 = vmul.f32 %v3263, 0.140625
      %v3360 = vmul.f32 %v3264, 0.140625
      %v3361 = vmul.f32 %v3265, 0.140625
      %v3362 = vmul.f32 %v3266, 0.140625
      %v3363 = vmul.f32 %v3267, 0.140625
      %v3364 = vmul.f32 %v3268, 0.140625
      %v3365 = vmul.f32 %v3269, 0.140625
      %v3366 = vadd.f32 %v3350, %v3358
      %v3367 = vadd.f32 %v3351, %v3359
      %v3368 = vadd.f32 %v3352, %v3360
      %v3369 = vadd.f32 %v3353, %v3361
      %v3370 = vadd.f32 %v3354, %v3362
      %v3371 = vadd.f32 %v3355, %v3363
      %v3372 = vadd.f32 %v3356, %v3364
      %v3373 = vadd.f32 %v3357, %v3365
      %3374 = vrot.lane.b32.xlu0 %v3262, 112
      %v3375 = vpop.permute.xlu0 %3374
      %3376 = vrot.lane.b32.xlu0 %v3263, 112
      %v3377 = vpop.permute.xlu0 %3376
      %3378 = vrot.lane.b32.xlu0 %v3264, 112
      %v3379 = vpop.permute.xlu0 %3378
      %3380 = vrot.lane.b32.xlu0 %v3265, 112
      %v3381 = vpop.permute.xlu0 %3380
      %3382 = vrot.lane.b32.xlu0 %v3266, 112
      %v3383 = vpop.permute.xlu0 %3382
      %3384 = vrot.lane.b32.xlu0 %v3267, 112
      %v3385 = vpop.permute.xlu0 %3384
      %3386 = vrot.lane.b32.xlu0 %v3268, 112
      %v3387 = vpop.permute.xlu0 %3386
      %3388 = vrot.lane.b32.xlu0 %v3269, 112
      %v3389 = vpop.permute.xlu0 %3388
      %v3398 = vsel %vm365, %v3375, 0.0
      %v3399 = vsel %vm365, %v3377, 0.0
      %v3400 = vsel %vm365, %v3379, 0.0
      %v3401 = vsel %vm365, %v3381, 0.0
      %v3402 = vsel %vm365, %v3383, 0.0
      %v3403 = vsel %vm365, %v3385, 0.0
      %v3404 = vsel %vm365, %v3387, 0.0
      %v3405 = vsel %vm365, %v3389, 0.0
      %v3406 = vmul.f32 %v3398, 0.015625
      %v3407 = vmul.f32 %v3399, 0.015625
      %v3408 = vmul.f32 %v3400, 0.015625
      %v3409 = vmul.f32 %v3401, 0.015625
      %v3410 = vmul.f32 %v3402, 0.015625
      %v3411 = vmul.f32 %v3403, 0.015625
      %v3412 = vmul.f32 %v3404, 0.015625
      %v3413 = vmul.f32 %v3405, 0.015625
      %3422 = vrot.lane.b32.xlu0 %v3406, 9
      %v3423 = vpop.permute.xlu0 %3422
      %3424 = vrot.lane.b32.xlu0 %v3407, 9
      %v3425 = vpop.permute.xlu0 %3424
      %3426 = vrot.lane.b32.xlu0 %v3408, 9
      %v3427 = vpop.permute.xlu0 %3426
      %3428 = vrot.lane.b32.xlu0 %v3409, 9
      %v3429 = vpop.permute.xlu0 %3428
      %3430 = vrot.lane.b32.xlu0 %v3410, 9
      %v3431 = vpop.permute.xlu0 %3430
      %3432 = vrot.lane.b32.xlu0 %v3411, 9
      %v3433 = vpop.permute.xlu0 %3432
      %3434 = vrot.lane.b32.xlu0 %v3412, 9
      %v3435 = vpop.permute.xlu0 %3434
      %3436 = vrot.lane.b32.xlu0 %v3413, 9
      %v3437 = vpop.permute.xlu0 %3436
      %v3446 = vadd.f32 %v3366, %v3423
      %v3447 = vadd.f32 %v3367, %v3425
      %v3448 = vadd.f32 %v3368, %v3427
      %v3449 = vadd.f32 %v3369, %v3429
      %v3450 = vadd.f32 %v3370, %v3431
      %v3451 = vadd.f32 %v3371, %v3433
      %v3452 = vadd.f32 %v3372, %v3435
      %v3453 = vadd.f32 %v3373, %v3437
      %v3454 = vmul.f32 %v3262, 0.046875
      %v3455 = vmul.f32 %v3263, 0.046875
      %v3456 = vmul.f32 %v3264, 0.046875
      %v3457 = vmul.f32 %v3265, 0.046875
      %v3458 = vmul.f32 %v3266, 0.046875
      %v3459 = vmul.f32 %v3267, 0.046875
      %v3460 = vmul.f32 %v3268, 0.046875
      %v3461 = vmul.f32 %v3269, 0.046875
      %3470 = vrot.lane.b32.xlu0 %v3454, 120
      %v3471 = vpop.permute.xlu0 %3470
      %3472 = vrot.lane.b32.xlu0 %v3455, 120
      %v3473 = vpop.permute.xlu0 %3472
      %3474 = vrot.lane.b32.xlu0 %v3456, 120
      %v3475 = vpop.permute.xlu0 %3474
      %3476 = vrot.lane.b32.xlu0 %v3457, 120
      %v3477 = vpop.permute.xlu0 %3476
      %3478 = vrot.lane.b32.xlu0 %v3458, 120
      %v3479 = vpop.permute.xlu0 %3478
      %3480 = vrot.lane.b32.xlu0 %v3459, 120
      %v3481 = vpop.permute.xlu0 %3480
      %3482 = vrot.lane.b32.xlu0 %v3460, 120
      %v3483 = vpop.permute.xlu0 %3482
      %3484 = vrot.lane.b32.xlu0 %v3461, 120
      %v3485 = vpop.permute.xlu0 %3484
      %v3494 = vadd.f32 %v3446, %v3471
      %v3495 = vadd.f32 %v3447, %v3473
      %v3496 = vadd.f32 %v3448, %v3475
      %v3497 = vadd.f32 %v3449, %v3477
      %v3498 = vadd.f32 %v3450, %v3479
      %v3499 = vadd.f32 %v3451, %v3481
      %v3500 = vadd.f32 %v3452, %v3483
      %v3501 = vadd.f32 %v3453, %v3485
      %s3502 = scalar_lea.vmem %s302, 64
      %v3503 = vld [vmem:[%s3502] sm:$0xf]
      %v3504 = vld [vmem:[%s3502 + $0x4] sm:$0xf]
      %v3505 = vld [vmem:[%s3502 + $0x8] sm:$0xf]
      %v3506 = vld [vmem:[%s3502 + $0xc] sm:$0xf]
      %v3507 = vld [vmem:[%s3502 + $0x10] sm:$0xf]
      %v3508 = vld [vmem:[%s3502 + $0x14] sm:$0xf]
      %v3509 = vld [vmem:[%s3502 + $0x18] sm:$0xf]
      %v3510 = vld [vmem:[%s3502 + $0x1c] sm:$0xf]
      %v3511 = vunpack.c.l.bf16 %v3503
      %v3512 = vunpack.c.l.bf16 %v3504
      %v3513 = vunpack.c.l.bf16 %v3505
      %v3514 = vunpack.c.l.bf16 %v3506
      %v3515 = vunpack.c.l.bf16 %v3507
      %v3516 = vunpack.c.l.bf16 %v3508
      %v3517 = vunpack.c.l.bf16 %v3509
      %v3518 = vunpack.c.l.bf16 %v3510
      %v3519 = vmul.f32 %v3511, 0.046875
      %v3520 = vmul.f32 %v3512, 0.046875
      %v3521 = vmul.f32 %v3513, 0.046875
      %v3522 = vmul.f32 %v3514, 0.046875
      %v3523 = vmul.f32 %v3515, 0.046875
      %v3524 = vmul.f32 %v3516, 0.046875
      %v3525 = vmul.f32 %v3517, 0.046875
      %v3526 = vmul.f32 %v3518, 0.046875
      %3535 = vrot.lane.b32.xlu0 %v3519, 8
      %v3536 = vpop.permute.xlu0 %3535
      %3537 = vrot.lane.b32.xlu0 %v3520, 8
      %v3538 = vpop.permute.xlu0 %3537
      %3539 = vrot.lane.b32.xlu0 %v3521, 8
      %v3540 = vpop.permute.xlu0 %3539
      %3541 = vrot.lane.b32.xlu0 %v3522, 8
      %v3542 = vpop.permute.xlu0 %3541
      %3543 = vrot.lane.b32.xlu0 %v3523, 8
      %v3544 = vpop.permute.xlu0 %3543
      %3545 = vrot.lane.b32.xlu0 %v3524, 8
      %v3546 = vpop.permute.xlu0 %3545
      %3547 = vrot.lane.b32.xlu0 %v3525, 8
      %v3548 = vpop.permute.xlu0 %3547
      %3549 = vrot.lane.b32.xlu0 %v3526, 8
      %v3550 = vpop.permute.xlu0 %3549
      %v3559 = vadd.f32 %v3494, %v3536
      %v3560 = vadd.f32 %v3495, %v3538
      %v3561 = vadd.f32 %v3496, %v3540
      %v3562 = vadd.f32 %v3497, %v3542
      %v3563 = vadd.f32 %v3498, %v3544
      %v3564 = vadd.f32 %v3499, %v3546
      %v3565 = vadd.f32 %v3500, %v3548
      %v3566 = vadd.f32 %v3501, %v3550
      %3575 = vrot.lane.b32.xlu0 %v3511, 126
      %v3576 = vpop.permute.xlu0 %3575
      %3577 = vrot.lane.b32.xlu0 %v3512, 126
      %v3578 = vpop.permute.xlu0 %3577
      %3579 = vrot.lane.b32.xlu0 %v3513, 126
      %v3580 = vpop.permute.xlu0 %3579
      %3581 = vrot.lane.b32.xlu0 %v3514, 126
      %v3582 = vpop.permute.xlu0 %3581
      %3583 = vrot.lane.b32.xlu0 %v3515, 126
      %v3584 = vpop.permute.xlu0 %3583
      %3585 = vrot.lane.b32.xlu0 %v3516, 126
      %v3586 = vpop.permute.xlu0 %3585
      %3587 = vrot.lane.b32.xlu0 %v3517, 126
      %v3588 = vpop.permute.xlu0 %3587
      %3589 = vrot.lane.b32.xlu0 %v3518, 126
      %v3590 = vpop.permute.xlu0 %3589
      %v3599 = vsel %vm441, %v3576, 0.0
      %v3600 = vsel %vm441, %v3578, 0.0
      %v3601 = vsel %vm441, %v3580, 0.0
      %v3602 = vsel %vm441, %v3582, 0.0
      %v3603 = vsel %vm441, %v3584, 0.0
      %v3604 = vsel %vm441, %v3586, 0.0
      %v3605 = vsel %vm441, %v3588, 0.0
      %v3606 = vsel %vm441, %v3590, 0.0
      %v3607 = vmul.f32 %v3599, 0.015625
      %v3608 = vmul.f32 %v3600, 0.015625
      %v3609 = vmul.f32 %v3601, 0.015625
      %v3610 = vmul.f32 %v3602, 0.015625
      %v3611 = vmul.f32 %v3603, 0.015625
      %v3612 = vmul.f32 %v3604, 0.015625
      %v3613 = vmul.f32 %v3605, 0.015625
      %v3614 = vmul.f32 %v3606, 0.015625
      %3623 = vrot.lane.b32.xlu0 %v3607, 9
      %v3624 = vpop.permute.xlu0 %3623
      %3625 = vrot.lane.b32.xlu0 %v3608, 9
      %v3626 = vpop.permute.xlu0 %3625
      %3627 = vrot.lane.b32.xlu0 %v3609, 9
      %v3628 = vpop.permute.xlu0 %3627
      %3629 = vrot.lane.b32.xlu0 %v3610, 9
      %v3630 = vpop.permute.xlu0 %3629
      %3631 = vrot.lane.b32.xlu0 %v3611, 9
      %v3632 = vpop.permute.xlu0 %3631
      %3633 = vrot.lane.b32.xlu0 %v3612, 9
      %v3634 = vpop.permute.xlu0 %3633
      %3635 = vrot.lane.b32.xlu0 %v3613, 9
      %v3636 = vpop.permute.xlu0 %3635
      %3637 = vrot.lane.b32.xlu0 %v3614, 9
      %v3638 = vpop.permute.xlu0 %3637
      %v3647 = vadd.f32 %v3559, %v3624
      %v3648 = vadd.f32 %v3560, %v3626
      %v3649 = vadd.f32 %v3561, %v3628
      %v3650 = vadd.f32 %v3562, %v3630
      %v3651 = vadd.f32 %v3563, %v3632
      %v3652 = vadd.f32 %v3564, %v3634
      %v3653 = vadd.f32 %v3565, %v3636
      %v3654 = vadd.f32 %v3566, %v3638
      %v3655 = vmul.f32 %v3511, 0.140625
      %v3656 = vmul.f32 %v3512, 0.140625
      %v3657 = vmul.f32 %v3513, 0.140625
      %v3658 = vmul.f32 %v3514, 0.140625
      %v3659 = vmul.f32 %v3515, 0.140625
      %v3660 = vmul.f32 %v3516, 0.140625
      %v3661 = vmul.f32 %v3517, 0.140625
      %v3662 = vmul.f32 %v3518, 0.140625
      %v3663 = vadd.f32 %v3647, %v3655
      %v3664 = vadd.f32 %v3648, %v3656
      %v3665 = vadd.f32 %v3649, %v3657
      %v3666 = vadd.f32 %v3650, %v3658
      %v3667 = vadd.f32 %v3651, %v3659
      %v3668 = vadd.f32 %v3652, %v3660
      %v3669 = vadd.f32 %v3653, %v3661
      %v3670 = vadd.f32 %v3654, %v3662
      %3671 = vrot.lane.b32.xlu0 %v3511, 118
      %v3672 = vpop.permute.xlu0 %3671
      %3673 = vrot.lane.b32.xlu0 %v3512, 118
      %v3674 = vpop.permute.xlu0 %3673
      %3675 = vrot.lane.b32.xlu0 %v3513, 118
      %v3676 = vpop.permute.xlu0 %3675
      %3677 = vrot.lane.b32.xlu0 %v3514, 118
      %v3678 = vpop.permute.xlu0 %3677
      %3679 = vrot.lane.b32.xlu0 %v3515, 118
      %v3680 = vpop.permute.xlu0 %3679
      %3681 = vrot.lane.b32.xlu0 %v3516, 118
      %v3682 = vpop.permute.xlu0 %3681
      %3683 = vrot.lane.b32.xlu0 %v3517, 118
      %v3684 = vpop.permute.xlu0 %3683
      %3685 = vrot.lane.b32.xlu0 %v3518, 118
      %v3686 = vpop.permute.xlu0 %3685
      %v3695 = vsel %vm441, %v3672, 0.0
      %v3696 = vsel %vm441, %v3674, 0.0
      %v3697 = vsel %vm441, %v3676, 0.0
      %v3698 = vsel %vm441, %v3678, 0.0
      %v3699 = vsel %vm441, %v3680, 0.0
      %v3700 = vsel %vm441, %v3682, 0.0
      %v3701 = vsel %vm441, %v3684, 0.0
      %v3702 = vsel %vm441, %v3686, 0.0
      %v3703 = vmul.f32 %v3695, 0.046875
      %v3704 = vmul.f32 %v3696, 0.046875
      %v3705 = vmul.f32 %v3697, 0.046875
      %v3706 = vmul.f32 %v3698, 0.046875
      %v3707 = vmul.f32 %v3699, 0.046875
      %v3708 = vmul.f32 %v3700, 0.046875
      %v3709 = vmul.f32 %v3701, 0.046875
      %v3710 = vmul.f32 %v3702, 0.046875
      %3719 = vrot.lane.b32.xlu0 %v3703, 9
      %v3720 = vpop.permute.xlu0 %3719
      %3721 = vrot.lane.b32.xlu0 %v3704, 9
      %v3722 = vpop.permute.xlu0 %3721
      %3723 = vrot.lane.b32.xlu0 %v3705, 9
      %v3724 = vpop.permute.xlu0 %3723
      %3725 = vrot.lane.b32.xlu0 %v3706, 9
      %v3726 = vpop.permute.xlu0 %3725
      %3727 = vrot.lane.b32.xlu0 %v3707, 9
      %v3728 = vpop.permute.xlu0 %3727
      %3729 = vrot.lane.b32.xlu0 %v3708, 9
      %v3730 = vpop.permute.xlu0 %3729
      %3731 = vrot.lane.b32.xlu0 %v3709, 9
      %v3732 = vpop.permute.xlu0 %3731
      %3733 = vrot.lane.b32.xlu0 %v3710, 9
      %v3734 = vpop.permute.xlu0 %3733
      %v3743 = vadd.f32 %v3663, %v3720
      %v3744 = vadd.f32 %v3664, %v3722
      %v3745 = vadd.f32 %v3665, %v3724
      %v3746 = vadd.f32 %v3666, %v3726
      %v3747 = vadd.f32 %v3667, %v3728
      %v3748 = vadd.f32 %v3668, %v3730
      %v3749 = vadd.f32 %v3669, %v3732
      %v3750 = vadd.f32 %v3670, %v3734
      %s3751 = scalar_lea.vmem %s302, 96
      %v3752 = vld [vmem:[%s3751] sm:$0xf]
      %v3753 = vld [vmem:[%s3751 + $0x4] sm:$0xf]
      %v3754 = vld [vmem:[%s3751 + $0x8] sm:$0xf]
      %v3755 = vld [vmem:[%s3751 + $0xc] sm:$0xf]
      %v3756 = vld [vmem:[%s3751 + $0x10] sm:$0xf]
      %v3757 = vld [vmem:[%s3751 + $0x14] sm:$0xf]
      %v3758 = vld [vmem:[%s3751 + $0x18] sm:$0xf]
      %v3759 = vld [vmem:[%s3751 + $0x1c] sm:$0xf]
      %v3760 = vunpack.c.l.bf16 %v3752
      %v3761 = vunpack.c.l.bf16 %v3753
      %v3762 = vunpack.c.l.bf16 %v3754
      %v3763 = vunpack.c.l.bf16 %v3755
      %v3764 = vunpack.c.l.bf16 %v3756
      %v3765 = vunpack.c.l.bf16 %v3757
      %v3766 = vunpack.c.l.bf16 %v3758
      %v3767 = vunpack.c.l.bf16 %v3759
      %v3768 = vsel %vm365, %v3760, 0.0
      %v3769 = vsel %vm365, %v3761, 0.0
      %v3770 = vsel %vm365, %v3762, 0.0
      %v3771 = vsel %vm365, %v3763, 0.0
      %v3772 = vsel %vm365, %v3764, 0.0
      %v3773 = vsel %vm365, %v3765, 0.0
      %v3774 = vsel %vm365, %v3766, 0.0
      %v3775 = vsel %vm365, %v3767, 0.0
      %v3776 = vmul.f32 %v3768, 0.015625
      %v3777 = vmul.f32 %v3769, 0.015625
      %v3778 = vmul.f32 %v3770, 0.015625
      %v3779 = vmul.f32 %v3771, 0.015625
      %v3780 = vmul.f32 %v3772, 0.015625
      %v3781 = vmul.f32 %v3773, 0.015625
      %v3782 = vmul.f32 %v3774, 0.015625
      %v3783 = vmul.f32 %v3775, 0.015625
      %3792 = vrot.lane.b32.xlu0 %v3776, 9
      %v3793 = vpop.permute.xlu0 %3792
      %3794 = vrot.lane.b32.xlu0 %v3777, 9
      %v3795 = vpop.permute.xlu0 %3794
      %3796 = vrot.lane.b32.xlu0 %v3778, 9
      %v3797 = vpop.permute.xlu0 %3796
      %3798 = vrot.lane.b32.xlu0 %v3779, 9
      %v3799 = vpop.permute.xlu0 %3798
      %3800 = vrot.lane.b32.xlu0 %v3780, 9
      %v3801 = vpop.permute.xlu0 %3800
      %3802 = vrot.lane.b32.xlu0 %v3781, 9
      %v3803 = vpop.permute.xlu0 %3802
      %3804 = vrot.lane.b32.xlu0 %v3782, 9
      %v3805 = vpop.permute.xlu0 %3804
      %3806 = vrot.lane.b32.xlu0 %v3783, 9
      %v3807 = vpop.permute.xlu0 %3806
      %v3816 = vadd.f32 %v3743, %v3793
      %v3817 = vadd.f32 %v3744, %v3795
      %v3818 = vadd.f32 %v3745, %v3797
      %v3819 = vadd.f32 %v3746, %v3799
      %v3820 = vadd.f32 %v3747, %v3801
      %v3821 = vadd.f32 %v3748, %v3803
      %v3822 = vadd.f32 %v3749, %v3805
      %v3823 = vadd.f32 %v3750, %v3807
      %v3824 = vmul.f32 %v3760, 0.046875
      %v3825 = vmul.f32 %v3761, 0.046875
      %v3826 = vmul.f32 %v3762, 0.046875
      %v3827 = vmul.f32 %v3763, 0.046875
      %v3828 = vmul.f32 %v3764, 0.046875
      %v3829 = vmul.f32 %v3765, 0.046875
      %v3830 = vmul.f32 %v3766, 0.046875
      %v3831 = vmul.f32 %v3767, 0.046875
      %3840 = vrot.lane.b32.xlu0 %v3824, 8
      %v3841 = vpop.permute.xlu0 %3840
      %3842 = vrot.lane.b32.xlu0 %v3825, 8
      %v3843 = vpop.permute.xlu0 %3842
      %3844 = vrot.lane.b32.xlu0 %v3826, 8
      %v3845 = vpop.permute.xlu0 %3844
      %3846 = vrot.lane.b32.xlu0 %v3827, 8
      %v3847 = vpop.permute.xlu0 %3846
      %3848 = vrot.lane.b32.xlu0 %v3828, 8
      %v3849 = vpop.permute.xlu0 %3848
      %3850 = vrot.lane.b32.xlu0 %v3829, 8
      %v3851 = vpop.permute.xlu0 %3850
      %3852 = vrot.lane.b32.xlu0 %v3830, 8
      %v3853 = vpop.permute.xlu0 %3852
      %3854 = vrot.lane.b32.xlu0 %v3831, 8
      %v3855 = vpop.permute.xlu0 %3854
      %v3864 = vadd.f32 %v3816, %v3841
      %v3865 = vadd.f32 %v3817, %v3843
      %v3866 = vadd.f32 %v3818, %v3845
      %v3867 = vadd.f32 %v3819, %v3847
      %v3868 = vadd.f32 %v3820, %v3849
      %v3869 = vadd.f32 %v3821, %v3851
      %v3870 = vadd.f32 %v3822, %v3853
      %v3871 = vadd.f32 %v3823, %v3855
      %3880 = vrot.lane.b32.xlu0 %v3760, 120
      %v3881 = vpop.permute.xlu0 %3880
      %3882 = vrot.lane.b32.xlu0 %v3761, 120
      %v3883 = vpop.permute.xlu0 %3882
      %3884 = vrot.lane.b32.xlu0 %v3762, 120
      %v3885 = vpop.permute.xlu0 %3884
      %3886 = vrot.lane.b32.xlu0 %v3763, 120
      %v3887 = vpop.permute.xlu0 %3886
      %3888 = vrot.lane.b32.xlu0 %v3764, 120
      %v3889 = vpop.permute.xlu0 %3888
      %3890 = vrot.lane.b32.xlu0 %v3765, 120
      %v3891 = vpop.permute.xlu0 %3890
      %3892 = vrot.lane.b32.xlu0 %v3766, 120
      %v3893 = vpop.permute.xlu0 %3892
      %3894 = vrot.lane.b32.xlu0 %v3767, 120
      %v3895 = vpop.permute.xlu0 %3894
      %v3904 = vsel %vm365, %v3881, 0.0
      %v3905 = vsel %vm365, %v3883, 0.0
      %v3906 = vsel %vm365, %v3885, 0.0
      %v3907 = vsel %vm365, %v3887, 0.0
      %v3908 = vsel %vm365, %v3889, 0.0
      %v3909 = vsel %vm365, %v3891, 0.0
      %v3910 = vsel %vm365, %v3893, 0.0
      %v3911 = vsel %vm365, %v3895, 0.0
      %v3912 = vmul.f32 %v3904, 0.046875
      %v3913 = vmul.f32 %v3905, 0.046875
      %v3914 = vmul.f32 %v3906, 0.046875
      %v3915 = vmul.f32 %v3907, 0.046875
      %v3916 = vmul.f32 %v3908, 0.046875
      %v3917 = vmul.f32 %v3909, 0.046875
      %v3918 = vmul.f32 %v3910, 0.046875
      %v3919 = vmul.f32 %v3911, 0.046875
      %3928 = vrot.lane.b32.xlu0 %v3912, 9
      %v3929 = vpop.permute.xlu0 %3928
      %3930 = vrot.lane.b32.xlu0 %v3913, 9
      %v3931 = vpop.permute.xlu0 %3930
      %3932 = vrot.lane.b32.xlu0 %v3914, 9
      %v3933 = vpop.permute.xlu0 %3932
      %3934 = vrot.lane.b32.xlu0 %v3915, 9
      %v3935 = vpop.permute.xlu0 %3934
      %3936 = vrot.lane.b32.xlu0 %v3916, 9
      %v3937 = vpop.permute.xlu0 %3936
      %3938 = vrot.lane.b32.xlu0 %v3917, 9
      %v3939 = vpop.permute.xlu0 %3938
      %3940 = vrot.lane.b32.xlu0 %v3918, 9
      %v3941 = vpop.permute.xlu0 %3940
      %3942 = vrot.lane.b32.xlu0 %v3919, 9
      %v3943 = vpop.permute.xlu0 %3942
      %v3952 = vadd.f32 %v3864, %v3929
      %v3953 = vadd.f32 %v3865, %v3931
      %v3954 = vadd.f32 %v3866, %v3933
      %v3955 = vadd.f32 %v3867, %v3935
      %v3956 = vadd.f32 %v3868, %v3937
      %v3957 = vadd.f32 %v3869, %v3939
      %v3958 = vadd.f32 %v3870, %v3941
      %v3959 = vadd.f32 %v3871, %v3943
      %v3960 = vmul.f32 %v3760, 0.140625
      %v3961 = vmul.f32 %v3761, 0.140625
      %v3962 = vmul.f32 %v3762, 0.140625
      %v3963 = vmul.f32 %v3763, 0.140625
      %v3964 = vmul.f32 %v3764, 0.140625
      %v3965 = vmul.f32 %v3765, 0.140625
      %v3966 = vmul.f32 %v3766, 0.140625
      %v3967 = vmul.f32 %v3767, 0.140625
      %v3968 = vadd.f32 %v3952, %v3960
      %v3969 = vadd.f32 %v3953, %v3961
      %v3970 = vadd.f32 %v3954, %v3962
      %v3971 = vadd.f32 %v3955, %v3963
      %v3972 = vadd.f32 %v3956, %v3964
      %v3973 = vadd.f32 %v3957, %v3965
      %v3974 = vadd.f32 %v3958, %v3966
      %v3975 = vadd.f32 %v3959, %v3967
      %v3976 = vld [vmem:[%s319] sm:$0xf]
      %v3977 = vld [vmem:[%s319 + $0x4] sm:$0xf]
      %v3978 = vld [vmem:[%s319 + $0x8] sm:$0xf]
      %v3979 = vld [vmem:[%s319 + $0xc] sm:$0xf]
      %v3980 = vld [vmem:[%s319 + $0x10] sm:$0xf]
      %v3981 = vld [vmem:[%s319 + $0x14] sm:$0xf]
      %v3982 = vld [vmem:[%s319 + $0x18] sm:$0xf]
      %v3983 = vld [vmem:[%s319 + $0x1c] sm:$0xf]
      %v3984 = vld [vmem:[%s319 + $0x20] sm:$0xf]
      %v3985 = vld [vmem:[%s319 + $0x24] sm:$0xf]
      %v3986 = vld [vmem:[%s319 + $0x28] sm:$0xf]
      %v3987 = vld [vmem:[%s319 + $0x2c] sm:$0xf]
      %v3988 = vld [vmem:[%s319 + $0x30] sm:$0xf]
      %v3989 = vld [vmem:[%s319 + $0x34] sm:$0xf]
      %v3990 = vld [vmem:[%s319 + $0x38] sm:$0xf]
      %v3991 = vld [vmem:[%s319 + $0x3c] sm:$0xf]
      %v3992 = vpack.c.bf16 %v3969, %v3968
      %v3993 = vpack.c.bf16 %v3971, %v3970
      %v3994 = vpack.c.bf16 %v3973, %v3972
      %v3995 = vpack.c.bf16 %v3975, %v3974
      %v4012 = vunpack.c.l.b16 %v3976
      %v4013 = vunpack.c.l.b16 %v3977
      %v4014 = vunpack.c.l.b16 %v3978
      %v4015 = vunpack.c.l.b16 %v3979
      %v4016 = vunpack.c.l.b16 %v3980
      %v4017 = vunpack.c.l.b16 %v3981
      %v4018 = vunpack.c.l.b16 %v3982
      %v4019 = vunpack.c.l.b16 %v3983
      %v4020 = vunpack.c.l.b16 %v3984
      %v4021 = vunpack.c.l.b16 %v3985
      %v4022 = vunpack.c.l.b16 %v3986
      %v4023 = vunpack.c.l.b16 %v3987
      %v4024 = vunpack.c.l.b16 %v3988
      %v4025 = vunpack.c.l.b16 %v3989
      %v4026 = vunpack.c.l.b16 %v3990
      %v4027 = vunpack.c.l.b16 %v3991
      %v4028 = vpack.c.b16 %v4013, %v4012
      %v4029 = vpack.c.b16 %v4015, %v4014
      %v4030 = vpack.c.b16 %v4017, %v4016
      %v4031 = vpack.c.b16 %v4019, %v4018
      %v4032 = vpack.c.b16 %v4021, %v4020
      %v4033 = vpack.c.b16 %v4023, %v4022
      %v4034 = vpack.c.b16 %v4025, %v4024
      %v4035 = vpack.c.b16 %v4027, %v4026
      %4040 = vrot.lane.b32.xlu0 %v3992, 119
      %v4041 = vpop.permute.xlu0 %4040
      %4042 = vrot.lane.b32.xlu0 %v3993, 119
      %v4043 = vpop.permute.xlu0 %4042
      %4044 = vrot.lane.b32.xlu0 %v3994, 119
      %v4045 = vpop.permute.xlu0 %4044
      %4046 = vrot.lane.b32.xlu0 %v3995, 119
      %v4047 = vpop.permute.xlu0 %4046
      %vm4052 = vcmask 523264
      %v4054 = vsel %vm4052, %v4028, 0
      %v4057 = vsel %vm4052, %v4029, 0
      %v4060 = vsel %vm4052, %v4030, 0
      %v4063 = vsel %vm4052, %v4031, 0
      %v4066 = vsel %vm4052, %v4032, 0
      %v4069 = vsel %vm4052, %v4033, 0
      %v4072 = vsel %vm4052, %v4034, 0
      %v4075 = vsel %vm4052, %v4035, 0
      %4077 = vmatprep.subr.bf16.mxu0 0
      %4078 = vmatpush1.bf16.msra.mxu0 %v4041
      %4079 = vmatprep.subr.bf16.mxu0 0
      %4080 = vmatpush1.bf16.msra.mxu0 %v4043
      %4081 = vmatprep.subr.bf16.mxu0 0
      %4082 = vmatpush1.bf16.msra.mxu0 %v4045
      %4083 = vmatprep.subr.bf16.mxu0 0
      %4084 = vmatpush1.bf16.msra.mxu0 %v4047
      %4085 = vmatprep.subr.bf16.mxu0 0
      %4086 = vmatpush1.bf16.msra.mxu0 0
      %4087 = vmatprep.subr.bf16.mxu0 0
      %4088 = vmatpush1.bf16.msra.mxu0 0
      %4089 = vmatprep.subr.bf16.mxu0 0
      %4090 = vmatpush1.bf16.msra.mxu0 0
      %4091 = vmatprep.subr.bf16.mxu0 0
      %4092 = vmatpush1.bf16.msra.mxu0 0
      %4093 = vmatprep.subr.bf16.mxu0 0
      %4094 = vmatpush1.bf16.msra.mxu0 0
      %4095 = vmatprep.subr.bf16.mxu0 0
      %4096 = vmatpush1.bf16.msra.mxu0 0
      %4097 = vmatprep.subr.bf16.mxu0 0
      %4098 = vmatpush1.bf16.msra.mxu0 0
      %4099 = vmatprep.subr.bf16.mxu0 0
      %4100 = vmatpush1.bf16.msra.mxu0 0
      %4101 = vmatprep.subr.bf16.mxu0 0
      %4102 = vmatpush1.bf16.msra.mxu0 0
      %4103 = vmatprep.subr.bf16.mxu0 0
      %4104 = vmatpush1.bf16.msra.mxu0 0
      %4105 = vmatprep.subr.bf16.mxu0 0
      %4106 = vmatpush1.bf16.msra.mxu0 0
      %4107 = vmatprep.subr.bf16.mxu0 0
      %4108 = vmatpush1.bf16.msra.mxu0 0
      %4109 = vmatprep.mubr.bf16.mxu0 0
      %4110 = vmatmul.mubr.bf16.gmra.mrb[0].mxu0 %v4054
      %v4111 = vpop.f32.mrb[0].mxu0
      %v4112 = vadd.f32 0.0, %v4111
      %v4113 = vpop.f32.mrb[0].mxu0
      %v4114 = vpop.f32.mrb[0].mxu0
      %v4115 = vadd.f32 0.0, %v4114
      %v4116 = vpop.f32.mrb[0].mxu0
      %4117 = vmatprep.mubr.bf16.mxu0 0
      %4118 = vmatmul.mubr.bf16.gmra.mrb[0].mxu0 %v4057
      %v4119 = vpop.f32.mrb[0].mxu0
      %v4120 = vadd.f32 0.0, %v4119
      %v4121 = vpop.f32.mrb[0].mxu0
      %v4122 = vpop.f32.mrb[0].mxu0
      %v4123 = vadd.f32 0.0, %v4122
      %v4124 = vpop.f32.mrb[0].mxu0
      %4125 = vmatprep.mubr.bf16.mxu0 0
      %4126 = vmatmul.mubr.bf16.gmra.mrb[0].mxu0 %v4060
      %v4127 = vpop.f32.mrb[0].mxu0
      %v4128 = vadd.f32 0.0, %v4127
      %v4129 = vpop.f32.mrb[0].mxu0
      %v4130 = vpop.f32.mrb[0].mxu0
      %v4131 = vadd.f32 0.0, %v4130
      %v4132 = vpop.f32.mrb[0].mxu0
      %4133 = vmatprep.mubr.bf16.mxu0 0
      %4134 = vmatmul.mubr.bf16.gmra.mrb[0].mxu0 %v4063
      %v4135 = vpop.f32.mrb[0].mxu0
      %v4136 = vadd.f32 0.0, %v4135
      %v4137 = vpop.f32.mrb[0].mxu0
      %v4138 = vpop.f32.mrb[0].mxu0
      %v4139 = vadd.f32 0.0, %v4138
      %v4140 = vpop.f32.mrb[0].mxu0
      %4141 = vmatprep.mubr.bf16.mxu0 0
      %4142 = vmatmul.mubr.bf16.gmra.mrb[0].mxu0 %v4066
      %v4143 = vpop.f32.mrb[0].mxu0
      %v4144 = vadd.f32 0.0, %v4143
      %v4145 = vpop.f32.mrb[0].mxu0
      %v4146 = vpop.f32.mrb[0].mxu0
      %v4147 = vadd.f32 0.0, %v4146
      %v4148 = vpop.f32.mrb[0].mxu0
      %4149 = vmatprep.mubr.bf16.mxu0 0
      %4150 = vmatmul.mubr.bf16.gmra.mrb[0].mxu0 %v4069
      %v4151 = vpop.f32.mrb[0].mxu0
      %v4152 = vadd.f32 0.0, %v4151
      %v4153 = vpop.f32.mrb[0].mxu0
      %v4154 = vpop.f32.mrb[0].mxu0
      %v4155 = vadd.f32 0.0, %v4154
      %v4156 = vpop.f32.mrb[0].mxu0
      %4157 = vmatprep.mubr.bf16.mxu0 0
      %4158 = vmatmul.mubr.bf16.gmra.mrb[0].mxu0 %v4072
      %v4159 = vpop.f32.mrb[0].mxu0
      %v4160 = vadd.f32 0.0, %v4159
      %v4161 = vpop.f32.mrb[0].mxu0
      %v4162 = vpop.f32.mrb[0].mxu0
      %v4163 = vadd.f32 0.0, %v4162
      %v4164 = vpop.f32.mrb[0].mxu0
      %4165 = vmatprep.mubr.bf16.mxu0 0
      %4166 = vmatmul.mubr.bf16.gmra.mrb[0].mxu0 %v4075
      %v4167 = vpop.f32.mrb[0].mxu0
      %v4168 = vadd.f32 0.0, %v4167
      %v4169 = vpop.f32.mrb[0].mxu0
      %v4170 = vpop.f32.mrb[0].mxu0
      %v4171 = vadd.f32 0.0, %v4170
      %v4172 = vpop.f32.mrb[0].mxu0
      %4173 = vdwg.mxu0
      %v4174 = vld [vmem:[%s325] sm:$0xff]
      %v4175 = vld [vmem:[%s325 + $0x8] sm:$0xff]
      %v4176 = vld [vmem:[%s325 + $0x10] sm:$0xff]
      %v4177 = vld [vmem:[%s325 + $0x18] sm:$0xff]
      %v4178 = vld [vmem:[%s325 + $0x20] sm:$0xff]
      %v4179 = vld [vmem:[%s325 + $0x28] sm:$0xff]
      %v4180 = vld [vmem:[%s325 + $0x30] sm:$0xff]
      %v4181 = vld [vmem:[%s325 + $0x38] sm:$0xff]
      %v4182 = vld [vmem:[%s325 + $0x40] sm:$0xff]
      %v4183 = vld [vmem:[%s325 + $0x48] sm:$0xff]
      %v4184 = vld [vmem:[%s325 + $0x50] sm:$0xff]
      %v4185 = vld [vmem:[%s325 + $0x58] sm:$0xff]
      %v4186 = vld [vmem:[%s325 + $0x60] sm:$0xff]
      %v4187 = vld [vmem:[%s325 + $0x68] sm:$0xff]
      %v4188 = vld [vmem:[%s325 + $0x70] sm:$0xff]
      %v4189 = vld [vmem:[%s325 + $0x78] sm:$0xff]
      %4191 = vset.pattern.permute.xlu0 0
      %4192 = vperm.xlu0 %4191, %v4174
      %v4193 = vpop.permute.xlu0 %4192
      %4196 = vset.pattern.permute.xlu0 0
      %4197 = vperm.xlu0 %4196, %v4175
      %v4198 = vpop.permute.xlu0 %4197
      %4201 = vset.pattern.permute.xlu0 0
      %4202 = vperm.xlu0 %4201, %v4176
      %v4203 = vpop.permute.xlu0 %4202
      %4206 = vset.pattern.permute.xlu0 0
      %4207 = vperm.xlu0 %4206, %v4177
      %v4208 = vpop.permute.xlu0 %4207
      %4211 = vset.pattern.permute.xlu0 0
      %4212 = vperm.xlu0 %4211, %v4178
      %v4213 = vpop.permute.xlu0 %4212
      %4216 = vset.pattern.permute.xlu0 0
      %4217 = vperm.xlu0 %4216, %v4179
      %v4218 = vpop.permute.xlu0 %4217
      %4221 = vset.pattern.permute.xlu0 0
      %4222 = vperm.xlu0 %4221, %v4180
      %v4223 = vpop.permute.xlu0 %4222
      %4226 = vset.pattern.permute.xlu0 0
      %4227 = vperm.xlu0 %4226, %v4181
      %v4228 = vpop.permute.xlu0 %4227
      %4231 = vset.pattern.permute.xlu0 0
      %4232 = vperm.xlu0 %4231, %v4182
      %v4233 = vpop.permute.xlu0 %4232
      %4236 = vset.pattern.permute.xlu0 0
      %4237 = vperm.xlu0 %4236, %v4183
      %v4238 = vpop.permute.xlu0 %4237
      %4241 = vset.pattern.permute.xlu0 0
      %4242 = vperm.xlu0 %4241, %v4184
      %v4243 = vpop.permute.xlu0 %4242
      %4246 = vset.pattern.permute.xlu0 0
      %4247 = vperm.xlu0 %4246, %v4185
      %v4248 = vpop.permute.xlu0 %4247
      %4251 = vset.pattern.permute.xlu0 0
      %4252 = vperm.xlu0 %4251, %v4186
      %v4253 = vpop.permute.xlu0 %4252
      %4256 = vset.pattern.permute.xlu0 0
      %4257 = vperm.xlu0 %4256, %v4187
      %v4258 = vpop.permute.xlu0 %4257
      %4261 = vset.pattern.permute.xlu0 0
      %4262 = vperm.xlu0 %4261, %v4188
      %v4263 = vpop.permute.xlu0 %4262
      %4266 = vset.pattern.permute.xlu0 0
      %4267 = vperm.xlu0 %4266, %v4189
      %v4268 = vpop.permute.xlu0 %4267
      %v4270 = vadd.f32 %v2989, %v4193
      %v4271 = vadd.f32 %v2990, %v4198
      %v4272 = vadd.f32 %v2991, %v4203
      %v4273 = vadd.f32 %v2992, %v4208
      %v4274 = vadd.f32 %v2993, %v4213
      %v4275 = vadd.f32 %v2994, %v4218
      %v4276 = vadd.f32 %v2995, %v4223
      %v4277 = vadd.f32 %v2996, %v4228
      %v4278 = vadd.f32 %v2997, %v4233
      %v4279 = vadd.f32 %v2998, %v4238
      %v4280 = vadd.f32 %v2999, %v4243
      %v4281 = vadd.f32 %v3000, %v4248
      %v4282 = vadd.f32 %v3001, %v4253
      %v4283 = vadd.f32 %v3002, %v4258
      %v4284 = vadd.f32 %v3003, %v4263
      %v4285 = vadd.f32 %v3004, %v4268
      %vm4286 = vcmp.ge.f32.partialorder %v4270, 0.0
      %vm4287 = vcmp.ge.f32.partialorder %v4271, 0.0
      %vm4288 = vcmp.ge.f32.partialorder %v4272, 0.0
      %vm4289 = vcmp.ge.f32.partialorder %v4273, 0.0
      %vm4290 = vcmp.ge.f32.partialorder %v4274, 0.0
      %vm4291 = vcmp.ge.f32.partialorder %v4275, 0.0
      %vm4292 = vcmp.ge.f32.partialorder %v4276, 0.0
      %vm4293 = vcmp.ge.f32.partialorder %v4277, 0.0
      %vm4294 = vcmp.ge.f32.partialorder %v4278, 0.0
      %vm4295 = vcmp.ge.f32.partialorder %v4279, 0.0
      %vm4296 = vcmp.ge.f32.partialorder %v4280, 0.0
      %vm4297 = vcmp.ge.f32.partialorder %v4281, 0.0
      %vm4298 = vcmp.ge.f32.partialorder %v4282, 0.0
      %vm4299 = vcmp.ge.f32.partialorder %v4283, 0.0
      %vm4300 = vcmp.ge.f32.partialorder %v4284, 0.0
      %vm4301 = vcmp.ge.f32.partialorder %v4285, 0.0
      %v4302 = vmul.f32 %v4270, 0.2
      %v4303 = vmul.f32 %v4271, 0.2
      %v4304 = vmul.f32 %v4272, 0.2
      %v4305 = vmul.f32 %v4273, 0.2
      %v4306 = vmul.f32 %v4274, 0.2
      %v4307 = vmul.f32 %v4275, 0.2
      %v4308 = vmul.f32 %v4276, 0.2
      %v4309 = vmul.f32 %v4277, 0.2
      %v4310 = vmul.f32 %v4278, 0.2
      %v4311 = vmul.f32 %v4279, 0.2
      %v4312 = vmul.f32 %v4280, 0.2
      %v4313 = vmul.f32 %v4281, 0.2
      %v4314 = vmul.f32 %v4282, 0.2
      %v4315 = vmul.f32 %v4283, 0.2
      %v4316 = vmul.f32 %v4284, 0.2
      %v4317 = vmul.f32 %v4285, 0.2
      %v4318 = vsel %vm4286, %v4270, %v4302
      %v4319 = vsel %vm4287, %v4271, %v4303
      %v4320 = vsel %vm4288, %v4272, %v4304
      %v4321 = vsel %vm4289, %v4273, %v4305
      %v4322 = vsel %vm4290, %v4274, %v4306
      %v4323 = vsel %vm4291, %v4275, %v4307
      %v4324 = vsel %vm4292, %v4276, %v4308
      %v4325 = vsel %vm4293, %v4277, %v4309
      %v4326 = vsel %vm4294, %v4278, %v4310
      %v4327 = vsel %vm4295, %v4279, %v4311
      %v4328 = vsel %vm4296, %v4280, %v4312
      %v4329 = vsel %vm4297, %v4281, %v4313
      %v4330 = vsel %vm4298, %v4282, %v4314
      %v4331 = vsel %vm4299, %v4283, %v4315
      %v4332 = vsel %vm4300, %v4284, %v4316
      %v4333 = vsel %vm4301, %v4285, %v4317
      %v4334 = vadd.f32 %v4318, %v4112
      %v4335 = vadd.f32 %v4319, %v4115
      %v4336 = vadd.f32 %v4320, %v4120
      %v4337 = vadd.f32 %v4321, %v4123
      %v4338 = vadd.f32 %v4322, %v4128
      %v4339 = vadd.f32 %v4323, %v4131
      %v4340 = vadd.f32 %v4324, %v4136
      %v4341 = vadd.f32 %v4325, %v4139
      %v4342 = vadd.f32 %v4326, %v4144
      %v4343 = vadd.f32 %v4327, %v4147
      %v4344 = vadd.f32 %v4328, %v4152
      %v4345 = vadd.f32 %v4329, %v4155
      %v4346 = vadd.f32 %v4330, %v4160
      %v4347 = vadd.f32 %v4331, %v4163
      %v4348 = vadd.f32 %v4332, %v4168
      %v4349 = vadd.f32 %v4333, %v4171
      %4350 = vst.msk [vmem:[%s335] sm:$0xff] %vm4052, %v4334
      %4351 = vst.msk [vmem:[%s335 + $0x8] sm:$0xff] %vm4052, %v4335
      %4352 = vst.msk [vmem:[%s335 + $0x10] sm:$0xff] %vm4052, %v4336
      %4353 = vst.msk [vmem:[%s335 + $0x18] sm:$0xff] %vm4052, %v4337
      %4354 = vst.msk [vmem:[%s335 + $0x20] sm:$0xff] %vm4052, %v4338
      %4355 = vst.msk [vmem:[%s335 + $0x28] sm:$0xff] %vm4052, %v4339
      %4356 = vst.msk [vmem:[%s335 + $0x30] sm:$0xff] %vm4052, %v4340
      %4357 = vst.msk [vmem:[%s335 + $0x38] sm:$0xff] %vm4052, %v4341
      %4358 = vst.msk [vmem:[%s335 + $0x40] sm:$0xff] %vm4052, %v4342
      %4359 = vst.msk [vmem:[%s335 + $0x48] sm:$0xff] %vm4052, %v4343
      %4360 = vst.msk [vmem:[%s335 + $0x50] sm:$0xff] %vm4052, %v4344
      %4361 = vst.msk [vmem:[%s335 + $0x58] sm:$0xff] %vm4052, %v4345
      %4362 = vst.msk [vmem:[%s335 + $0x60] sm:$0xff] %vm4052, %v4346
      %4363 = vst.msk [vmem:[%s335 + $0x68] sm:$0xff] %vm4052, %v4347
      %4364 = vst.msk [vmem:[%s335 + $0x70] sm:$0xff] %vm4052, %v4348
      %4365 = vst.msk [vmem:[%s335 + $0x78] sm:$0xff] %vm4052, %v4349
      %s4366 = smul.u32 16, %s21
      %p4367 = scmp.lt.s32.totalorder %s20, 1
      %s4368 = scalar_select %p4367, %s20, 1
      %p4369 = scmp.lt.s32.totalorder %s4366, 15
      %s4370 = scalar_select %p4369, %s4366, 15
      %s4371 = smul.addr %s4368, 16
      %s4372 = sadd.s32 %s4370, %s4371
      %s4373 = smul.addr %s4372, 8
      %s4374 = scalar_lea.vmem %s5, %s4373
      // Predicated region
      $region41: #{resblock_forward.3} parent=39 // pred_check
        %p4375 = pneg %p178
      $region42: #{resblock_forward.3} parent=39 // pred_check_branch
        %4377 = sbr.rel (%p4375) target = $region44
      $region43: #{resblock_forward.3} parent=39 // pred_region
        %s4378 = smul.u32 16, %s21
      $region44: #{resblock_forward.3} parent=39 // pred_fallthru
        _
    $region40: #{resblock_forward.3} parent=5 // pred_fallthru
      _
    %p4379 = scmp.le.s32.totalorder 2, %s11
    // Predicated region
    $region45: #{resblock_forward.3} parent=5 // pred_check
      %p4380 = pneg %p4379
    $region46: #{resblock_forward.3} parent=5 // pred_check_branch
      %4382 = sbr.rel (%p4380) target = $region48
    $region47: #{resblock_forward.3} parent=5 // pred_region
      %s4383 = ssub.s32 %s11, 2
      // Predicated region
      $region49: #{resblock_forward.3} parent=47 // pred_check
        %p4384 = pneg %p184
      $region50: #{resblock_forward.3} parent=47 // pred_check_branch
        %4386 = sbr.rel (%p4384) target = $region52
      $region51: #{resblock_forward.3} parent=47 // pred_region
        %s4387 = smul.u32 16, %s23
        %p4388 = scmp.lt.s32.totalorder %s22, 1
        %s4389 = scalar_select %p4388, %s22, 1
        %p4390 = scmp.lt.s32.totalorder %s4387, 15
        %s4391 = scalar_select %p4390, %s4387, 15
        %s4392 = smul.addr %s4389, 16
        %s4393 = sadd.s32 %s4391, %s4392
        %s4394 = smul.addr %s4393, 8
        %s4395 = scalar_lea.vmem %s5, %s4394
      $region52: #{resblock_forward.3} parent=47 // pred_fallthru
        _
    $region48: #{resblock_forward.3} parent=5 // pred_fallthru
      _
  $region6: #{resblock_forward.3} parent=0 // loop_footer
    %s15 = sadd.s32 1, %s11
  $region7: #{resblock_forward.3} parent=0 // loop_footer_branch
    %10 = sbr.rel target = $region3
  $region8: #{resblock_forward.3} parent=0 // loop_exit
    _

</llo_original>
